<compile_context>
chip_gen: v6e
topology: v6e:2x2x1
jax: 0.10.0
libtpu: 0.0.40
codegen_flags: <defaults>
</compile_context>

<pallas_src>
import math

import jax
import jax.numpy as jnp
from jax.experimental import pallas as pl
from jax.experimental.pallas import tpu as pltpu


# ---------------- Pallas kernels ----------------

def _conv_relu_pool_kernel(p_ref, w_ref, b_ref, o_ref):
    """Fused conv-as-GEMM + bias + ReLU + 2x2/stride-2 maxpool, one M tile.

    p_ref: (4, K, TM) bf16 im2col patches; leading axis = pool phase (qy, qx),
           lane axis = TM pooled output positions (flattened (n, i, j)).
    w_ref: (Cout, K) bf16 weights.   b_ref: (Cout, 1) f32 bias.
    o_ref: (Cout, TM) pooled activations (bf16), lane-dense store.
    """
    acc = jnp.dot(w_ref[...], p_ref[0], preferred_element_type=jnp.float32)
    for ph in range(1, 4):
        acc = jnp.maximum(
            acc,
            jnp.dot(w_ref[...], p_ref[ph], preferred_element_type=jnp.float32))
    # Bias is per-channel (phase-independent) and ReLU is monotonic, so doing
    # them once after the pool-max is exact.
    o_ref[...] = jnp.maximum(acc + b_ref[...], 0.0).astype(o_ref.dtype)


def _pick_tm(mq, pref=512):
    """Largest multiple of 128 <= pref that divides mq, else mq (single block)."""
    if mq <= pref:
        return mq
    for tm in range(pref, 127, -128):
        if mq % tm == 0:
            return tm
    return mq


def conv_relu_pool(p_phased, w, b, *, tm=512, out_dtype=jnp.bfloat16):
    _, K, Mq = p_phased.shape
    Cout = w.shape[0]
    TM = _pick_tm(Mq, tm)
    return pl.pallas_call(
        _conv_relu_pool_kernel,
        out_shape=jax.ShapeDtypeStruct((Cout, Mq), out_dtype),
        grid=(Mq // TM,),
        in_specs=[
            pl.BlockSpec((4, K, TM), lambda m: (0, 0, m)),
            pl.BlockSpec((Cout, K), lambda m: (0, 0)),
            pl.BlockSpec((Cout, 1), lambda m: (0, 0)),
        ],
        out_specs=pl.BlockSpec((Cout, TM), lambda m: (0, m)),
        compiler_params=pltpu.CompilerParams(
            dimension_semantics=("parallel",)),
    )(p_phased, w, b.reshape(Cout, 1))


def _conv_relu_fc_kernel(p_ref, w_ref, b_ref, wfs_ref, bfc_ref, o_ref):
    """Fused conv3 GEMM + bias + ReLU + PyTorch NCHW flatten + fc_1.

    p_ref  : (S, N, K3) bf16 conv3 im2col patches; leading axis = conv3 spatial
             position s = oh*OW3 + ow, so the loop bound is batch-independent.
    w_ref  : (K3, C3) bf16.   b_ref: (1, C3) f32.
    wfs_ref: (S, C3, n_out) f32 with wfs[s, c, o] = fc_w[o, c*S + s]
             (folds the NCHW .view(N, -1) flatten order).
    bfc_ref: (1, n_out) f32.   o_ref: (N, n_out) f32.
    """
    total = None
    for s in range(p_ref.shape[0]):
        a_s = jnp.maximum(
            jnp.dot(p_ref[s], w_ref[...], preferred_element_type=jnp.float32)
            + b_ref[...], 0.0)                                    # (N, C3) f32
        part = jnp.dot(a_s, wfs_ref[s], preferred_element_type=jnp.float32)
        total = part if total is None else total + part
    o_ref[...] = total + bfc_ref[...]


def conv_relu_fc(p3, w3, b3, wfs, bfc):
    S, N, K3 = p3.shape
    C3 = w3.shape[1]
    n_out = wfs.shape[2]
    return pl.pallas_call(
        _conv_relu_fc_kernel,
        out_shape=jax.ShapeDtypeStruct((N, n_out), jnp.float32),
        grid=(1,),
        in_specs=[
            pl.BlockSpec((S, N, K3), lambda i: (0, 0, 0)),
            pl.BlockSpec((K3, C3), lambda i: (0, 0)),
            pl.BlockSpec((1, C3), lambda i: (0, 0)),
            pl.BlockSpec((S, C3, n_out), lambda i: (0, 0, 0)),
            pl.BlockSpec((1, n_out), lambda i: (0, 0)),
        ],
        out_specs=pl.BlockSpec((N, n_out), lambda i: (0, 0)),
        compiler_params=pltpu.CompilerParams(dimension_semantics=("arbitrary",)),
    )(p3, w3, b3.reshape(1, C3), wfs, bfc.reshape(1, n_out))


# ---------------- Wrapper glue: patch construction (plain JAX, strided slices) ----------------

def _phased_im2col_cnhw(x_cnhw, KH, KW, pad):
    """Phased im2col for a stride-2 conv fused with a 2x2/stride-2 maxpool.

    x_cnhw: (C, N, H, W). Returns p of shape (4, C*KH*KW, N*ohq*owq) where the
    leading axis is the pool phase (qy, qx), K is ordered (ci, kh, kw) to match
    conv_w.reshape(Cout, -1), and M is ordered (n, i, j). Built purely from
    strided slices + stack (no large transposes).
    """
    C, N, H, W = x_cnhw.shape
    OH = (H + 2 * pad - KH) // 2 + 1
    OW = (W + 2 * pad - KW) // 2 + 1
    ohq, owq = OH // 2, OW // 2
    Mq = N * ohq * owq
    xp = jnp.pad(x_cnhw, ((0, 0), (0, 0), (pad, pad), (pad, pad)))
    phases = []
    for qy in (0, 1):
        for qx in (0, 1):
            taps = [xp[:, :,
                       2 * qy + kh: 2 * qy + kh + 4 * ohq: 4,
                       2 * qx + kw: 2 * qx + kw + 4 * owq: 4]
                    for kh in range(KH) for kw in range(KW)]
            t = jnp.stack(taps, axis=1)           # (C, KH*KW, N, ohq, owq)
            phases.append(t.reshape(C * KH * KW, Mq))
    return jnp.stack(phases, axis=0), (ohq, owq)


def _im2col(x_nhwc, KH, KW, stride, pad):
    """Plain im2col (layer 3 only, tiny): (N, OH, OW, KH*KW*Cin), K=(kh,kw,ci)."""
    N, H, W, C = x_nhwc.shape
    OH = (H + 2 * pad - KH) // stride + 1
    OW = (W + 2 * pad - KW) // stride + 1
    xp = jnp.pad(x_nhwc, ((0, 0), (pad, pad), (pad, pad), (0, 0)))
    cols = [xp[:, kh:kh + stride * OH:stride, kw:kw + stride * OW:stride, :]
            for kh in range(KH) for kw in range(KW)]
    return jnp.concatenate(cols, axis=-1), OH, OW


# ---------------- Full forward (matches Target.forward) ----------------

@jax.jit
def target_forward(params, x_nchw):
    N = x_nchw.shape[0]
    # CNHW layout keeps channels leading so every kernel's (Cout, N*oh*ow)
    # output feeds the next layer's im2col with a free reshape.
    # bf16 cast happens BEFORE the 25x im2col expansion.
    x1 = jnp.transpose(x_nchw, (1, 0, 2, 3)).astype(jnp.bfloat16)   # (3, N, H, W)

    # ---- layer 1: conv1 + ReLU + maxpool ----
    p1, (h1, w1s) = _phased_im2col_cnhw(x1, 5, 5, 2)                # (4, 75, N*1024/4)
    w1 = params["conv1_w"].reshape(16, -1).astype(jnp.bfloat16)     # K = (ci, kh, kw)
    z1 = conv_relu_pool(p1, w1, params["conv1_b"])                  # (16, N*16*16) bf16
    x2 = z1.reshape(16, N, h1, w1s)                                 # CNHW

    # ---- layer 2: conv2 + ReLU + maxpool ----
    p2, (h2, w2s) = _phased_im2col_cnhw(x2, 5, 5, 2)                # (4, 400, N*16)
    w2 = params["conv2_w"].reshape(64, -1).astype(jnp.bfloat16)
    z2 = conv_relu_pool(p2, w2, params["conv2_b"])                  # (64, N*4*4) bf16
    x3 = z2.reshape(64, N, h2, w2s)                                 # CNHW

    # ---- layer 3: conv3 + ReLU + NCHW flatten + fc_1 (tiny arrays) ----
    x3_nhwc = jnp.transpose(x3, (1, 2, 3, 0))                       # (N, 4, 4, 64) small
    p3, oh3, ow3 = _im2col(x3_nhwc, 5, 5, 2, 2)                     # (N, 2, 2, 1600)
    S3 = oh3 * ow3
    p3 = jnp.transpose(p3.reshape(N, S3, -1), (1, 0, 2))            # (S3, N, 1600)
    w3 = jnp.transpose(params["conv3_w"], (2, 3, 1, 0)).reshape(-1, 8)
    w3 = w3.astype(jnp.bfloat16)                                    # K = (kh, kw, ci)
    n_out = params["fc_w"].shape[0]
    # wfs[s, c, o] = fc_w[o, c*S3 + s]   (folds the NCHW .view(N, -1) order)
    wfs = params["fc_w"].reshape(n_out, 8, S3).transpose(2, 1, 0)   # (S3, 8, n_out)
    return conv_relu_fc(p3, w3, params["conv3_b"], wfs, params["fc_b"])


# ---------------- Pure-JAX reference for sanity checking ----------------

def reference_forward(params, x_nchw):
    def conv(x, w, b, stride, pad):
        y = jax.lax.conv_general_dilated(
            x, w, window_strides=(stride, stride),
            padding=((pad, pad), (pad, pad)),
            dimension_numbers=("NCHW", "OIHW", "NCHW"))
        return jax.nn.relu(y + b[None, :, None, None])

    def pool(x):
        return jax.lax.reduce_window(x, -jnp.inf, jax.lax.max,
                                     (1, 1, 2, 2), (1, 1, 2, 2), "VALID")

    z = conv(x_nchw, params["conv1_w"], params["conv1_b"], 2, 2)
    z = pool(z)
    z = conv(z, params["conv2_w"], params["conv2_b"], 2, 2)
    z = pool(z)
    z = conv(z, params["conv3_w"], params["conv3_b"], 2, 2)
    z = z.reshape(z.shape[0], -1)
    return z @ params["fc_w"].T + params["fc_b"]


if __name__ == "__main__":
    key = jax.random.PRNGKey(0)
    k_x, k1, k2, k3, k4 = jax.random.split(key, 5)

    # Deterministic synthetic parameters (same shapes/std as Target.init_weights).
    params = {
        "conv1_w": jax.random.normal(k1, (16, 3, 5, 5), jnp.float32) / math.sqrt(5 * 5 * 3),
        "conv1_b": jnp.zeros((16,), jnp.float32),
        "conv2_w": jax.random.normal(k2, (64, 16, 5, 5), jnp.float32) / math.sqrt(5 * 5 * 16),
        "conv2_b": jnp.zeros((64,), jnp.float32),
        "conv3_w": jax.random.normal(k3, (8, 64, 5, 5), jnp.float32) / math.sqrt(5 * 5 * 64),
        "conv3_b": jnp.zeros((8,), jnp.float32),
        "fc_w": jax.random.normal(k4, (2, 32), jnp.float32) / 32.0,
        "fc_b": jnp.zeros((2,), jnp.float32),
    }

    # Input must be 64x64 so the flattened conv3 output has 8*2*2 = 32 features,
    # matching fc_1 = Linear(32, 2).
    x = jax.random.normal(k_x, (2, 3, 64, 64), jnp.float32)

    out = jax.block_until_ready(target_forward(params, x))
    ref = jax.block_until_ready(reference_forward(params, x))
    assert out.shape == (2, 2), out.shape
    # NOTE: conv GEMM operands run in bf16 (f32 accumulation) — intentional
    # precision tradeoff vs an f32 PyTorch reference; tolerance reflects that.
    assert jnp.allclose(out, ref, rtol=1e-2, atol=1e-2), (out, ref)
    print("KERNEL_OK")
</pallas_src>

<mosaic_0001>
module attributes {stable_mosaic.version = 11 : i64} {
  func.func @_conv_relu_pool_kernel(%arg0: i32, %arg1: memref<4x75x512xbf16, #tpu.memory_space<vmem>>, %arg2: memref<16x75xbf16, #tpu.memory_space<vmem>>, %arg3: memref<16x1xf32, #tpu.memory_space<vmem>>, %arg4: memref<16x512xbf16, #tpu.memory_space<vmem>>) attributes {dimension_semantics = [#tpu.dimension_semantics<parallel>], iteration_bounds = array<i64: 1>, scalar_prefetch = 0 : i64, scratch_operands = 0 : i64, tpu.core_type = #tpu.core_type<tc>, window_params = [{transform_indices = @transform_0, window_bounds = array<i64: 4, 75, 512>}, {pipeline_mode = #tpu.pipeline_mode<synchronous>, transform_indices = @transform_1, window_bounds = array<i64: 16, 75>}, {pipeline_mode = #tpu.pipeline_mode<synchronous>, transform_indices = @transform_2, window_bounds = array<i64: 16, 1>}, {transform_indices = @transform_3, window_bounds = array<i64: 16, 512>}]} {
    %c0 = arith.constant 0 : index
    %c0_0 = arith.constant 0 : index
    %0 = vector.load %arg2[%c0, %c0_0] : memref<16x75xbf16, #tpu.memory_space<vmem>>, vector<16x75xbf16>
    %c0_1 = arith.constant 0 : index
    %c0_2 = arith.constant 0 : index
    %c0_3 = arith.constant 0 : index
    %1 = vector.load %arg1[%c0_1, %c0_2, %c0_3] : memref<4x75x512xbf16, #tpu.memory_space<vmem>>, vector<1x75x512xbf16>
    %2 = vector.shape_cast %1 : vector<1x75x512xbf16> to vector<75x512xbf16>
    %cst = arith.constant dense<0.000000e+00> : vector<16x512xf32>
    %3 = tpu.matmul %0, %2, %cst {dimension_numbers = #tpu.dot_dimension_numbers<[1], [0], [0], [1], [0, 0, 1, 1], [], []>} : vector<16x75xbf16>, vector<75x512xbf16>, vector<16x512xf32> -> vector<16x512xf32>
    %c0_4 = arith.constant 0 : index
    %c0_5 = arith.constant 0 : index
    %4 = vector.load %arg2[%c0_4, %c0_5] : memref<16x75xbf16, #tpu.memory_space<vmem>>, vector<16x75xbf16>
    %c1 = arith.constant 1 : index
    %c0_6 = arith.constant 0 : index
    %c0_7 = arith.constant 0 : index
    %5 = vector.load %arg1[%c1, %c0_6, %c0_7] : memref<4x75x512xbf16, #tpu.memory_space<vmem>>, vector<1x75x512xbf16>
    %6 = vector.shape_cast %5 : vector<1x75x512xbf16> to vector<75x512xbf16>
    %cst_8 = arith.constant dense<0.000000e+00> : vector<16x512xf32>
    %7 = tpu.matmul %4, %6, %cst_8 {dimension_numbers = #tpu.dot_dimension_numbers<[1], [0], [0], [1], [0, 0, 1, 1], [], []>} : vector<16x75xbf16>, vector<75x512xbf16>, vector<16x512xf32> -> vector<16x512xf32>
    %8 = arith.maximumf %3, %7 : vector<16x512xf32>
    %c0_9 = arith.constant 0 : index
    %c0_10 = arith.constant 0 : index
    %9 = vector.load %arg2[%c0_9, %c0_10] : memref<16x75xbf16, #tpu.memory_space<vmem>>, vector<16x75xbf16>
    %c2 = arith.constant 2 : index
    %c0_11 = arith.constant 0 : index
    %c0_12 = arith.constant 0 : index
    %10 = vector.load %arg1[%c2, %c0_11, %c0_12] : memref<4x75x512xbf16, #tpu.memory_space<vmem>>, vector<1x75x512xbf16>
    %11 = vector.shape_cast %10 : vector<1x75x512xbf16> to vector<75x512xbf16>
    %cst_13 = arith.constant dense<0.000000e+00> : vector<16x512xf32>
    %12 = tpu.matmul %9, %11, %cst_13 {dimension_numbers = #tpu.dot_dimension_numbers<[1], [0], [0], [1], [0, 0, 1, 1], [], []>} : vector<16x75xbf16>, vector<75x512xbf16>, vector<16x512xf32> -> vector<16x512xf32>
    %13 = arith.maximumf %8, %12 : vector<16x512xf32>
    %c0_14 = arith.constant 0 : index
    %c0_15 = arith.constant 0 : index
    %14 = vector.load %arg2[%c0_14, %c0_15] : memref<16x75xbf16, #tpu.memory_space<vmem>>, vector<16x75xbf16>
    %c3 = arith.constant 3 : index
    %c0_16 = arith.constant 0 : index
    %c0_17 = arith.constant 0 : index
    %15 = vector.load %arg1[%c3, %c0_16, %c0_17] : memref<4x75x512xbf16, #tpu.memory_space<vmem>>, vector<1x75x512xbf16>
    %16 = vector.shape_cast %15 : vector<1x75x512xbf16> to vector<75x512xbf16>
    %cst_18 = arith.constant dense<0.000000e+00> : vector<16x512xf32>
    %17 = tpu.matmul %14, %16, %cst_18 {dimension_numbers = #tpu.dot_dimension_numbers<[1], [0], [0], [1], [0, 0, 1, 1], [], []>} : vector<16x75xbf16>, vector<75x512xbf16>, vector<16x512xf32> -> vector<16x512xf32>
    %18 = arith.maximumf %13, %17 : vector<16x512xf32>
    %c0_19 = arith.constant 0 : index
    %c0_20 = arith.constant 0 : index
    %19 = vector.load %arg3[%c0_19, %c0_20] : memref<16x1xf32, #tpu.memory_space<vmem>>, vector<16x1xf32>
    %20 = vector.broadcast %19 : vector<16x1xf32> to vector<16x512xf32>
    %21 = arith.addf %18, %20 : vector<16x512xf32>
    %cst_21 = arith.constant 0.000000e+00 : f32
    %22 = vector.broadcast %cst_21 : f32 to vector<16x512xf32>
    %23 = arith.maximumf %21, %22 : vector<16x512xf32>
    %24 = arith.truncf %23 : vector<16x512xf32> to vector<16x512xbf16>
    %c0_22 = arith.constant 0 : index
    %c0_23 = arith.constant 0 : index
    %25 = vector.load %arg4[%c0_22, %c0_23] : memref<16x512xbf16, #tpu.memory_space<vmem>>, vector<16x512xbf16>
    tpu.vector_store %arg4[%c0_22, %c0_23], %24 {strides = array<i32>} : memref<16x512xbf16, #tpu.memory_space<vmem>>, vector<16x512xbf16>,
    return
  }
  func.func @transform_0(%arg0: i32) -> (i32, i32, i32) {
    %c0_i32 = arith.constant 0 : i32
    %c0_i32_0 = arith.constant 0 : i32
    %c0_i32_1 = arith.constant 0 : i32
    return %c0_i32, %c0_i32_0, %arg0 : i32, i32, i32
  }
  func.func @transform_1(%arg0: i32) -> (i32, i32) {
    %c0_i32 = arith.constant 0 : i32
    %c0_i32_0 = arith.constant 0 : i32
    %c0_i32_1 = arith.constant 0 : i32
    return %c0_i32, %c0_i32_0 : i32, i32
  }
  func.func @transform_2(%arg0: i32) -> (i32, i32) {
    %c0_i32 = arith.constant 0 : i32
    %c0_i32_0 = arith.constant 0 : i32
    %c0_i32_1 = arith.constant 0 : i32
    return %c0_i32, %c0_i32_0 : i32, i32
  }
  func.func @transform_3(%arg0: i32) -> (i32, i32) {
    %c0_i32 = arith.constant 0 : i32
    %c0_i32_0 = arith.constant 0 : i32
    return %c0_i32, %arg0 : i32, i32
  }
}

module attributes {stable_mosaic.version = 11 : i64} {
  func.func @_conv_relu_pool_kernel(%arg0: i32, %arg1: memref<4x400x32xbf16, #tpu.memory_space<vmem>>, %arg2: memref<64x400xbf16, #tpu.memory_space<vmem>>, %arg3: memref<64x1xf32, #tpu.memory_space<vmem>>, %arg4: memref<64x32xbf16, #tpu.memory_space<vmem>>) attributes {dimension_semantics = [#tpu.dimension_semantics<parallel>], iteration_bounds = array<i64: 1>, scalar_prefetch = 0 : i64, scratch_operands = 0 : i64, tpu.core_type = #tpu.core_type<tc>, window_params = [{transform_indices = @transform_0, window_bounds = array<i64: 4, 400, 32>}, {pipeline_mode = #tpu.pipeline_mode<synchronous>, transform_indices = @transform_1, window_bounds = array<i64: 64, 400>}, {pipeline_mode = #tpu.pipeline_mode<synchronous>, transform_indices = @transform_2, window_bounds = array<i64: 64, 1>}, {transform_indices = @transform_3, window_bounds = array<i64: 64, 32>}]} {
    %c0 = arith.constant 0 : index
    %c0_0 = arith.constant 0 : index
    %0 = vector.load %arg2[%c0, %c0_0] : memref<64x400xbf16, #tpu.memory_space<vmem>>, vector<64x400xbf16>
    %c0_1 = arith.constant 0 : index
    %c0_2 = arith.constant 0 : index
    %c0_3 = arith.constant 0 : index
    %1 = vector.load %arg1[%c0_1, %c0_2, %c0_3] : memref<4x400x32xbf16, #tpu.memory_space<vmem>>, vector<1x400x32xbf16>
    %2 = vector.shape_cast %1 : vector<1x400x32xbf16> to vector<400x32xbf16>
    %cst = arith.constant dense<0.000000e+00> : vector<64x32xf32>
    %3 = tpu.matmul %0, %2, %cst {dimension_numbers = #tpu.dot_dimension_numbers<[1], [0], [0], [1], [0, 0, 1, 1], [], []>} : vector<64x400xbf16>, vector<400x32xbf16>, vector<64x32xf32> -> vector<64x32xf32>
    %c0_4 = arith.constant 0 : index
    %c0_5 = arith.constant 0 : index
    %4 = vector.load %arg2[%c0_4, %c0_5] : memref<64x400xbf16, #tpu.memory_space<vmem>>, vector<64x400xbf16>
    %c1 = arith.constant 1 : index
    %c0_6 = arith.constant 0 : index
    %c0_7 = arith.constant 0 : index
    %5 = vector.load %arg1[%c1, %c0_6, %c0_7] : memref<4x400x32xbf16, #tpu.memory_space<vmem>>, vector<1x400x32xbf16>
    %6 = vector.shape_cast %5 : vector<1x400x32xbf16> to vector<400x32xbf16>
    %cst_8 = arith.constant dense<0.000000e+00> : vector<64x32xf32>
    %7 = tpu.matmul %4, %6, %cst_8 {dimension_numbers = #tpu.dot_dimension_numbers<[1], [0], [0], [1], [0, 0, 1, 1], [], []>} : vector<64x400xbf16>, vector<400x32xbf16>, vector<64x32xf32> -> vector<64x32xf32>
    %8 = arith.maximumf %3, %7 : vector<64x32xf32>
    %c0_9 = arith.constant 0 : index
    %c0_10 = arith.constant 0 : index
    %9 = vector.load %arg2[%c0_9, %c0_10] : memref<64x400xbf16, #tpu.memory_space<vmem>>, vector<64x400xbf16>
    %c2 = arith.constant 2 : index
    %c0_11 = arith.constant 0 : index
    %c0_12 = arith.constant 0 : index
    %10 = vector.load %arg1[%c2, %c0_11, %c0_12] : memref<4x400x32xbf16, #tpu.memory_space<vmem>>, vector<1x400x32xbf16>
    %11 = vector.shape_cast %10 : vector<1x400x32xbf16> to vector<400x32xbf16>
    %cst_13 = arith.constant dense<0.000000e+00> : vector<64x32xf32>
    %12 = tpu.matmul %9, %11, %cst_13 {dimension_numbers = #tpu.dot_dimension_numbers<[1], [0], [0], [1], [0, 0, 1, 1], [], []>} : vector<64x400xbf16>, vector<400x32xbf16>, vector<64x32xf32> -> vector<64x32xf32>
    %13 = arith.maximumf %8, %12 : vector<64x32xf32>
    %c0_14 = arith.constant 0 : index
    %c0_15 = arith.constant 0 : index
    %14 = vector.load %arg2[%c0_14, %c0_15] : memref<64x400xbf16, #tpu.memory_space<vmem>>, vector<64x400xbf16>
    %c3 = arith.constant 3 : index
    %c0_16 = arith.constant 0 : index
    %c0_17 = arith.constant 0 : index
    %15 = vector.load %arg1[%c3, %c0_16, %c0_17] : memref<4x400x32xbf16, #tpu.memory_space<vmem>>, vector<1x400x32xbf16>
    %16 = vector.shape_cast %15 : vector<1x400x32xbf16> to vector<400x32xbf16>
    %cst_18 = arith.constant dense<0.000000e+00> : vector<64x32xf32>
    %17 = tpu.matmul %14, %16, %cst_18 {dimension_numbers = #tpu.dot_dimension_numbers<[1], [0], [0], [1], [0, 0, 1, 1], [], []>} : vector<64x400xbf16>, vector<400x32xbf16>, vector<64x32xf32> -> vector<64x32xf32>
    %18 = arith.maximumf %13, %17 : vector<64x32xf32>
    %c0_19 = arith.constant 0 : index
    %c0_20 = arith.constant 0 : index
    %19 = vector.load %arg3[%c0_19, %c0_20] : memref<64x1xf32, #tpu.memory_space<vmem>>, vector<64x1xf32>
    %20 = vector.broadcast %19 : vector<64x1xf32> to vector<64x32xf32>
    %21 = arith.addf %18, %20 : vector<64x32xf32>
    %cst_21 = arith.constant 0.000000e+00 : f32
    %22 = vector.broadcast %cst_21 : f32 to vector<64x32xf32>
    %23 = arith.maximumf %21, %22 : vector<64x32xf32>
    %24 = arith.truncf %23 : vector<64x32xf32> to vector<64x32xbf16>
    %c0_22 = arith.constant 0 : index
    %c0_23 = arith.constant 0 : index
    %25 = vector.load %arg4[%c0_22, %c0_23] : memref<64x32xbf16, #tpu.memory_space<vmem>>, vector<64x32xbf16>
    tpu.vector_store %arg4[%c0_22, %c0_23], %24 {strides = array<i32>} : memref<64x32xbf16, #tpu.memory_space<vmem>>, vector<64x32xbf16>,
    return
  }
  func.func @transform_0(%arg0: i32) -> (i32, i32, i32) {
    %c0_i32 = arith.constant 0 : i32
    %c0_i32_0 = arith.constant 0 : i32
    %c0_i32_1 = arith.constant 0 : i32
    return %c0_i32, %c0_i32_0, %arg0 : i32, i32, i32
  }
  func.func @transform_1(%arg0: i32) -> (i32, i32) {
    %c0_i32 = arith.constant 0 : i32
    %c0_i32_0 = arith.constant 0 : i32
    %c0_i32_1 = arith.constant 0 : i32
    return %c0_i32, %c0_i32_0 : i32, i32
  }
  func.func @transform_2(%arg0: i32) -> (i32, i32) {
    %c0_i32 = arith.constant 0 : i32
    %c0_i32_0 = arith.constant 0 : i32
    %c0_i32_1 = arith.constant 0 : i32
    return %c0_i32, %c0_i32_0 : i32, i32
  }
  func.func @transform_3(%arg0: i32) -> (i32, i32) {
    %c0_i32 = arith.constant 0 : i32
    %c0_i32_0 = arith.constant 0 : i32
    return %c0_i32, %arg0 : i32, i32
  }
}

module attributes {stable_mosaic.version = 11 : i64} {
  func.func @_conv_relu_fc_kernel(%arg0: i32, %arg1: memref<4x2x1600xbf16, #tpu.memory_space<vmem>>, %arg2: memref<1600x8xbf16, #tpu.memory_space<vmem>>, %arg3: memref<1x8xf32, #tpu.memory_space<vmem>>, %arg4: memref<4x8x2xf32, #tpu.memory_space<vmem>>, %arg5: memref<1x2xf32, #tpu.memory_space<vmem>>, %arg6: memref<2x2xf32, #tpu.memory_space<vmem>>) attributes {dimension_semantics = [#tpu.dimension_semantics<arbitrary>], iteration_bounds = array<i64: 1>, scalar_prefetch = 0 : i64, scratch_operands = 0 : i64, tpu.core_type = #tpu.core_type<tc>, window_params = [{pipeline_mode = #tpu.pipeline_mode<synchronous>, transform_indices = @transform_0, window_bounds = array<i64: 4, 2, 1600>}, {pipeline_mode = #tpu.pipeline_mode<synchronous>, transform_indices = @transform_1, window_bounds = array<i64: 1600, 8>}, {pipeline_mode = #tpu.pipeline_mode<synchronous>, transform_indices = @transform_2, window_bounds = array<i64: 1, 8>}, {pipeline_mode = #tpu.pipeline_mode<synchronous>, transform_indices = @transform_3, window_bounds = array<i64: 4, 8, 2>}, {pipeline_mode = #tpu.pipeline_mode<synchronous>, transform_indices = @transform_4, window_bounds = array<i64: 1, 2>}, {pipeline_mode = #tpu.pipeline_mode<synchronous>, transform_indices = @transform_5, window_bounds = array<i64: 2, 2>}]} {
    %c0 = arith.constant 0 : index
    %c0_0 = arith.constant 0 : index
    %c0_1 = arith.constant 0 : index
    %0 = vector.load %arg1[%c0, %c0_0, %c0_1] : memref<4x2x1600xbf16, #tpu.memory_space<vmem>>, vector<1x2x1600xbf16>
    %1 = vector.shape_cast %0 : vector<1x2x1600xbf16> to vector<2x1600xbf16>
    %c0_2 = arith.constant 0 : index
    %c0_3 = arith.constant 0 : index
    %2 = vector.load %arg2[%c0_2, %c0_3] : memref<1600x8xbf16, #tpu.memory_space<vmem>>, vector<1600x8xbf16>
    %cst = arith.constant dense<0.000000e+00> : vector<2x8xf32>
    %3 = tpu.matmul %1, %2, %cst {dimension_numbers = #tpu.dot_dimension_numbers<[1], [0], [0], [1], [0, 0, 1, 1], [], []>} : vector<2x1600xbf16>, vector<1600x8xbf16>, vector<2x8xf32> -> vector<2x8xf32>
    %c0_4 = arith.constant 0 : index
    %c0_5 = arith.constant 0 : index
    %4 = vector.load %arg3[%c0_4, %c0_5] : memref<1x8xf32, #tpu.memory_space<vmem>>, vector<1x8xf32>
    %5 = vector.broadcast %4 : vector<1x8xf32> to vector<2x8xf32>
    %6 = arith.addf %3, %5 : vector<2x8xf32>
    %cst_6 = arith.constant 0.000000e+00 : f32
    %7 = vector.broadcast %cst_6 : f32 to vector<2x8xf32>
    %8 = arith.maximumf %6, %7 : vector<2x8xf32>
    %c0_7 = arith.constant 0 : index
    %c0_8 = arith.constant 0 : index
    %c0_9 = arith.constant 0 : index
    %9 = vector.load %arg4[%c0_7, %c0_8, %c0_9] : memref<4x8x2xf32, #tpu.memory_space<vmem>>, vector<1x8x2xf32>
    %10 = vector.shape_cast %9 : vector<1x8x2xf32> to vector<8x2xf32>
    %cst_10 = arith.constant dense<0.000000e+00> : vector<2x2xf32>
    %11 = tpu.matmul %8, %10, %cst_10 {dimension_numbers = #tpu.dot_dimension_numbers<[1], [0], [0], [1], [0, 0, 1, 1], [], []>} : vector<2x8xf32>, vector<8x2xf32>, vector<2x2xf32> -> vector<2x2xf32>
    %c1 = arith.constant 1 : index
    %c0_11 = arith.constant 0 : index
    %c0_12 = arith.constant 0 : index
    %12 = vector.load %arg1[%c1, %c0_11, %c0_12] : memref<4x2x1600xbf16, #tpu.memory_space<vmem>>, vector<1x2x1600xbf16>
    %13 = vector.shape_cast %12 : vector<1x2x1600xbf16> to vector<2x1600xbf16>
    %c0_13 = arith.constant 0 : index
    %c0_14 = arith.constant 0 : index
    %14 = vector.load %arg2[%c0_13, %c0_14] : memref<1600x8xbf16, #tpu.memory_space<vmem>>, vector<1600x8xbf16>
    %cst_15 = arith.constant dense<0.000000e+00> : vector<2x8xf32>
    %15 = tpu.matmul %13, %14, %cst_15 {dimension_numbers = #tpu.dot_dimension_numbers<[1], [0], [0], [1], [0, 0, 1, 1], [], []>} : vector<2x1600xbf16>, vector<1600x8xbf16>, vector<2x8xf32> -> vector<2x8xf32>
    %c0_16 = arith.constant 0 : index
    %c0_17 = arith.constant 0 : index
    %16 = vector.load %arg3[%c0_16, %c0_17] : memref<1x8xf32, #tpu.memory_space<vmem>>, vector<1x8xf32>
    %17 = vector.broadcast %16 : vector<1x8xf32> to vector<2x8xf32>
    %18 = arith.addf %15, %17 : vector<2x8xf32>
    %cst_18 = arith.constant 0.000000e+00 : f32
    %19 = vector.broadcast %cst_18 : f32 to vector<2x8xf32>
    %20 = arith.maximumf %18, %19 : vector<2x8xf32>
    %c1_19 = arith.constant 1 : index
    %c0_20 = arith.constant 0 : index
    %c0_21 = arith.constant 0 : index
    %21 = vector.load %arg4[%c1_19, %c0_20, %c0_21] : memref<4x8x2xf32, #tpu.memory_space<vmem>>, vector<1x8x2xf32>
    %22 = vector.shape_cast %21 : vector<1x8x2xf32> to vector<8x2xf32>
    %cst_22 = arith.constant dense<0.000000e+00> : vector<2x2xf32>
    %23 = tpu.matmul %20, %22, %cst_22 {dimension_numbers = #tpu.dot_dimension_numbers<[1], [0], [0], [1], [0, 0, 1, 1], [], []>} : vector<2x8xf32>, vector<8x2xf32>, vector<2x2xf32> -> vector<2x2xf32>
    %24 = arith.addf %11, %23 : vector<2x2xf32>
    %c2 = arith.constant 2 : index
    %c0_23 = arith.constant 0 : index
    %c0_24 = arith.constant 0 : index
    %25 = vector.load %arg1[%c2, %c0_23, %c0_24] : memref<4x2x1600xbf16, #tpu.memory_space<vmem>>, vector<1x2x1600xbf16>
    %26 = vector.shape_cast %25 : vector<1x2x1600xbf16> to vector<2x1600xbf16>
    %c0_25 = arith.constant 0 : index
    %c0_26 = arith.constant 0 : index
    %27 = vector.load %arg2[%c0_25, %c0_26] : memref<1600x8xbf16, #tpu.memory_space<vmem>>, vector<1600x8xbf16>
    %cst_27 = arith.constant dense<0.000000e+00> : vector<2x8xf32>
    %28 = tpu.matmul %26, %27, %cst_27 {dimension_numbers = #tpu.dot_dimension_numbers<[1], [0], [0], [1], [0, 0, 1, 1], [], []>} : vector<2x1600xbf16>, vector<1600x8xbf16>, vector<2x8xf32> -> vector<2x8xf32>
    %c0_28 = arith.constant 0 : index
    %c0_29 = arith.constant 0 : index
    %29 = vector.load %arg3[%c0_28, %c0_29] : memref<1x8xf32, #tpu.memory_space<vmem>>, vector<1x8xf32>
    %30 = vector.broadcast %29 : vector<1x8xf32> to vector<2x8xf32>
    %31 = arith.addf %28, %30 : vector<2x8xf32>
    %cst_30 = arith.constant 0.000000e+00 : f32
    %32 = vector.broadcast %cst_30 : f32 to vector<2x8xf32>
    %33 = arith.maximumf %31, %32 : vector<2x8xf32>
    %c2_31 = arith.constant 2 : index
    %c0_32 = arith.constant 0 : index
    %c0_33 = arith.constant 0 : index
    %34 = vector.load %arg4[%c2_31, %c0_32, %c0_33] : memref<4x8x2xf32, #tpu.memory_space<vmem>>, vector<1x8x2xf32>
    %35 = vector.shape_cast %34 : vector<1x8x2xf32> to vector<8x2xf32>
    %cst_34 = arith.constant dense<0.000000e+00> : vector<2x2xf32>
    %36 = tpu.matmul %33, %35, %cst_34 {dimension_numbers = #tpu.dot_dimension_numbers<[1], [0], [0], [1], [0, 0, 1, 1], [], []>} : vector<2x8xf32>, vector<8x2xf32>, vector<2x2xf32> -> vector<2x2xf32>
    %37 = arith.addf %24, %36 : vector<2x2xf32>
    %c3 = arith.constant 3 : index
    %c0_35 = arith.constant 0 : index
    %c0_36 = arith.constant 0 : index
    %38 = vector.load %arg1[%c3, %c0_35, %c0_36] : memref<4x2x1600xbf16, #tpu.memory_space<vmem>>, vector<1x2x1600xbf16>
    %39 = vector.shape_cast %38 : vector<1x2x1600xbf16> to vector<2x1600xbf16>
    %c0_37 = arith.constant 0 : index
    %c0_38 = arith.constant 0 : index
    %40 = vector.load %arg2[%c0_37, %c0_38] : memref<1600x8xbf16, #tpu.memory_space<vmem>>, vector<1600x8xbf16>
    %cst_39 = arith.constant dense<0.000000e+00> : vector<2x8xf32>
    %41 = tpu.matmul %39, %40, %cst_39 {dimension_numbers = #tpu.dot_dimension_numbers<[1], [0], [0], [1], [0, 0, 1, 1], [], []>} : vector<2x1600xbf16>, vector<1600x8xbf16>, vector<2x8xf32> -> vector<2x8xf32>
    %c0_40 = arith.constant 0 : index
    %c0_41 = arith.constant 0 : index
    %42 = vector.load %arg3[%c0_40, %c0_41] : memref<1x8xf32, #tpu.memory_space<vmem>>, vector<1x8xf32>
    %43 = vector.broadcast %42 : vector<1x8xf32> to vector<2x8xf32>
    %44 = arith.addf %41, %43 : vector<2x8xf32>
    %cst_42 = arith.constant 0.000000e+00 : f32
    %45 = vector.broadcast %cst_42 : f32 to vector<2x8xf32>
    %46 = arith.maximumf %44, %45 : vector<2x8xf32>
    %c3_43 = arith.constant 3 : index
    %c0_44 = arith.constant 0 : index
    %c0_45 = arith.constant 0 : index
    %47 = vector.load %arg4[%c3_43, %c0_44, %c0_45] : memref<4x8x2xf32, #tpu.memory_space<vmem>>, vector<1x8x2xf32>
    %48 = vector.shape_cast %47 : vector<1x8x2xf32> to vector<8x2xf32>
    %cst_46 = arith.constant dense<0.000000e+00> : vector<2x2xf32>
    %49 = tpu.matmul %46, %48, %cst_46 {dimension_numbers = #tpu.dot_dimension_numbers<[1], [0], [0], [1], [0, 0, 1, 1], [], []>} : vector<2x8xf32>, vector<8x2xf32>, vector<2x2xf32> -> vector<2x2xf32>
    %50 = arith.addf %37, %49 : vector<2x2xf32>
    %c0_47 = arith.constant 0 : index
    %c0_48 = arith.constant 0 : index
    %51 = vector.load %arg5[%c0_47, %c0_48] : memref<1x2xf32, #tpu.memory_space<vmem>>, vector<1x2xf32>
    %52 = vector.broadcast %51 : vector<1x2xf32> to vector<2x2xf32>
    %53 = arith.addf %50, %52 : vector<2x2xf32>
    %c0_49 = arith.constant 0 : index
    %c0_50 = arith.constant 0 : index
    %54 = vector.load %arg6[%c0_49, %c0_50] : memref<2x2xf32, #tpu.memory_space<vmem>>, vector<2x2xf32>
    tpu.vector_store %arg6[%c0_49, %c0_50], %53 {strides = array<i32>} : memref<2x2xf32, #tpu.memory_space<vmem>>, vector<2x2xf32>,
    return
  }
  func.func @transform_0(%arg0: i32) -> (i32, i32, i32) {
    %c0_i32 = arith.constant 0 : i32
    %c0_i32_0 = arith.constant 0 : i32
    %c0_i32_1 = arith.constant 0 : i32
    %c0_i32_2 = arith.constant 0 : i32
    return %c0_i32, %c0_i32_0, %c0_i32_1 : i32, i32, i32
  }
  func.func @transform_1(%arg0: i32) -> (i32, i32) {
    %c0_i32 = arith.constant 0 : i32
    %c0_i32_0 = arith.constant 0 : i32
    %c0_i32_1 = arith.constant 0 : i32
    return %c0_i32, %c0_i32_0 : i32, i32
  }
  func.func @transform_2(%arg0: i32) -> (i32, i32) {
    %c0_i32 = arith.constant 0 : i32
    %c0_i32_0 = arith.constant 0 : i32
    %c0_i32_1 = arith.constant 0 : i32
    return %c0_i32, %c0_i32_0 : i32, i32
  }
  func.func @transform_3(%arg0: i32) -> (i32, i32, i32) {
    %c0_i32 = arith.constant 0 : i32
    %c0_i32_0 = arith.constant 0 : i32
    %c0_i32_1 = arith.constant 0 : i32
    %c0_i32_2 = arith.constant 0 : i32
    return %c0_i32, %c0_i32_0, %c0_i32_1 : i32, i32, i32
  }
  func.func @transform_4(%arg0: i32) -> (i32, i32) {
    %c0_i32 = arith.constant 0 : i32
    %c0_i32_0 = arith.constant 0 : i32
    %c0_i32_1 = arith.constant 0 : i32
    return %c0_i32, %c0_i32_0 : i32, i32
  }
  func.func @transform_5(%arg0: i32) -> (i32, i32) {
    %c0_i32 = arith.constant 0 : i32
    %c0_i32_0 = arith.constant 0 : i32
    %c0_i32_1 = arith.constant 0 : i32
    return %c0_i32, %c0_i32_0 : i32, i32
  }
}

</mosaic_0001>

<llo_original>
// kernel: target_forward.3
$region0: #{target_forward.3}
  #allocation0 [shape = 'u32[]', space=smem, size = 0x4, offset = 0x4, fixed_abs, tag = 'smem constant byte address 0x4 - core index']
  #allocation1 [shape = 'u32[144,128]{1,0:T(1,128)}', space=vmem, size = 0x12000, scoped, tag = 'internal scratch']
  %s0 = inlined_call_operand.vmem [shape: bf16[4,75,512], index: 0, kind: input, shape index: {}]
  %s1 = inlined_call_operand.vmem [shape: bf16[16,75], index: 1, kind: input, shape index: {}]
  %s2 = inlined_call_operand.vmem [shape: f32[16,1], index: 2, kind: input, shape index: {}]
  %s3 = inlined_call_operand.vmem [shape: bf16[16,512], index: 3, kind: output, shape index: {}]
  %s4 = sld [smem:[#allocation0]]
  $region22: #{target_forward.3} parent=0
    _
  %s6 = ssub.s32 1, %s4
  %s7 = scalar_select 0, %s6, %s4
  // Predicated region
  $region2: #{target_forward.3} parent=0 // pred_check
    _
  $region3: #{target_forward.3} parent=0 // pred_check_branch
    %9 = sbr.rel (0) target = $region5
  $region4: #{target_forward.3} parent=0 // pred_region
    _
  $region5: #{target_forward.3} parent=0 // pred_fallthru
    _
  // Predicated region
  $region6: #{target_forward.3} parent=0 // pred_check
    _
  $region7: #{target_forward.3} parent=0 // pred_check_branch
    %11 = sbr.rel (0) target = $region9
  $region8: #{target_forward.3} parent=0 // pred_region
    _
  $region9: #{target_forward.3} parent=0 // pred_fallthru
    _
  // Predicated region
  $region10: #{target_forward.3} parent=0 // pred_check
    _
  $region11: #{target_forward.3} parent=0 // pred_check_branch
    %13 = sbr.rel (0) target = $region13
  $region12: #{target_forward.3} parent=0 // pred_region
    _
  $region13: #{target_forward.3} parent=0 // pred_fallthru
    _
  %v15 = vld [vmem:[%s1] sm:$0xf]
  %v16 = vld [vmem:[%s1 + $0x4] sm:$0xf]
  %v17 = vld [vmem:[%s0] sm:$0xff]
  %v18 = vld [vmem:[%s0 + $0x8] sm:$0xff]
  %v19 = vld [vmem:[%s0 + $0x10] sm:$0xff]
  %v20 = vld [vmem:[%s0 + $0x18] sm:$0xff]
  %v21 = vld [vmem:[%s0 + $0x20] sm:$0xff]
  %v22 = vld [vmem:[%s0 + $0x28] sm:$0xff]
  %v23 = vld [vmem:[%s0 + $0x30] sm:$0xff]
  %v24 = vld [vmem:[%s0 + $0x38] sm:$0xff]
  %v25 = vld [vmem:[%s0 + $0x40] sm:$0xff]
  %v26 = vld [vmem:[%s0 + $0x48] sm:$0xff]
  %v27 = vld [vmem:[%s0 + $0x50] sm:$0xff]
  %v28 = vld [vmem:[%s0 + $0x58] sm:$0xff]
  %v29 = vld [vmem:[%s0 + $0x60] sm:$0xff]
  %v30 = vld [vmem:[%s0 + $0x68] sm:$0xff]
  %v31 = vld [vmem:[%s0 + $0x70] sm:$0xff]
  %v32 = vld [vmem:[%s0 + $0x78] sm:$0xff]
  %v33 = vld [vmem:[%s0 + $0x80] sm:$0xff]
  %v34 = vld [vmem:[%s0 + $0x88] sm:$0xff]
  %v35 = vld [vmem:[%s0 + $0x90] sm:$0x33]
  %v36 = vld [vmem:[%s0 + $0x98] sm:$0x33]
  %v39 = vunpack.c.l.b16 %v15
  %v40 = vunpack.c.l.b16 %v16
  %v41 = vpack.c.b16 %v40, %v39
  %v62 = vunpack.c.l.b16 %v17
  %v63 = vunpack.c.h.b16 %v17
  %v64 = vunpack.c.l.b16 %v18
  %v65 = vunpack.c.h.b16 %v18
  %v66 = vunpack.c.l.b16 %v19
  %v67 = vunpack.c.h.b16 %v19
  %v68 = vunpack.c.l.b16 %v20
  %v69 = vunpack.c.h.b16 %v20
  %v70 = vunpack.c.l.b16 %v21
  %v71 = vunpack.c.h.b16 %v21
  %v72 = vunpack.c.l.b16 %v22
  %v73 = vunpack.c.h.b16 %v22
  %v74 = vunpack.c.l.b16 %v23
  %v75 = vunpack.c.h.b16 %v23
  %v76 = vunpack.c.l.b16 %v24
  %v77 = vunpack.c.h.b16 %v24
  %v78 = vunpack.c.l.b16 %v25
  %v79 = vunpack.c.h.b16 %v25
  %v80 = vunpack.c.l.b16 %v26
  %v81 = vunpack.c.h.b16 %v26
  %v82 = vunpack.c.l.b16 %v27
  %v83 = vunpack.c.h.b16 %v27
  %v84 = vunpack.c.l.b16 %v28
  %v85 = vunpack.c.h.b16 %v28
  %v86 = vunpack.c.l.b16 %v29
  %v87 = vunpack.c.h.b16 %v29
  %v88 = vunpack.c.l.b16 %v30
  %v89 = vunpack.c.h.b16 %v30
  %v90 = vunpack.c.l.b16 %v31
  %v91 = vunpack.c.h.b16 %v31
  %v92 = vunpack.c.l.b16 %v32
  %v93 = vunpack.c.h.b16 %v32
  %v94 = vunpack.c.l.b16 %v33
  %v95 = vunpack.c.h.b16 %v33
  %v96 = vunpack.c.l.b16 %v34
  %v97 = vunpack.c.h.b16 %v34
  %v98 = vunpack.c.l.b16 %v35
  %v99 = vunpack.c.h.b16 %v35
  %v100 = vunpack.c.l.b16 %v36
  %v101 = vunpack.c.h.b16 %v36
  %v102 = vpack.c.b16 %v66, %v62
  %v103 = vpack.c.b16 %v67, %v63
  %v104 = vpack.c.b16 %v68, %v64
  %v105 = vpack.c.b16 %v69, %v65
  %v106 = vpack.c.b16 %v74, %v70
  %v107 = vpack.c.b16 %v75, %v71
  %v108 = vpack.c.b16 %v76, %v72
  %v109 = vpack.c.b16 %v77, %v73
  %v110 = vpack.c.b16 %v82, %v78
  %v111 = vpack.c.b16 %v83, %v79
  %v112 = vpack.c.b16 %v84, %v80
  %v113 = vpack.c.b16 %v85, %v81
  %v114 = vpack.c.b16 %v90, %v86
  %v115 = vpack.c.b16 %v91, %v87
  %v116 = vpack.c.b16 %v92, %v88
  %v117 = vpack.c.b16 %v93, %v89
  %v118 = vpack.c.b16 %v98, %v94
  %v119 = vpack.c.b16 %v99, %v95
  %v120 = vpack.c.b16 %v100, %v96
  %v121 = vpack.c.b16 %v101, %v97
  %vm138 = vcmask 613376
  %v140 = vsel %vm138, %v41, 0
  %vm142 = vcmask 1044480
  %vm143 = vcmask 1045504
  %v144 = vsel %vm142, 4294967295, 65535
  %v145 = vsel %vm143, %v144, 0
  %v147 = vand.u32 %v118, %v145
  %v150 = vand.u32 %v119, %v145
  %v153 = vand.u32 %v120, %v145
  %v156 = vand.u32 %v121, %v145
  %158 = vmatprep.subr.bf16.mxu0 0
  %159 = vmatpush1.bf16.msra.mxu0 0
  %160 = vmatprep.subr.bf16.mxu0 0
  %161 = vmatpush1.bf16.msra.mxu0 0
  %162 = vmatprep.subr.bf16.mxu0 0
  %163 = vmatpush1.bf16.msra.mxu0 0
  %164 = vmatprep.subr.bf16.mxu0 %v150
  %165 = vmatpush1.bf16.msra.mxu0 %v147
  %166 = vmatprep.subr.bf16.mxu0 %v115
  %167 = vmatpush1.bf16.msra.mxu0 %v114
  %168 = vmatprep.subr.bf16.mxu0 %v111
  %169 = vmatpush1.bf16.msra.mxu0 %v110
  %170 = vmatprep.subr.bf16.mxu0 %v107
  %171 = vmatpush1.bf16.msra.mxu0 %v106
  %172 = vmatprep.subr.bf16.mxu0 %v103
  %173 = vmatpush1.bf16.msra.mxu0 %v102
  %174 = vmatprep.subr.bf16.mxu0 0
  %175 = vmatpush2.bf16.msra.mxu0 0
  %176 = vmatprep.subr.bf16.mxu0 0
  %177 = vmatpush2.bf16.msra.mxu0 0
  %178 = vmatprep.subr.bf16.mxu0 0
  %179 = vmatpush2.bf16.msra.mxu0 0
  %180 = vmatprep.subr.bf16.mxu0 0
  %181 = vmatpush2.bf16.msra.mxu0 0
  %182 = vmatprep.subr.bf16.mxu0 0
  %183 = vmatpush2.bf16.msra.mxu0 0
  %184 = vmatprep.subr.bf16.mxu0 0
  %185 = vmatpush2.bf16.msra.mxu0 0
  %186 = vmatprep.subr.bf16.mxu0 0
  %187 = vmatpush2.bf16.msra.mxu0 0
  %188 = vmatprep.subr.bf16.mxu0 0
  %189 = vmatpush2.bf16.msra.mxu0 0
  %190 = vmatprep.mubr.bf16.mxu0 0
  %191 = vmatmul.mubr.bf16.gmra.mxu0 %v140
  %v192 = vpop.f32.mrf.mxu0
  %v193 = vadd.f32 0.0, %v192
  %v194 = vpop.f32.mrf.mxu0
  %v195 = vadd.f32 0.0, %v194
  %v196 = vpop.f32.mrf.mxu0
  %v197 = vadd.f32 0.0, %v196
  %v198 = vpop.f32.mrf.mxu0
  %v199 = vadd.f32 0.0, %v198
  %200 = vdwg.mxu0
  %201 = vmatprep.subr.bf16.mxu0 0
  %202 = vmatpush1.bf16.msra.mxu0 0
  %203 = vmatprep.subr.bf16.mxu0 0
  %204 = vmatpush1.bf16.msra.mxu0 0
  %205 = vmatprep.subr.bf16.mxu0 0
  %206 = vmatpush1.bf16.msra.mxu0 0
  %207 = vmatprep.subr.bf16.mxu0 %v156
  %208 = vmatpush1.bf16.msra.mxu0 %v153
  %209 = vmatprep.subr.bf16.mxu0 %v117
  %210 = vmatpush1.bf16.msra.mxu0 %v116
  %211 = vmatprep.subr.bf16.mxu0 %v113
  %212 = vmatpush1.bf16.msra.mxu0 %v112
  %213 = vmatprep.subr.bf16.mxu0 %v109
  %214 = vmatpush1.bf16.msra.mxu0 %v108
  %215 = vmatprep.subr.bf16.mxu0 %v105
  %216 = vmatpush1.bf16.msra.mxu0 %v104
  %217 = vmatprep.subr.bf16.mxu0 0
  %218 = vmatpush2.bf16.msra.mxu0 0
  %219 = vmatprep.subr.bf16.mxu0 0
  %220 = vmatpush2.bf16.msra.mxu0 0
  %221 = vmatprep.subr.bf16.mxu0 0
  %222 = vmatpush2.bf16.msra.mxu0 0
  %223 = vmatprep.subr.bf16.mxu0 0
  %224 = vmatpush2.bf16.msra.mxu0 0
  %225 = vmatprep.subr.bf16.mxu0 0
  %226 = vmatpush2.bf16.msra.mxu0 0
  %227 = vmatprep.subr.bf16.mxu0 0
  %228 = vmatpush2.bf16.msra.mxu0 0
  %229 = vmatprep.subr.bf16.mxu0 0
  %230 = vmatpush2.bf16.msra.mxu0 0
  %231 = vmatprep.subr.bf16.mxu0 0
  %232 = vmatpush2.bf16.msra.mxu0 0
  %233 = vmatprep.mubr.bf16.mxu0 0
  %234 = vmatmul.mubr.bf16.gmra.mxu0 %v140
  %v235 = vpop.f32.mrf.mxu0
  %v236 = vadd.f32 0.0, %v235
  %v237 = vpop.f32.mrf.mxu0
  %v238 = vadd.f32 0.0, %v237
  %v239 = vpop.f32.mrf.mxu0
  %v240 = vadd.f32 0.0, %v239
  %v241 = vpop.f32.mrf.mxu0
  %v242 = vadd.f32 0.0, %v241
  %243 = vdwg.mxu0
  %s244 = scalar_lea.vmem %s0, 160
  %v245 = vld [vmem:[%s244] sm:$0xff]
  %v246 = vld [vmem:[%s244 + $0x8] sm:$0xff]
  %v247 = vld [vmem:[%s244 + $0x10] sm:$0xff]
  %v248 = vld [vmem:[%s244 + $0x18] sm:$0xff]
  %v249 = vld [vmem:[%s244 + $0x20] sm:$0xff]
  %v250 = vld [vmem:[%s244 + $0x28] sm:$0xff]
  %v251 = vld [vmem:[%s244 + $0x30] sm:$0xff]
  %v252 = vld [vmem:[%s244 + $0x38] sm:$0xff]
  %v253 = vld [vmem:[%s244 + $0x40] sm:$0xff]
  %v254 = vld [vmem:[%s244 + $0x48] sm:$0xff]
  %v255 = vld [vmem:[%s244 + $0x50] sm:$0xff]
  %v256 = vld [vmem:[%s244 + $0x58] sm:$0xff]
  %v257 = vld [vmem:[%s244 + $0x60] sm:$0xff]
  %v258 = vld [vmem:[%s244 + $0x68] sm:$0xff]
  %v259 = vld [vmem:[%s244 + $0x70] sm:$0xff]
  %v260 = vld [vmem:[%s244 + $0x78] sm:$0xff]
  %v261 = vld [vmem:[%s244 + $0x80] sm:$0xff]
  %v262 = vld [vmem:[%s244 + $0x88] sm:$0xff]
  %v263 = vld [vmem:[%s244 + $0x90] sm:$0x33]
  %v264 = vld [vmem:[%s244 + $0x98] sm:$0x33]
  %v285 = vunpack.c.l.b16 %v245
  %v286 = vunpack.c.h.b16 %v245
  %v287 = vunpack.c.l.b16 %v246
  %v288 = vunpack.c.h.b16 %v246
  %v289 = vunpack.c.l.b16 %v247
  %v290 = vunpack.c.h.b16 %v247
  %v291 = vunpack.c.l.b16 %v248
  %v292 = vunpack.c.h.b16 %v248
  %v293 = vunpack.c.l.b16 %v249
  %v294 = vunpack.c.h.b16 %v249
  %v295 = vunpack.c.l.b16 %v250
  %v296 = vunpack.c.h.b16 %v250
  %v297 = vunpack.c.l.b16 %v251
  %v298 = vunpack.c.h.b16 %v251
  %v299 = vunpack.c.l.b16 %v252
  %v300 = vunpack.c.h.b16 %v252
  %v301 = vunpack.c.l.b16 %v253
  %v302 = vunpack.c.h.b16 %v253
  %v303 = vunpack.c.l.b16 %v254
  %v304 = vunpack.c.h.b16 %v254
  %v305 = vunpack.c.l.b16 %v255
  %v306 = vunpack.c.h.b16 %v255
  %v307 = vunpack.c.l.b16 %v256
  %v308 = vunpack.c.h.b16 %v256
  %v309 = vunpack.c.l.b16 %v257
  %v310 = vunpack.c.h.b16 %v257
  %v311 = vunpack.c.l.b16 %v258
  %v312 = vunpack.c.h.b16 %v258
  %v313 = vunpack.c.l.b16 %v259
  %v314 = vunpack.c.h.b16 %v259
  %v315 = vunpack.c.l.b16 %v260
  %v316 = vunpack.c.h.b16 %v260
  %v317 = vunpack.c.l.b16 %v261
  %v318 = vunpack.c.h.b16 %v261
  %v319 = vunpack.c.l.b16 %v262
  %v320 = vunpack.c.h.b16 %v262
  %v321 = vunpack.c.l.b16 %v263
  %v322 = vunpack.c.h.b16 %v263
  %v323 = vunpack.c.l.b16 %v264
  %v324 = vunpack.c.h.b16 %v264
  %v325 = vpack.c.b16 %v289, %v285
  %v326 = vpack.c.b16 %v290, %v286
  %v327 = vpack.c.b16 %v291, %v287
  %v328 = vpack.c.b16 %v292, %v288
  %v329 = vpack.c.b16 %v297, %v293
  %v330 = vpack.c.b16 %v298, %v294
  %v331 = vpack.c.b16 %v299, %v295
  %v332 = vpack.c.b16 %v300, %v296
  %v333 = vpack.c.b16 %v305, %v301
  %v334 = vpack.c.b16 %v306, %v302
  %v335 = vpack.c.b16 %v307, %v303
  %v336 = vpack.c.b16 %v308, %v304
  %v337 = vpack.c.b16 %v313, %v309
  %v338 = vpack.c.b16 %v314, %v310
  %v339 = vpack.c.b16 %v315, %v311
  %v340 = vpack.c.b16 %v316, %v312
  %v341 = vpack.c.b16 %v321, %v317
  %v342 = vpack.c.b16 %v322, %v318
  %v343 = vpack.c.b16 %v323, %v319
  %v344 = vpack.c.b16 %v324, %v320
  %v362 = vand.u32 %v341, %v145
  %v365 = vand.u32 %v342, %v145
  %v368 = vand.u32 %v343, %v145
  %v371 = vand.u32 %v344, %v145
  %373 = vmatprep.subr.bf16.mxu0 0
  %374 = vmatpush1.bf16.msra.mxu0 0
  %375 = vmatprep.subr.bf16.mxu0 0
  %376 = vmatpush1.bf16.msra.mxu0 0
  %377 = vmatprep.subr.bf16.mxu0 0
  %378 = vmatpush1.bf16.msra.mxu0 0
  %379 = vmatprep.subr.bf16.mxu0 %v365
  %380 = vmatpush1.bf16.msra.mxu0 %v362
  %381 = vmatprep.subr.bf16.mxu0 %v338
  %382 = vmatpush1.bf16.msra.mxu0 %v337
  %383 = vmatprep.subr.bf16.mxu0 %v334
  %384 = vmatpush1.bf16.msra.mxu0 %v333
  %385 = vmatprep.subr.bf16.mxu0 %v330
  %386 = vmatpush1.bf16.msra.mxu0 %v329
  %387 = vmatprep.subr.bf16.mxu0 %v326
  %388 = vmatpush1.bf16.msra.mxu0 %v325
  %389 = vmatprep.subr.bf16.mxu0 0
  %390 = vmatpush2.bf16.msra.mxu0 0
  %391 = vmatprep.subr.bf16.mxu0 0
  %392 = vmatpush2.bf16.msra.mxu0 0
  %393 = vmatprep.subr.bf16.mxu0 0
  %394 = vmatpush2.bf16.msra.mxu0 0
  %395 = vmatprep.subr.bf16.mxu0 0
  %396 = vmatpush2.bf16.msra.mxu0 0
  %397 = vmatprep.subr.bf16.mxu0 0
  %398 = vmatpush2.bf16.msra.mxu0 0
  %399 = vmatprep.subr.bf16.mxu0 0
  %400 = vmatpush2.bf16.msra.mxu0 0
  %401 = vmatprep.subr.bf16.mxu0 0
  %402 = vmatpush2.bf16.msra.mxu0 0
  %403 = vmatprep.subr.bf16.mxu0 0
  %404 = vmatpush2.bf16.msra.mxu0 0
  %405 = vmatprep.mubr.bf16.mxu0 0
  %406 = vmatmul.mubr.bf16.gmra.mxu0 %v140
  %v407 = vpop.f32.mrf.mxu0
  %v408 = vadd.f32 0.0, %v407
  %v409 = vpop.f32.mrf.mxu0
  %v410 = vadd.f32 0.0, %v409
  %v411 = vpop.f32.mrf.mxu0
  %v412 = vadd.f32 0.0, %v411
  %v413 = vpop.f32.mrf.mxu0
  %v414 = vadd.f32 0.0, %v413
  %415 = vdwg.mxu0
  %416 = vmatprep.subr.bf16.mxu0 0
  %417 = vmatpush1.bf16.msra.mxu0 0
  %418 = vmatprep.subr.bf16.mxu0 0
  %419 = vmatpush1.bf16.msra.mxu0 0
  %420 = vmatprep.subr.bf16.mxu0 0
  %421 = vmatpush1.bf16.msra.mxu0 0
  %422 = vmatprep.subr.bf16.mxu0 %v371
  %423 = vmatpush1.bf16.msra.mxu0 %v368
  %424 = vmatprep.subr.bf16.mxu0 %v340
  %425 = vmatpush1.bf16.msra.mxu0 %v339
  %426 = vmatprep.subr.bf16.mxu0 %v336
  %427 = vmatpush1.bf16.msra.mxu0 %v335
  %428 = vmatprep.subr.bf16.mxu0 %v332
  %429 = vmatpush1.bf16.msra.mxu0 %v331
  %430 = vmatprep.subr.bf16.mxu0 %v328
  %431 = vmatpush1.bf16.msra.mxu0 %v327
  %432 = vmatprep.subr.bf16.mxu0 0
  %433 = vmatpush2.bf16.msra.mxu0 0
  %434 = vmatprep.subr.bf16.mxu0 0
  %435 = vmatpush2.bf16.msra.mxu0 0
  %436 = vmatprep.subr.bf16.mxu0 0
  %437 = vmatpush2.bf16.msra.mxu0 0
  %438 = vmatprep.subr.bf16.mxu0 0
  %439 = vmatpush2.bf16.msra.mxu0 0
  %440 = vmatprep.subr.bf16.mxu0 0
  %441 = vmatpush2.bf16.msra.mxu0 0
  %442 = vmatprep.subr.bf16.mxu0 0
  %443 = vmatpush2.bf16.msra.mxu0 0
  %444 = vmatprep.subr.bf16.mxu0 0
  %445 = vmatpush2.bf16.msra.mxu0 0
  %446 = vmatprep.subr.bf16.mxu0 0
  %447 = vmatpush2.bf16.msra.mxu0 0
  %448 = vmatprep.mubr.bf16.mxu0 0
  %449 = vmatmul.mubr.bf16.gmra.mxu0 %v140
  %v450 = vpop.f32.mrf.mxu0
  %v451 = vadd.f32 0.0, %v450
  %v452 = vpop.f32.mrf.mxu0
  %v453 = vadd.f32 0.0, %v452
  %v454 = vpop.f32.mrf.mxu0
  %v455 = vadd.f32 0.0, %v454
  %v456 = vpop.f32.mrf.mxu0
  %v457 = vadd.f32 0.0, %v456
  %458 = vdwg.mxu0
  %v459 = vmax.f32 %v193, %v408
  %v460 = vmax.f32 %v195, %v410
  %v461 = vmax.f32 %v236, %v451
  %v462 = vmax.f32 %v238, %v453
  %v463 = vmax.f32 %v197, %v412
  %v464 = vmax.f32 %v199, %v414
  %v465 = vmax.f32 %v240, %v455
  %v466 = vmax.f32 %v242, %v457
  %s467 = scalar_lea.vmem %s0, 320
  %v468 = vld [vmem:[%s467] sm:$0xff]
  %v469 = vld [vmem:[%s467 + $0x8] sm:$0xff]
  %v470 = vld [vmem:[%s467 + $0x10] sm:$0xff]
  %v471 = vld [vmem:[%s467 + $0x18] sm:$0xff]
  %v472 = vld [vmem:[%s467 + $0x20] sm:$0xff]
  %v473 = vld [vmem:[%s467 + $0x28] sm:$0xff]
  %v474 = vld [vmem:[%s467 + $0x30] sm:$0xff]
  %v475 = vld [vmem:[%s467 + $0x38] sm:$0xff]
  %v476 = vld [vmem:[%s467 + $0x40] sm:$0xff]
  %v477 = vld [vmem:[%s467 + $0x48] sm:$0xff]
  %v478 = vld [vmem:[%s467 + $0x50] sm:$0xff]
  %v479 = vld [vmem:[%s467 + $0x58] sm:$0xff]
  %v480 = vld [vmem:[%s467 + $0x60] sm:$0xff]
  %v481 = vld [vmem:[%s467 + $0x68] sm:$0xff]
  %v482 = vld [vmem:[%s467 + $0x70] sm:$0xff]
  %v483 = vld [vmem:[%s467 + $0x78] sm:$0xff]
  %v484 = vld [vmem:[%s467 + $0x80] sm:$0xff]
  %v485 = vld [vmem:[%s467 + $0x88] sm:$0xff]
  %v486 = vld [vmem:[%s467 + $0x90] sm:$0x33]
  %v487 = vld [vmem:[%s467 + $0x98] sm:$0x33]
  %v508 = vunpack.c.l.b16 %v468
  %v509 = vunpack.c.h.b16 %v468
  %v510 = vunpack.c.l.b16 %v469
  %v511 = vunpack.c.h.b16 %v469
  %v512 = vunpack.c.l.b16 %v470
  %v513 = vunpack.c.h.b16 %v470
  %v514 = vunpack.c.l.b16 %v471
  %v515 = vunpack.c.h.b16 %v471
  %v516 = vunpack.c.l.b16 %v472
  %v517 = vunpack.c.h.b16 %v472
  %v518 = vunpack.c.l.b16 %v473
  %v519 = vunpack.c.h.b16 %v473
  %v520 = vunpack.c.l.b16 %v474
  %v521 = vunpack.c.h.b16 %v474
  %v522 = vunpack.c.l.b16 %v475
  %v523 = vunpack.c.h.b16 %v475
  %v524 = vunpack.c.l.b16 %v476
  %v525 = vunpack.c.h.b16 %v476
  %v526 = vunpack.c.l.b16 %v477
  %v527 = vunpack.c.h.b16 %v477
  %v528 = vunpack.c.l.b16 %v478
  %v529 = vunpack.c.h.b16 %v478
  %v530 = vunpack.c.l.b16 %v479
  %v531 = vunpack.c.h.b16 %v479
  %v532 = vunpack.c.l.b16 %v480
  %v533 = vunpack.c.h.b16 %v480
  %v534 = vunpack.c.l.b16 %v481
  %v535 = vunpack.c.h.b16 %v481
  %v536 = vunpack.c.l.b16 %v482
  %v537 = vunpack.c.h.b16 %v482
  %v538 = vunpack.c.l.b16 %v483
  %v539 = vunpack.c.h.b16 %v483
  %v540 = vunpack.c.l.b16 %v484
  %v541 = vunpack.c.h.b16 %v484
  %v542 = vunpack.c.l.b16 %v485
  %v543 = vunpack.c.h.b16 %v485
  %v544 = vunpack.c.l.b16 %v486
  %v545 = vunpack.c.h.b16 %v486
  %v546 = vunpack.c.l.b16 %v487
  %v547 = vunpack.c.h.b16 %v487
  %v548 = vpack.c.b16 %v512, %v508
  %v549 = vpack.c.b16 %v513, %v509
  %v550 = vpack.c.b16 %v514, %v510
  %v551 = vpack.c.b16 %v515, %v511
  %v552 = vpack.c.b16 %v520, %v516
  %v553 = vpack.c.b16 %v521, %v517
  %v554 = vpack.c.b16 %v522, %v518
  %v555 = vpack.c.b16 %v523, %v519
  %v556 = vpack.c.b16 %v528, %v524
  %v557 = vpack.c.b16 %v529, %v525
  %v558 = vpack.c.b16 %v530, %v526
  %v559 = vpack.c.b16 %v531, %v527
  %v560 = vpack.c.b16 %v536, %v532
  %v561 = vpack.c.b16 %v537, %v533
  %v562 = vpack.c.b16 %v538, %v534
  %v563 = vpack.c.b16 %v539, %v535
  %v564 = vpack.c.b16 %v544, %v540
  %v565 = vpack.c.b16 %v545, %v541
  %v566 = vpack.c.b16 %v546, %v542
  %v567 = vpack.c.b16 %v547, %v543
  %v585 = vand.u32 %v564, %v145
  %v588 = vand.u32 %v565, %v145
  %v591 = vand.u32 %v566, %v145
  %v594 = vand.u32 %v567, %v145
  %596 = vmatprep.subr.bf16.mxu0 0
  %597 = vmatpush1.bf16.msra.mxu0 0
  %598 = vmatprep.subr.bf16.mxu0 0
  %599 = vmatpush1.bf16.msra.mxu0 0
  %600 = vmatprep.subr.bf16.mxu0 0
  %601 = vmatpush1.bf16.msra.mxu0 0
  %602 = vmatprep.subr.bf16.mxu0 %v588
  %603 = vmatpush1.bf16.msra.mxu0 %v585
  %604 = vmatprep.subr.bf16.mxu0 %v561
  %605 = vmatpush1.bf16.msra.mxu0 %v560
  %606 = vmatprep.subr.bf16.mxu0 %v557
  %607 = vmatpush1.bf16.msra.mxu0 %v556
  %608 = vmatprep.subr.bf16.mxu0 %v553
  %609 = vmatpush1.bf16.msra.mxu0 %v552
  %610 = vmatprep.subr.bf16.mxu0 %v549
  %611 = vmatpush1.bf16.msra.mxu0 %v548
  %612 = vmatprep.subr.bf16.mxu0 0
  %613 = vmatpush2.bf16.msra.mxu0 0
  %614 = vmatprep.subr.bf16.mxu0 0
  %615 = vmatpush2.bf16.msra.mxu0 0
  %616 = vmatprep.subr.bf16.mxu0 0
  %617 = vmatpush2.bf16.msra.mxu0 0
  %618 = vmatprep.subr.bf16.mxu0 0
  %619 = vmatpush2.bf16.msra.mxu0 0
  %620 = vmatprep.subr.bf16.mxu0 0
  %621 = vmatpush2.bf16.msra.mxu0 0
  %622 = vmatprep.subr.bf16.mxu0 0
  %623 = vmatpush2.bf16.msra.mxu0 0
  %624 = vmatprep.subr.bf16.mxu0 0
  %625 = vmatpush2.bf16.msra.mxu0 0
  %626 = vmatprep.subr.bf16.mxu0 0
  %627 = vmatpush2.bf16.msra.mxu0 0
  %628 = vmatprep.mubr.bf16.mxu0 0
  %629 = vmatmul.mubr.bf16.gmra.mxu0 %v140
  %v630 = vpop.f32.mrf.mxu0
  %v631 = vadd.f32 0.0, %v630
  %v632 = vpop.f32.mrf.mxu0
  %v633 = vadd.f32 0.0, %v632
  %v634 = vpop.f32.mrf.mxu0
  %v635 = vadd.f32 0.0, %v634
  %v636 = vpop.f32.mrf.mxu0
  %v637 = vadd.f32 0.0, %v636
  %638 = vdwg.mxu0
  %639 = vmatprep.subr.bf16.mxu0 0
  %640 = vmatpush1.bf16.msra.mxu0 0
  %641 = vmatprep.subr.bf16.mxu0 0
  %642 = vmatpush1.bf16.msra.mxu0 0
  %643 = vmatprep.subr.bf16.mxu0 0
  %644 = vmatpush1.bf16.msra.mxu0 0
  %645 = vmatprep.subr.bf16.mxu0 %v594
  %646 = vmatpush1.bf16.msra.mxu0 %v591
  %647 = vmatprep.subr.bf16.mxu0 %v563
  %648 = vmatpush1.bf16.msra.mxu0 %v562
  %649 = vmatprep.subr.bf16.mxu0 %v559
  %650 = vmatpush1.bf16.msra.mxu0 %v558
  %651 = vmatprep.subr.bf16.mxu0 %v555
  %652 = vmatpush1.bf16.msra.mxu0 %v554
  %653 = vmatprep.subr.bf16.mxu0 %v551
  %654 = vmatpush1.bf16.msra.mxu0 %v550
  %655 = vmatprep.subr.bf16.mxu0 0
  %656 = vmatpush2.bf16.msra.mxu0 0
  %657 = vmatprep.subr.bf16.mxu0 0
  %658 = vmatpush2.bf16.msra.mxu0 0
  %659 = vmatprep.subr.bf16.mxu0 0
  %660 = vmatpush2.bf16.msra.mxu0 0
  %661 = vmatprep.subr.bf16.mxu0 0
  %662 = vmatpush2.bf16.msra.mxu0 0
  %663 = vmatprep.subr.bf16.mxu0 0
  %664 = vmatpush2.bf16.msra.mxu0 0
  %665 = vmatprep.subr.bf16.mxu0 0
  %666 = vmatpush2.bf16.msra.mxu0 0
  %667 = vmatprep.subr.bf16.mxu0 0
  %668 = vmatpush2.bf16.msra.mxu0 0
  %669 = vmatprep.subr.bf16.mxu0 0
  %670 = vmatpush2.bf16.msra.mxu0 0
  %671 = vmatprep.mubr.bf16.mxu0 0
  %672 = vmatmul.mubr.bf16.gmra.mxu0 %v140
  %v673 = vpop.f32.mrf.mxu0
  %v674 = vadd.f32 0.0, %v673
  %v675 = vpop.f32.mrf.mxu0
  %v676 = vadd.f32 0.0, %v675
  %v677 = vpop.f32.mrf.mxu0
  %v678 = vadd.f32 0.0, %v677
  %v679 = vpop.f32.mrf.mxu0
  %v680 = vadd.f32 0.0, %v679
  %681 = vdwg.mxu0
  %v682 = vmax.f32 %v459, %v631
  %v683 = vmax.f32 %v460, %v633
  %v684 = vmax.f32 %v461, %v674
  %v685 = vmax.f32 %v462, %v676
  %v686 = vmax.f32 %v463, %v635
  %v687 = vmax.f32 %v464, %v637
  %v688 = vmax.f32 %v465, %v678
  %v689 = vmax.f32 %v466, %v680
  %s690 = scalar_lea.vmem %s0, 480
  %v691 = vld [vmem:[%s690] sm:$0xff]
  %v692 = vld [vmem:[%s690 + $0x8] sm:$0xff]
  %v693 = vld [vmem:[%s690 + $0x10] sm:$0xff]
  %v694 = vld [vmem:[%s690 + $0x18] sm:$0xff]
  %v695 = vld [vmem:[%s690 + $0x20] sm:$0xff]
  %v696 = vld [vmem:[%s690 + $0x28] sm:$0xff]
  %v697 = vld [vmem:[%s690 + $0x30] sm:$0xff]
  %v698 = vld [vmem:[%s690 + $0x38] sm:$0xff]
  %v699 = vld [vmem:[%s690 + $0x40] sm:$0xff]
  %v700 = vld [vmem:[%s690 + $0x48] sm:$0xff]
  %v701 = vld [vmem:[%s690 + $0x50] sm:$0xff]
  %v702 = vld [vmem:[%s690 + $0x58] sm:$0xff]
  %v703 = vld [vmem:[%s690 + $0x60] sm:$0xff]
  %v704 = vld [vmem:[%s690 + $0x68] sm:$0xff]
  %v705 = vld [vmem:[%s690 + $0x70] sm:$0xff]
  %v706 = vld [vmem:[%s690 + $0x78] sm:$0xff]
  %v707 = vld [vmem:[%s690 + $0x80] sm:$0xff]
  %v708 = vld [vmem:[%s690 + $0x88] sm:$0xff]
  %v709 = vld [vmem:[%s690 + $0x90] sm:$0x33]
  %v710 = vld [vmem:[%s690 + $0x98] sm:$0x33]
  %v731 = vunpack.c.l.b16 %v691
  %v732 = vunpack.c.h.b16 %v691
  %v733 = vunpack.c.l.b16 %v692
  %v734 = vunpack.c.h.b16 %v692
  %v735 = vunpack.c.l.b16 %v693
  %v736 = vunpack.c.h.b16 %v693
  %v737 = vunpack.c.l.b16 %v694
  %v738 = vunpack.c.h.b16 %v694
  %v739 = vunpack.c.l.b16 %v695
  %v740 = vunpack.c.h.b16 %v695
  %v741 = vunpack.c.l.b16 %v696
  %v742 = vunpack.c.h.b16 %v696
  %v743 = vunpack.c.l.b16 %v697
  %v744 = vunpack.c.h.b16 %v697
  %v745 = vunpack.c.l.b16 %v698
  %v746 = vunpack.c.h.b16 %v698
  %v747 = vunpack.c.l.b16 %v699
  %v748 = vunpack.c.h.b16 %v699
  %v749 = vunpack.c.l.b16 %v700
  %v750 = vunpack.c.h.b16 %v700
  %v751 = vunpack.c.l.b16 %v701
  %v752 = vunpack.c.h.b16 %v701
  %v753 = vunpack.c.l.b16 %v702
  %v754 = vunpack.c.h.b16 %v702
  %v755 = vunpack.c.l.b16 %v703
  %v756 = vunpack.c.h.b16 %v703
  %v757 = vunpack.c.l.b16 %v704
  %v758 = vunpack.c.h.b16 %v704
  %v759 = vunpack.c.l.b16 %v705
  %v760 = vunpack.c.h.b16 %v705
  %v761 = vunpack.c.l.b16 %v706
  %v762 = vunpack.c.h.b16 %v706
  %v763 = vunpack.c.l.b16 %v707
  %v764 = vunpack.c.h.b16 %v707
  %v765 = vunpack.c.l.b16 %v708
  %v766 = vunpack.c.h.b16 %v708
  %v767 = vunpack.c.l.b16 %v709
  %v768 = vunpack.c.h.b16 %v709
  %v769 = vunpack.c.l.b16 %v710
  %v770 = vunpack.c.h.b16 %v710
  %v771 = vpack.c.b16 %v735, %v731
  %v772 = vpack.c.b16 %v736, %v732
  %v773 = vpack.c.b16 %v737, %v733
  %v774 = vpack.c.b16 %v738, %v734
  %v775 = vpack.c.b16 %v743, %v739
  %v776 = vpack.c.b16 %v744, %v740
  %v777 = vpack.c.b16 %v745, %v741
  %v778 = vpack.c.b16 %v746, %v742
  %v779 = vpack.c.b16 %v751, %v747
  %v780 = vpack.c.b16 %v752, %v748
  %v781 = vpack.c.b16 %v753, %v749
  %v782 = vpack.c.b16 %v754, %v750
  %v783 = vpack.c.b16 %v759, %v755
  %v784 = vpack.c.b16 %v760, %v756
  %v785 = vpack.c.b16 %v761, %v757
  %v786 = vpack.c.b16 %v762, %v758
  %v787 = vpack.c.b16 %v767, %v763
  %v788 = vpack.c.b16 %v768, %v764
  %v789 = vpack.c.b16 %v769, %v765
  %v790 = vpack.c.b16 %v770, %v766
  %v808 = vand.u32 %v787, %v145
  %v811 = vand.u32 %v788, %v145
  %v814 = vand.u32 %v789, %v145
  %v817 = vand.u32 %v790, %v145
  %819 = vmatprep.subr.bf16.mxu0 0
  %820 = vmatpush1.bf16.msra.mxu0 0
  %821 = vmatprep.subr.bf16.mxu0 0
  %822 = vmatpush1.bf16.msra.mxu0 0
  %823 = vmatprep.subr.bf16.mxu0 0
  %824 = vmatpush1.bf16.msra.mxu0 0
  %825 = vmatprep.subr.bf16.mxu0 %v811
  %826 = vmatpush1.bf16.msra.mxu0 %v808
  %827 = vmatprep.subr.bf16.mxu0 %v784
  %828 = vmatpush1.bf16.msra.mxu0 %v783
  %829 = vmatprep.subr.bf16.mxu0 %v780
  %830 = vmatpush1.bf16.msra.mxu0 %v779
  %831 = vmatprep.subr.bf16.mxu0 %v776
  %832 = vmatpush1.bf16.msra.mxu0 %v775
  %833 = vmatprep.subr.bf16.mxu0 %v772
  %834 = vmatpush1.bf16.msra.mxu0 %v771
  %835 = vmatprep.subr.bf16.mxu0 0
  %836 = vmatpush2.bf16.msra.mxu0 0
  %837 = vmatprep.subr.bf16.mxu0 0
  %838 = vmatpush2.bf16.msra.mxu0 0
  %839 = vmatprep.subr.bf16.mxu0 0
  %840 = vmatpush2.bf16.msra.mxu0 0
  %841 = vmatprep.subr.bf16.mxu0 0
  %842 = vmatpush2.bf16.msra.mxu0 0
  %843 = vmatprep.subr.bf16.mxu0 0
  %844 = vmatpush2.bf16.msra.mxu0 0
  %845 = vmatprep.subr.bf16.mxu0 0
  %846 = vmatpush2.bf16.msra.mxu0 0
  %847 = vmatprep.subr.bf16.mxu0 0
  %848 = vmatpush2.bf16.msra.mxu0 0
  %849 = vmatprep.subr.bf16.mxu0 0
  %850 = vmatpush2.bf16.msra.mxu0 0
  %851 = vmatprep.mubr.bf16.mxu0 0
  %852 = vmatmul.mubr.bf16.gmra.mxu0 %v140
  %v853 = vpop.f32.mrf.mxu0
  %v854 = vadd.f32 0.0, %v853
  %v855 = vpop.f32.mrf.mxu0
  %v856 = vadd.f32 0.0, %v855
  %v857 = vpop.f32.mrf.mxu0
  %v858 = vadd.f32 0.0, %v857
  %v859 = vpop.f32.mrf.mxu0
  %v860 = vadd.f32 0.0, %v859
  %861 = vdwg.mxu0
  %862 = vmatprep.subr.bf16.mxu0 0
  %863 = vmatpush1.bf16.msra.mxu0 0
  %864 = vmatprep.subr.bf16.mxu0 0
  %865 = vmatpush1.bf16.msra.mxu0 0
  %866 = vmatprep.subr.bf16.mxu0 0
  %867 = vmatpush1.bf16.msra.mxu0 0
  %868 = vmatprep.subr.bf16.mxu0 %v817
  %869 = vmatpush1.bf16.msra.mxu0 %v814
  %870 = vmatprep.subr.bf16.mxu0 %v786
  %871 = vmatpush1.bf16.msra.mxu0 %v785
  %872 = vmatprep.subr.bf16.mxu0 %v782
  %873 = vmatpush1.bf16.msra.mxu0 %v781
  %874 = vmatprep.subr.bf16.mxu0 %v778
  %875 = vmatpush1.bf16.msra.mxu0 %v777
  %876 = vmatprep.subr.bf16.mxu0 %v774
  %877 = vmatpush1.bf16.msra.mxu0 %v773
  %878 = vmatprep.subr.bf16.mxu0 0
  %879 = vmatpush2.bf16.msra.mxu0 0
  %880 = vmatprep.subr.bf16.mxu0 0
  %881 = vmatpush2.bf16.msra.mxu0 0
  %882 = vmatprep.subr.bf16.mxu0 0
  %883 = vmatpush2.bf16.msra.mxu0 0
  %884 = vmatprep.subr.bf16.mxu0 0
  %885 = vmatpush2.bf16.msra.mxu0 0
  %886 = vmatprep.subr.bf16.mxu0 0
  %887 = vmatpush2.bf16.msra.mxu0 0
  %888 = vmatprep.subr.bf16.mxu0 0
  %889 = vmatpush2.bf16.msra.mxu0 0
  %890 = vmatprep.subr.bf16.mxu0 0
  %891 = vmatpush2.bf16.msra.mxu0 0
  %892 = vmatprep.subr.bf16.mxu0 0
  %893 = vmatpush2.bf16.msra.mxu0 0
  %894 = vmatprep.mubr.bf16.mxu0 0
  %895 = vmatmul.mubr.bf16.gmra.mxu0 %v140
  %v896 = vpop.f32.mrf.mxu0
  %v897 = vadd.f32 0.0, %v896
  %v898 = vpop.f32.mrf.mxu0
  %v899 = vadd.f32 0.0, %v898
  %v900 = vpop.f32.mrf.mxu0
  %v901 = vadd.f32 0.0, %v900
  %v902 = vpop.f32.mrf.mxu0
  %v903 = vadd.f32 0.0, %v902
  %904 = vdwg.mxu0
  %v905 = vmax.f32 %v682, %v854
  %v906 = vmax.f32 %v683, %v856
  %v907 = vmax.f32 %v684, %v897
  %v908 = vmax.f32 %v685, %v899
  %v909 = vmax.f32 %v686, %v858
  %v910 = vmax.f32 %v687, %v860
  %v911 = vmax.f32 %v688, %v901
  %v912 = vmax.f32 %v689, %v903
  %v913 = vld [vmem:[%s2] sm:$0xff]
  %v914 = vld [vmem:[%s2 + $0x8] sm:$0xff]
  %916 = vset.pattern.permute.xlu0 0
  %917 = vperm.xlu0 %916, %v913
  %v918 = vpop.permute.xlu0 %917
  %921 = vset.pattern.permute.xlu0 0
  %922 = vperm.xlu0 %921, %v914
  %v923 = vpop.permute.xlu0 %922
  %v925 = vadd.f32 %v905, %v918
  %v926 = vadd.f32 %v906, %v918
  %v927 = vadd.f32 %v907, %v918
  %v928 = vadd.f32 %v908, %v918
  %v929 = vadd.f32 %v909, %v923
  %v930 = vadd.f32 %v910, %v923
  %v931 = vadd.f32 %v911, %v923
  %v932 = vadd.f32 %v912, %v923
  %v933 = vmax.f32 %v925, 0.0
  %v934 = vmax.f32 %v926, 0.0
  %v935 = vmax.f32 %v927, 0.0
  %v936 = vmax.f32 %v928, 0.0
  %v937 = vmax.f32 %v929, 0.0
  %v938 = vmax.f32 %v930, 0.0
  %v939 = vmax.f32 %v931, 0.0
  %v940 = vmax.f32 %v932, 0.0
  %v941 = vpack.c.bf16 %v937, %v933
  %v942 = vpack.c.bf16 %v938, %v934
  %v943 = vpack.c.bf16 %v939, %v935
  %v944 = vpack.c.bf16 %v940, %v936
  %v949 = vunpack.c.l.b16 %v941
  %v950 = vunpack.c.l.b16 %v942
  %v951 = vunpack.c.l.b16 %v943
  %v952 = vunpack.c.l.b16 %v944
  %v953 = vunpack.c.h.b16 %v941
  %v954 = vunpack.c.h.b16 %v942
  %v955 = vunpack.c.h.b16 %v943
  %v956 = vunpack.c.h.b16 %v944
  %v957 = vpack.c.b16 %v950, %v949
  %v958 = vpack.c.b16 %v952, %v951
  %v959 = vpack.c.b16 %v954, %v953
  %v960 = vpack.c.b16 %v956, %v955
  %965 = vst [vmem:[%s3] sm:$0xff] %v957
  %966 = vst [vmem:[%s3 + $0x8] sm:$0xff] %v958
  %967 = vst [vmem:[%s3 + $0x10] sm:$0xff] %v959
  %968 = vst [vmem:[%s3 + $0x18] sm:$0xff] %v960
  // Predicated region
  $region14: #{target_forward.3} parent=0 // pred_check
    _
  $region15: #{target_forward.3} parent=0 // pred_check_branch
    %970 = sbr.rel (0) target = $region17
  $region16: #{target_forward.3} parent=0 // pred_region
    _
  $region17: #{target_forward.3} parent=0 // pred_fallthru
    _
  // Predicated region
  $region18: #{target_forward.3} parent=0 // pred_check
    _
  $region19: #{target_forward.3} parent=0 // pred_check_branch
    %972 = sbr.rel (0) target = $region21
  $region20: #{target_forward.3} parent=0 // pred_region
    _
  $region21: #{target_forward.3} parent=0 // pred_fallthru
    _

// kernel: target_forward.4
$region0: #{target_forward.4}
  #allocation0 [shape = 'u32[]', space=smem, size = 0x4, offset = 0x4, fixed_abs, tag = 'smem constant byte address 0x4 - core index']
  #allocation1 [shape = 'u32[144,128]{1,0:T(1,128)}', space=vmem, size = 0x12000, scoped, tag = 'internal scratch']
  %s0 = inlined_call_operand.vmem [shape: bf16[4,400,32], index: 0, kind: input, shape index: {}]
  %s1 = inlined_call_operand.vmem [shape: bf16[64,400], index: 1, kind: input, shape index: {}]
  %s2 = inlined_call_operand.vmem [shape: f32[64,1], index: 2, kind: input, shape index: {}]
  %s3 = inlined_call_operand.vmem [shape: bf16[64,32], index: 3, kind: output, shape index: {}]
  %s4 = sld [smem:[#allocation0]]
  $region22: #{target_forward.4} parent=0
    _
  %s6 = ssub.s32 1, %s4
  %s7 = scalar_select 0, %s6, %s4
  // Predicated region
  $region2: #{target_forward.4} parent=0 // pred_check
    _
  $region3: #{target_forward.4} parent=0 // pred_check_branch
    %9 = sbr.rel (0) target = $region5
  $region4: #{target_forward.4} parent=0 // pred_region
    _
  $region5: #{target_forward.4} parent=0 // pred_fallthru
    _
  // Predicated region
  $region6: #{target_forward.4} parent=0 // pred_check
    _
  $region7: #{target_forward.4} parent=0 // pred_check_branch
    %11 = sbr.rel (0) target = $region9
  $region8: #{target_forward.4} parent=0 // pred_region
    _
  $region9: #{target_forward.4} parent=0 // pred_fallthru
    _
  // Predicated region
  $region10: #{target_forward.4} parent=0 // pred_check
    _
  $region11: #{target_forward.4} parent=0 // pred_check_branch
    %13 = sbr.rel (0) target = $region13
  $region12: #{target_forward.4} parent=0 // pred_region
    _
  $region13: #{target_forward.4} parent=0 // pred_fallthru
    _
  %v15 = vld [vmem:[%s1] sm:$0xff]
  %v16 = vld [vmem:[%s1 + $0x8] sm:$0xff]
  %v17 = vld [vmem:[%s1 + $0x10] sm:$0xff]
  %v18 = vld [vmem:[%s1 + $0x18] sm:$0xff]
  %v19 = vld [vmem:[%s1 + $0x20] sm:$0xff]
  %v20 = vld [vmem:[%s1 + $0x28] sm:$0xff]
  %v21 = vld [vmem:[%s1 + $0x30] sm:$0xff]
  %v22 = vld [vmem:[%s1 + $0x38] sm:$0xff]
  %v23 = vld [vmem:[%s1 + $0x40] sm:$0xff]
  %v24 = vld [vmem:[%s1 + $0x48] sm:$0xff]
  %v25 = vld [vmem:[%s1 + $0x50] sm:$0xff]
  %v26 = vld [vmem:[%s1 + $0x58] sm:$0xff]
  %v27 = vld [vmem:[%s1 + $0x60] sm:$0xff]
  %v28 = vld [vmem:[%s1 + $0x68] sm:$0xff]
  %v29 = vld [vmem:[%s1 + $0x70] sm:$0xff]
  %v30 = vld [vmem:[%s1 + $0x78] sm:$0xff]
  %v31 = vld [vmem:[%s0] sm:$0xf]
  %v32 = vld [vmem:[%s0 + $0x4] sm:$0xf]
  %v33 = vld [vmem:[%s0 + $0x8] sm:$0xf]
  %v34 = vld [vmem:[%s0 + $0xc] sm:$0xf]
  %v35 = vld [vmem:[%s0 + $0x10] sm:$0xf]
  %v36 = vld [vmem:[%s0 + $0x14] sm:$0xf]
  %v37 = vld [vmem:[%s0 + $0x18] sm:$0xf]
  %v38 = vld [vmem:[%s0 + $0x1c] sm:$0xf]
  %v39 = vld [vmem:[%s0 + $0x20] sm:$0xf]
  %v40 = vld [vmem:[%s0 + $0x24] sm:$0xf]
  %v41 = vld [vmem:[%s0 + $0x28] sm:$0xf]
  %v42 = vld [vmem:[%s0 + $0x2c] sm:$0xf]
  %v43 = vld [vmem:[%s0 + $0x30] sm:$0xf]
  %v44 = vld [vmem:[%s0 + $0x34] sm:$0xf]
  %v45 = vld [vmem:[%s0 + $0x38] sm:$0xf]
  %v46 = vld [vmem:[%s0 + $0x3c] sm:$0xf]
  %v47 = vld [vmem:[%s0 + $0x40] sm:$0xf]
  %v48 = vld [vmem:[%s0 + $0x44] sm:$0xf]
  %v49 = vld [vmem:[%s0 + $0x48] sm:$0xf]
  %v50 = vld [vmem:[%s0 + $0x4c] sm:$0xf]
  %v51 = vld [vmem:[%s0 + $0x50] sm:$0xf]
  %v52 = vld [vmem:[%s0 + $0x54] sm:$0xf]
  %v53 = vld [vmem:[%s0 + $0x58] sm:$0xf]
  %v54 = vld [vmem:[%s0 + $0x5c] sm:$0xf]
  %v55 = vld [vmem:[%s0 + $0x60] sm:$0xf]
  %v56 = vld [vmem:[%s0 + $0x64] sm:$0xf]
  %v57 = vld [vmem:[%s0 + $0x68] sm:$0xf]
  %v58 = vld [vmem:[%s0 + $0x6c] sm:$0xf]
  %v59 = vld [vmem:[%s0 + $0x70] sm:$0xf]
  %v60 = vld [vmem:[%s0 + $0x74] sm:$0xf]
  %v61 = vld [vmem:[%s0 + $0x78] sm:$0xf]
  %v62 = vld [vmem:[%s0 + $0x7c] sm:$0xf]
  %v63 = vld [vmem:[%s0 + $0x80] sm:$0xf]
  %v64 = vld [vmem:[%s0 + $0x84] sm:$0xf]
  %v65 = vld [vmem:[%s0 + $0x88] sm:$0xf]
  %v66 = vld [vmem:[%s0 + $0x8c] sm:$0xf]
  %v67 = vld [vmem:[%s0 + $0x90] sm:$0xf]
  %v68 = vld [vmem:[%s0 + $0x94] sm:$0xf]
  %v69 = vld [vmem:[%s0 + $0x98] sm:$0xf]
  %v70 = vld [vmem:[%s0 + $0x9c] sm:$0xf]
  %v71 = vld [vmem:[%s0 + $0xa0] sm:$0xf]
  %v72 = vld [vmem:[%s0 + $0xa4] sm:$0xf]
  %v73 = vld [vmem:[%s0 + $0xa8] sm:$0xf]
  %v74 = vld [vmem:[%s0 + $0xac] sm:$0xf]
  %v75 = vld [vmem:[%s0 + $0xb0] sm:$0xf]
  %v76 = vld [vmem:[%s0 + $0xb4] sm:$0xf]
  %v77 = vld [vmem:[%s0 + $0xb8] sm:$0xf]
  %v78 = vld [vmem:[%s0 + $0xbc] sm:$0xf]
  %v79 = vld [vmem:[%s0 + $0xc0] sm:$0xf]
  %v80 = vld [vmem:[%s0 + $0xc4] sm:$0xf]
  %v97 = vunpack.c.l.b16 %v15
  %v98 = vunpack.c.h.b16 %v15
  %v99 = vunpack.c.l.b16 %v16
  %v100 = vunpack.c.h.b16 %v16
  %v101 = vunpack.c.l.b16 %v17
  %v102 = vunpack.c.h.b16 %v17
  %v103 = vunpack.c.l.b16 %v18
  %v104 = vunpack.c.h.b16 %v18
  %v105 = vunpack.c.l.b16 %v19
  %v106 = vunpack.c.h.b16 %v19
  %v107 = vunpack.c.l.b16 %v20
  %v108 = vunpack.c.h.b16 %v20
  %v109 = vunpack.c.l.b16 %v21
  %v110 = vunpack.c.h.b16 %v21
  %v111 = vunpack.c.l.b16 %v22
  %v112 = vunpack.c.h.b16 %v22
  %v113 = vunpack.c.l.b16 %v23
  %v114 = vunpack.c.h.b16 %v23
  %v115 = vunpack.c.l.b16 %v24
  %v116 = vunpack.c.h.b16 %v24
  %v117 = vunpack.c.l.b16 %v25
  %v118 = vunpack.c.h.b16 %v25
  %v119 = vunpack.c.l.b16 %v26
  %v120 = vunpack.c.h.b16 %v26
  %v121 = vunpack.c.l.b16 %v27
  %v122 = vunpack.c.h.b16 %v27
  %v123 = vunpack.c.l.b16 %v28
  %v124 = vunpack.c.h.b16 %v28
  %v125 = vunpack.c.l.b16 %v29
  %v126 = vunpack.c.h.b16 %v29
  %v127 = vunpack.c.l.b16 %v30
  %v128 = vunpack.c.h.b16 %v30
  %v129 = vpack.c.b16 %v101, %v97
  %v130 = vpack.c.b16 %v102, %v98
  %v131 = vpack.c.b16 %v103, %v99
  %v132 = vpack.c.b16 %v104, %v100
  %v133 = vpack.c.b16 %v109, %v105
  %v134 = vpack.c.b16 %v110, %v106
  %v135 = vpack.c.b16 %v111, %v107
  %v136 = vpack.c.b16 %v112, %v108
  %v137 = vpack.c.b16 %v117, %v113
  %v138 = vpack.c.b16 %v118, %v114
  %v139 = vpack.c.b16 %v119, %v115
  %v140 = vpack.c.b16 %v120, %v116
  %v141 = vpack.c.b16 %v125, %v121
  %v142 = vpack.c.b16 %v126, %v122
  %v143 = vpack.c.b16 %v127, %v123
  %v144 = vpack.c.b16 %v128, %v124
  %v207 = vunpack.c.l.b16 %v31
  %v208 = vunpack.c.l.b16 %v32
  %v209 = vunpack.c.l.b16 %v33
  %v210 = vunpack.c.l.b16 %v34
  %v211 = vunpack.c.l.b16 %v35
  %v212 = vunpack.c.l.b16 %v36
  %v213 = vunpack.c.l.b16 %v37
  %v214 = vunpack.c.l.b16 %v38
  %v215 = vunpack.c.l.b16 %v39
  %v216 = vunpack.c.l.b16 %v40
  %v217 = vunpack.c.l.b16 %v41
  %v218 = vunpack.c.l.b16 %v42
  %v219 = vunpack.c.l.b16 %v43
  %v220 = vunpack.c.l.b16 %v44
  %v221 = vunpack.c.l.b16 %v45
  %v222 = vunpack.c.l.b16 %v46
  %v223 = vunpack.c.l.b16 %v47
  %v224 = vunpack.c.l.b16 %v48
  %v225 = vunpack.c.l.b16 %v49
  %v226 = vunpack.c.l.b16 %v50
  %v227 = vunpack.c.l.b16 %v51
  %v228 = vunpack.c.l.b16 %v52
  %v229 = vunpack.c.l.b16 %v53
  %v230 = vunpack.c.l.b16 %v54
  %v231 = vunpack.c.l.b16 %v55
  %v232 = vunpack.c.l.b16 %v56
  %v233 = vunpack.c.l.b16 %v57
  %v234 = vunpack.c.l.b16 %v58
  %v235 = vunpack.c.l.b16 %v59
  %v236 = vunpack.c.l.b16 %v60
  %v237 = vunpack.c.l.b16 %v61
  %v238 = vunpack.c.l.b16 %v62
  %v239 = vunpack.c.l.b16 %v63
  %v240 = vunpack.c.l.b16 %v64
  %v241 = vunpack.c.l.b16 %v65
  %v242 = vunpack.c.l.b16 %v66
  %v243 = vunpack.c.l.b16 %v67
  %v244 = vunpack.c.l.b16 %v68
  %v245 = vunpack.c.l.b16 %v69
  %v246 = vunpack.c.l.b16 %v70
  %v247 = vunpack.c.l.b16 %v71
  %v248 = vunpack.c.l.b16 %v72
  %v249 = vunpack.c.l.b16 %v73
  %v250 = vunpack.c.l.b16 %v74
  %v251 = vunpack.c.l.b16 %v75
  %v252 = vunpack.c.l.b16 %v76
  %v253 = vunpack.c.l.b16 %v77
  %v254 = vunpack.c.l.b16 %v78
  %v255 = vunpack.c.l.b16 %v79
  %v256 = vunpack.c.l.b16 %v80
  %v257 = vpack.c.b16 %v208, %v207
  %v258 = vpack.c.b16 %v210, %v209
  %v259 = vpack.c.b16 %v212, %v211
  %v260 = vpack.c.b16 %v214, %v213
  %v261 = vpack.c.b16 %v216, %v215
  %v262 = vpack.c.b16 %v218, %v217
  %v263 = vpack.c.b16 %v220, %v219
  %v264 = vpack.c.b16 %v222, %v221
  %v265 = vpack.c.b16 %v224, %v223
  %v266 = vpack.c.b16 %v226, %v225
  %v267 = vpack.c.b16 %v228, %v227
  %v268 = vpack.c.b16 %v230, %v229
  %v269 = vpack.c.b16 %v232, %v231
  %v270 = vpack.c.b16 %v234, %v233
  %v271 = vpack.c.b16 %v236, %v235
  %v272 = vpack.c.b16 %v238, %v237
  %v273 = vpack.c.b16 %v240, %v239
  %v274 = vpack.c.b16 %v242, %v241
  %v275 = vpack.c.b16 %v244, %v243
  %v276 = vpack.c.b16 %v246, %v245
  %v277 = vpack.c.b16 %v248, %v247
  %v278 = vpack.c.b16 %v250, %v249
  %v279 = vpack.c.b16 %v252, %v251
  %v280 = vpack.c.b16 %v254, %v253
  %v281 = vpack.c.b16 %v256, %v255
  %vm307 = vcmask 130048
  %v309 = vsel %vm307, %v132, 0
  %v312 = vsel %vm307, %v136, 0
  %v315 = vsel %vm307, %v140, 0
  %v318 = vsel %vm307, %v144, 0
  %320 = vmatprep.subr.bf16.mxu0 0
  %321 = vmatpush1.bf16.msra.mxu0 %v264
  %322 = vmatprep.subr.bf16.mxu0 0
  %323 = vmatpush1.bf16.msra.mxu0 %v263
  %324 = vmatprep.subr.bf16.mxu0 0
  %325 = vmatpush1.bf16.msra.mxu0 %v262
  %326 = vmatprep.subr.bf16.mxu0 0
  %327 = vmatpush1.bf16.msra.mxu0 %v261
  %328 = vmatprep.subr.bf16.mxu0 0
  %329 = vmatpush1.bf16.msra.mxu0 %v260
  %330 = vmatprep.subr.bf16.mxu0 0
  %331 = vmatpush1.bf16.msra.mxu0 %v259
  %332 = vmatprep.subr.bf16.mxu0 0
  %333 = vmatpush1.bf16.msra.mxu0 %v258
  %334 = vmatprep.subr.bf16.mxu0 0
  %335 = vmatpush1.bf16.msra.mxu0 %v257
  %336 = vmatprep.subr.bf16.mxu0 0
  %337 = vmatpush2.bf16.msra.mxu0 %v272
  %338 = vmatprep.subr.bf16.mxu0 0
  %339 = vmatpush2.bf16.msra.mxu0 %v271
  %340 = vmatprep.subr.bf16.mxu0 0
  %341 = vmatpush2.bf16.msra.mxu0 %v270
  %342 = vmatprep.subr.bf16.mxu0 0
  %343 = vmatpush2.bf16.msra.mxu0 %v269
  %344 = vmatprep.subr.bf16.mxu0 0
  %345 = vmatpush2.bf16.msra.mxu0 %v268
  %346 = vmatprep.subr.bf16.mxu0 0
  %347 = vmatpush2.bf16.msra.mxu0 %v267
  %348 = vmatprep.subr.bf16.mxu0 0
  %349 = vmatpush2.bf16.msra.mxu0 %v266
  %350 = vmatprep.subr.bf16.mxu0 0
  %351 = vmatpush2.bf16.msra.mxu0 %v265
  %352 = vmatprep.mubr.bf16.mxu0 %v130
  %353 = vmatmul.mubr.bf16.gmra.mxu0 %v129
  %v354 = vpop.f32.mrf.mxu0
  %v355 = vadd.f32 0.0, %v354
  %v356 = vpop.f32.mrf.mxu0
  %v357 = vpop.f32.mrf.mxu0
  %v358 = vadd.f32 0.0, %v357
  %v359 = vpop.f32.mrf.mxu0
  %360 = vmatprep.mubr.bf16.mxu0 %v134
  %361 = vmatmul.mubr.bf16.gmra.mxu0 %v133
  %v362 = vpop.f32.mrf.mxu0
  %v363 = vadd.f32 0.0, %v362
  %v364 = vpop.f32.mrf.mxu0
  %v365 = vpop.f32.mrf.mxu0
  %v366 = vadd.f32 0.0, %v365
  %v367 = vpop.f32.mrf.mxu0
  %368 = vmatprep.mubr.bf16.mxu0 %v138
  %369 = vmatmul.mubr.bf16.gmra.mxu0 %v137
  %v370 = vpop.f32.mrf.mxu0
  %v371 = vadd.f32 0.0, %v370
  %v372 = vpop.f32.mrf.mxu0
  %v373 = vpop.f32.mrf.mxu0
  %v374 = vadd.f32 0.0, %v373
  %v375 = vpop.f32.mrf.mxu0
  %376 = vmatprep.mubr.bf16.mxu0 %v142
  %377 = vmatmul.mubr.bf16.gmra.mxu0 %v141
  %v378 = vpop.f32.mrf.mxu0
  %v379 = vadd.f32 0.0, %v378
  %v380 = vpop.f32.mrf.mxu0
  %v381 = vpop.f32.mrf.mxu0
  %v382 = vadd.f32 0.0, %v381
  %v383 = vpop.f32.mrf.mxu0
  %384 = vdwg.mxu0
  %385 = vmatprep.subr.bf16.mxu0 0
  %386 = vmatpush1.bf16.msra.mxu0 %v280
  %387 = vmatprep.subr.bf16.mxu0 0
  %388 = vmatpush1.bf16.msra.mxu0 %v279
  %389 = vmatprep.subr.bf16.mxu0 0
  %390 = vmatpush1.bf16.msra.mxu0 %v278
  %391 = vmatprep.subr.bf16.mxu0 0
  %392 = vmatpush1.bf16.msra.mxu0 %v277
  %393 = vmatprep.subr.bf16.mxu0 0
  %394 = vmatpush1.bf16.msra.mxu0 %v276
  %395 = vmatprep.subr.bf16.mxu0 0
  %396 = vmatpush1.bf16.msra.mxu0 %v275
  %397 = vmatprep.subr.bf16.mxu0 0
  %398 = vmatpush1.bf16.msra.mxu0 %v274
  %399 = vmatprep.subr.bf16.mxu0 0
  %400 = vmatpush1.bf16.msra.mxu0 %v273
  %401 = vmatprep.subr.bf16.mxu0 0
  %402 = vmatpush2.bf16.msra.mxu0 0
  %403 = vmatprep.subr.bf16.mxu0 0
  %404 = vmatpush2.bf16.msra.mxu0 0
  %405 = vmatprep.subr.bf16.mxu0 0
  %406 = vmatpush2.bf16.msra.mxu0 0
  %407 = vmatprep.subr.bf16.mxu0 0
  %408 = vmatpush2.bf16.msra.mxu0 0
  %409 = vmatprep.subr.bf16.mxu0 0
  %410 = vmatpush2.bf16.msra.mxu0 0
  %411 = vmatprep.subr.bf16.mxu0 0
  %412 = vmatpush2.bf16.msra.mxu0 0
  %413 = vmatprep.subr.bf16.mxu0 0
  %414 = vmatpush2.bf16.msra.mxu0 0
  %415 = vmatprep.subr.bf16.mxu0 0
  %416 = vmatpush2.bf16.msra.mxu0 %v281
  %417 = vmatprep.mubr.bf16.mxu0 %v309
  %418 = vmatmul.mubr.bf16.gmra.mxu0 %v131
  %v419 = vpop.f32.mrf.mxu0
  %v420 = vadd.f32 %v355, %v419
  %v421 = vpop.f32.mrf.mxu0
  %v422 = vpop.f32.mrf.mxu0
  %v423 = vadd.f32 %v358, %v422
  %v424 = vpop.f32.mrf.mxu0
  %425 = vmatprep.mubr.bf16.mxu0 %v312
  %426 = vmatmul.mubr.bf16.gmra.mxu0 %v135
  %v427 = vpop.f32.mrf.mxu0
  %v428 = vadd.f32 %v363, %v427
  %v429 = vpop.f32.mrf.mxu0
  %v430 = vpop.f32.mrf.mxu0
  %v431 = vadd.f32 %v366, %v430
  %v432 = vpop.f32.mrf.mxu0
  %433 = vmatprep.mubr.bf16.mxu0 %v315
  %434 = vmatmul.mubr.bf16.gmra.mxu0 %v139
  %v435 = vpop.f32.mrf.mxu0
  %v436 = vadd.f32 %v371, %v435
  %v437 = vpop.f32.mrf.mxu0
  %v438 = vpop.f32.mrf.mxu0
  %v439 = vadd.f32 %v374, %v438
  %v440 = vpop.f32.mrf.mxu0
  %441 = vmatprep.mubr.bf16.mxu0 %v318
  %442 = vmatmul.mubr.bf16.gmra.mxu0 %v143
  %v443 = vpop.f32.mrf.mxu0
  %v444 = vadd.f32 %v379, %v443
  %v445 = vpop.f32.mrf.mxu0
  %v446 = vpop.f32.mrf.mxu0
  %v447 = vadd.f32 %v382, %v446
  %v448 = vpop.f32.mrf.mxu0
  %449 = vdwg.mxu0
  %s450 = scalar_lea.vmem %s0, 200
  %v451 = vld [vmem:[%s450] sm:$0xf]
  %v452 = vld [vmem:[%s450 + $0x4] sm:$0xf]
  %v453 = vld [vmem:[%s450 + $0x8] sm:$0xf]
  %v454 = vld [vmem:[%s450 + $0xc] sm:$0xf]
  %v455 = vld [vmem:[%s450 + $0x10] sm:$0xf]
  %v456 = vld [vmem:[%s450 + $0x14] sm:$0xf]
  %v457 = vld [vmem:[%s450 + $0x18] sm:$0xf]
  %v458 = vld [vmem:[%s450 + $0x1c] sm:$0xf]
  %v459 = vld [vmem:[%s450 + $0x20] sm:$0xf]
  %v460 = vld [vmem:[%s450 + $0x24] sm:$0xf]
  %v461 = vld [vmem:[%s450 + $0x28] sm:$0xf]
  %v462 = vld [vmem:[%s450 + $0x2c] sm:$0xf]
  %v463 = vld [vmem:[%s450 + $0x30] sm:$0xf]
  %v464 = vld [vmem:[%s450 + $0x34] sm:$0xf]
  %v465 = vld [vmem:[%s450 + $0x38] sm:$0xf]
  %v466 = vld [vmem:[%s450 + $0x3c] sm:$0xf]
  %v467 = vld [vmem:[%s450 + $0x40] sm:$0xf]
  %v468 = vld [vmem:[%s450 + $0x44] sm:$0xf]
  %v469 = vld [vmem:[%s450 + $0x48] sm:$0xf]
  %v470 = vld [vmem:[%s450 + $0x4c] sm:$0xf]
  %v471 = vld [vmem:[%s450 + $0x50] sm:$0xf]
  %v472 = vld [vmem:[%s450 + $0x54] sm:$0xf]
  %v473 = vld [vmem:[%s450 + $0x58] sm:$0xf]
  %v474 = vld [vmem:[%s450 + $0x5c] sm:$0xf]
  %v475 = vld [vmem:[%s450 + $0x60] sm:$0xf]
  %v476 = vld [vmem:[%s450 + $0x64] sm:$0xf]
  %v477 = vld [vmem:[%s450 + $0x68] sm:$0xf]
  %v478 = vld [vmem:[%s450 + $0x6c] sm:$0xf]
  %v479 = vld [vmem:[%s450 + $0x70] sm:$0xf]
  %v480 = vld [vmem:[%s450 + $0x74] sm:$0xf]
  %v481 = vld [vmem:[%s450 + $0x78] sm:$0xf]
  %v482 = vld [vmem:[%s450 + $0x7c] sm:$0xf]
  %v483 = vld [vmem:[%s450 + $0x80] sm:$0xf]
  %v484 = vld [vmem:[%s450 + $0x84] sm:$0xf]
  %v485 = vld [vmem:[%s450 + $0x88] sm:$0xf]
  %v486 = vld [vmem:[%s450 + $0x8c] sm:$0xf]
  %v487 = vld [vmem:[%s450 + $0x90] sm:$0xf]
  %v488 = vld [vmem:[%s450 + $0x94] sm:$0xf]
  %v489 = vld [vmem:[%s450 + $0x98] sm:$0xf]
  %v490 = vld [vmem:[%s450 + $0x9c] sm:$0xf]
  %v491 = vld [vmem:[%s450 + $0xa0] sm:$0xf]
  %v492 = vld [vmem:[%s450 + $0xa4] sm:$0xf]
  %v493 = vld [vmem:[%s450 + $0xa8] sm:$0xf]
  %v494 = vld [vmem:[%s450 + $0xac] sm:$0xf]
  %v495 = vld [vmem:[%s450 + $0xb0] sm:$0xf]
  %v496 = vld [vmem:[%s450 + $0xb4] sm:$0xf]
  %v497 = vld [vmem:[%s450 + $0xb8] sm:$0xf]
  %v498 = vld [vmem:[%s450 + $0xbc] sm:$0xf]
  %v499 = vld [vmem:[%s450 + $0xc0] sm:$0xf]
  %v500 = vld [vmem:[%s450 + $0xc4] sm:$0xf]
  %v551 = vunpack.c.l.b16 %v451
  %v552 = vunpack.c.l.b16 %v452
  %v553 = vunpack.c.l.b16 %v453
  %v554 = vunpack.c.l.b16 %v454
  %v555 = vunpack.c.l.b16 %v455
  %v556 = vunpack.c.l.b16 %v456
  %v557 = vunpack.c.l.b16 %v457
  %v558 = vunpack.c.l.b16 %v458
  %v559 = vunpack.c.l.b16 %v459
  %v560 = vunpack.c.l.b16 %v460
  %v561 = vunpack.c.l.b16 %v461
  %v562 = vunpack.c.l.b16 %v462
  %v563 = vunpack.c.l.b16 %v463
  %v564 = vunpack.c.l.b16 %v464
  %v565 = vunpack.c.l.b16 %v465
  %v566 = vunpack.c.l.b16 %v466
  %v567 = vunpack.c.l.b16 %v467
  %v568 = vunpack.c.l.b16 %v468
  %v569 = vunpack.c.l.b16 %v469
  %v570 = vunpack.c.l.b16 %v470
  %v571 = vunpack.c.l.b16 %v471
  %v572 = vunpack.c.l.b16 %v472
  %v573 = vunpack.c.l.b16 %v473
  %v574 = vunpack.c.l.b16 %v474
  %v575 = vunpack.c.l.b16 %v475
  %v576 = vunpack.c.l.b16 %v476
  %v577 = vunpack.c.l.b16 %v477
  %v578 = vunpack.c.l.b16 %v478
  %v579 = vunpack.c.l.b16 %v479
  %v580 = vunpack.c.l.b16 %v480
  %v581 = vunpack.c.l.b16 %v481
  %v582 = vunpack.c.l.b16 %v482
  %v583 = vunpack.c.l.b16 %v483
  %v584 = vunpack.c.l.b16 %v484
  %v585 = vunpack.c.l.b16 %v485
  %v586 = vunpack.c.l.b16 %v486
  %v587 = vunpack.c.l.b16 %v487
  %v588 = vunpack.c.l.b16 %v488
  %v589 = vunpack.c.l.b16 %v489
  %v590 = vunpack.c.l.b16 %v490
  %v591 = vunpack.c.l.b16 %v491
  %v592 = vunpack.c.l.b16 %v492
  %v593 = vunpack.c.l.b16 %v493
  %v594 = vunpack.c.l.b16 %v494
  %v595 = vunpack.c.l.b16 %v495
  %v596 = vunpack.c.l.b16 %v496
  %v597 = vunpack.c.l.b16 %v497
  %v598 = vunpack.c.l.b16 %v498
  %v599 = vunpack.c.l.b16 %v499
  %v600 = vunpack.c.l.b16 %v500
  %v601 = vpack.c.b16 %v552, %v551
  %v602 = vpack.c.b16 %v554, %v553
  %v603 = vpack.c.b16 %v556, %v555
  %v604 = vpack.c.b16 %v558, %v557
  %v605 = vpack.c.b16 %v560, %v559
  %v606 = vpack.c.b16 %v562, %v561
  %v607 = vpack.c.b16 %v564, %v563
  %v608 = vpack.c.b16 %v566, %v565
  %v609 = vpack.c.b16 %v568, %v567
  %v610 = vpack.c.b16 %v570, %v569
  %v611 = vpack.c.b16 %v572, %v571
  %v612 = vpack.c.b16 %v574, %v573
  %v613 = vpack.c.b16 %v576, %v575
  %v614 = vpack.c.b16 %v578, %v577
  %v615 = vpack.c.b16 %v580, %v579
  %v616 = vpack.c.b16 %v582, %v581
  %v617 = vpack.c.b16 %v584, %v583
  %v618 = vpack.c.b16 %v586, %v585
  %v619 = vpack.c.b16 %v588, %v587
  %v620 = vpack.c.b16 %v590, %v589
  %v621 = vpack.c.b16 %v592, %v591
  %v622 = vpack.c.b16 %v594, %v593
  %v623 = vpack.c.b16 %v596, %v595
  %v624 = vpack.c.b16 %v598, %v597
  %v625 = vpack.c.b16 %v600, %v599
  %651 = vmatprep.subr.bf16.mxu0 0
  %652 = vmatpush1.bf16.msra.mxu0 %v608
  %653 = vmatprep.subr.bf16.mxu0 0
  %654 = vmatpush1.bf16.msra.mxu0 %v607
  %655 = vmatprep.subr.bf16.mxu0 0
  %656 = vmatpush1.bf16.msra.mxu0 %v606
  %657 = vmatprep.subr.bf16.mxu0 0
  %658 = vmatpush1.bf16.msra.mxu0 %v605
  %659 = vmatprep.subr.bf16.mxu0 0
  %660 = vmatpush1.bf16.msra.mxu0 %v604
  %661 = vmatprep.subr.bf16.mxu0 0
  %662 = vmatpush1.bf16.msra.mxu0 %v603
  %663 = vmatprep.subr.bf16.mxu0 0
  %664 = vmatpush1.bf16.msra.mxu0 %v602
  %665 = vmatprep.subr.bf16.mxu0 0
  %666 = vmatpush1.bf16.msra.mxu0 %v601
  %667 = vmatprep.subr.bf16.mxu0 0
  %668 = vmatpush2.bf16.msra.mxu0 %v616
  %669 = vmatprep.subr.bf16.mxu0 0
  %670 = vmatpush2.bf16.msra.mxu0 %v615
  %671 = vmatprep.subr.bf16.mxu0 0
  %672 = vmatpush2.bf16.msra.mxu0 %v614
  %673 = vmatprep.subr.bf16.mxu0 0
  %674 = vmatpush2.bf16.msra.mxu0 %v613
  %675 = vmatprep.subr.bf16.mxu0 0
  %676 = vmatpush2.bf16.msra.mxu0 %v612
  %677 = vmatprep.subr.bf16.mxu0 0
  %678 = vmatpush2.bf16.msra.mxu0 %v611
  %679 = vmatprep.subr.bf16.mxu0 0
  %680 = vmatpush2.bf16.msra.mxu0 %v610
  %681 = vmatprep.subr.bf16.mxu0 0
  %682 = vmatpush2.bf16.msra.mxu0 %v609
  %683 = vmatprep.mubr.bf16.mxu0 %v130
  %684 = vmatmul.mubr.bf16.gmra.mxu0 %v129
  %v685 = vpop.f32.mrf.mxu0
  %v686 = vadd.f32 0.0, %v685
  %v687 = vpop.f32.mrf.mxu0
  %v688 = vpop.f32.mrf.mxu0
  %v689 = vadd.f32 0.0, %v688
  %v690 = vpop.f32.mrf.mxu0
  %691 = vmatprep.mubr.bf16.mxu0 %v134
  %692 = vmatmul.mubr.bf16.gmra.mxu0 %v133
  %v693 = vpop.f32.mrf.mxu0
  %v694 = vadd.f32 0.0, %v693
  %v695 = vpop.f32.mrf.mxu0
  %v696 = vpop.f32.mrf.mxu0
  %v697 = vadd.f32 0.0, %v696
  %v698 = vpop.f32.mrf.mxu0
  %699 = vmatprep.mubr.bf16.mxu0 %v138
  %700 = vmatmul.mubr.bf16.gmra.mxu0 %v137
  %v701 = vpop.f32.mrf.mxu0
  %v702 = vadd.f32 0.0, %v701
  %v703 = vpop.f32.mrf.mxu0
  %v704 = vpop.f32.mrf.mxu0
  %v705 = vadd.f32 0.0, %v704
  %v706 = vpop.f32.mrf.mxu0
  %707 = vmatprep.mubr.bf16.mxu0 %v142
  %708 = vmatmul.mubr.bf16.gmra.mxu0 %v141
  %v709 = vpop.f32.mrf.mxu0
  %v710 = vadd.f32 0.0, %v709
  %v711 = vpop.f32.mrf.mxu0
  %v712 = vpop.f32.mrf.mxu0
  %v713 = vadd.f32 0.0, %v712
  %v714 = vpop.f32.mrf.mxu0
  %715 = vdwg.mxu0
  %716 = vmatprep.subr.bf16.mxu0 0
  %717 = vmatpush1.bf16.msra.mxu0 %v624
  %718 = vmatprep.subr.bf16.mxu0 0
  %719 = vmatpush1.bf16.msra.mxu0 %v623
  %720 = vmatprep.subr.bf16.mxu0 0
  %721 = vmatpush1.bf16.msra.mxu0 %v622
  %722 = vmatprep.subr.bf16.mxu0 0
  %723 = vmatpush1.bf16.msra.mxu0 %v621
  %724 = vmatprep.subr.bf16.mxu0 0
  %725 = vmatpush1.bf16.msra.mxu0 %v620
  %726 = vmatprep.subr.bf16.mxu0 0
  %727 = vmatpush1.bf16.msra.mxu0 %v619
  %728 = vmatprep.subr.bf16.mxu0 0
  %729 = vmatpush1.bf16.msra.mxu0 %v618
  %730 = vmatprep.subr.bf16.mxu0 0
  %731 = vmatpush1.bf16.msra.mxu0 %v617
  %732 = vmatprep.subr.bf16.mxu0 0
  %733 = vmatpush2.bf16.msra.mxu0 0
  %734 = vmatprep.subr.bf16.mxu0 0
  %735 = vmatpush2.bf16.msra.mxu0 0
  %736 = vmatprep.subr.bf16.mxu0 0
  %737 = vmatpush2.bf16.msra.mxu0 0
  %738 = vmatprep.subr.bf16.mxu0 0
  %739 = vmatpush2.bf16.msra.mxu0 0
  %740 = vmatprep.subr.bf16.mxu0 0
  %741 = vmatpush2.bf16.msra.mxu0 0
  %742 = vmatprep.subr.bf16.mxu0 0
  %743 = vmatpush2.bf16.msra.mxu0 0
  %744 = vmatprep.subr.bf16.mxu0 0
  %745 = vmatpush2.bf16.msra.mxu0 0
  %746 = vmatprep.subr.bf16.mxu0 0
  %747 = vmatpush2.bf16.msra.mxu0 %v625
  %748 = vmatprep.mubr.bf16.mxu0 %v309
  %749 = vmatmul.mubr.bf16.gmra.mxu0 %v131
  %v750 = vpop.f32.mrf.mxu0
  %v751 = vadd.f32 %v686, %v750
  %v752 = vpop.f32.mrf.mxu0
  %v753 = vpop.f32.mrf.mxu0
  %v754 = vadd.f32 %v689, %v753
  %v755 = vpop.f32.mrf.mxu0
  %756 = vmatprep.mubr.bf16.mxu0 %v312
  %757 = vmatmul.mubr.bf16.gmra.mxu0 %v135
  %v758 = vpop.f32.mrf.mxu0
  %v759 = vadd.f32 %v694, %v758
  %v760 = vpop.f32.mrf.mxu0
  %v761 = vpop.f32.mrf.mxu0
  %v762 = vadd.f32 %v697, %v761
  %v763 = vpop.f32.mrf.mxu0
  %764 = vmatprep.mubr.bf16.mxu0 %v315
  %765 = vmatmul.mubr.bf16.gmra.mxu0 %v139
  %v766 = vpop.f32.mrf.mxu0
  %v767 = vadd.f32 %v702, %v766
  %v768 = vpop.f32.mrf.mxu0
  %v769 = vpop.f32.mrf.mxu0
  %v770 = vadd.f32 %v705, %v769
  %v771 = vpop.f32.mrf.mxu0
  %772 = vmatprep.mubr.bf16.mxu0 %v318
  %773 = vmatmul.mubr.bf16.gmra.mxu0 %v143
  %v774 = vpop.f32.mrf.mxu0
  %v775 = vadd.f32 %v710, %v774
  %v776 = vpop.f32.mrf.mxu0
  %v777 = vpop.f32.mrf.mxu0
  %v778 = vadd.f32 %v713, %v777
  %v779 = vpop.f32.mrf.mxu0
  %780 = vdwg.mxu0
  %v781 = vmax.f32 %v420, %v751
  %v782 = vmax.f32 %v423, %v754
  %v783 = vmax.f32 %v428, %v759
  %v784 = vmax.f32 %v431, %v762
  %v785 = vmax.f32 %v436, %v767
  %v786 = vmax.f32 %v439, %v770
  %v787 = vmax.f32 %v444, %v775
  %v788 = vmax.f32 %v447, %v778
  %s789 = scalar_lea.vmem %s0, 400
  %v790 = vld [vmem:[%s789] sm:$0xf]
  %v791 = vld [vmem:[%s789 + $0x4] sm:$0xf]
  %v792 = vld [vmem:[%s789 + $0x8] sm:$0xf]
  %v793 = vld [vmem:[%s789 + $0xc] sm:$0xf]
  %v794 = vld [vmem:[%s789 + $0x10] sm:$0xf]
  %v795 = vld [vmem:[%s789 + $0x14] sm:$0xf]
  %v796 = vld [vmem:[%s789 + $0x18] sm:$0xf]
  %v797 = vld [vmem:[%s789 + $0x1c] sm:$0xf]
  %v798 = vld [vmem:[%s789 + $0x20] sm:$0xf]
  %v799 = vld [vmem:[%s789 + $0x24] sm:$0xf]
  %v800 = vld [vmem:[%s789 + $0x28] sm:$0xf]
  %v801 = vld [vmem:[%s789 + $0x2c] sm:$0xf]
  %v802 = vld [vmem:[%s789 + $0x30] sm:$0xf]
  %v803 = vld [vmem:[%s789 + $0x34] sm:$0xf]
  %v804 = vld [vmem:[%s789 + $0x38] sm:$0xf]
  %v805 = vld [vmem:[%s789 + $0x3c] sm:$0xf]
  %v806 = vld [vmem:[%s789 + $0x40] sm:$0xf]
  %v807 = vld [vmem:[%s789 + $0x44] sm:$0xf]
  %v808 = vld [vmem:[%s789 + $0x48] sm:$0xf]
  %v809 = vld [vmem:[%s789 + $0x4c] sm:$0xf]
  %v810 = vld [vmem:[%s789 + $0x50] sm:$0xf]
  %v811 = vld [vmem:[%s789 + $0x54] sm:$0xf]
  %v812 = vld [vmem:[%s789 + $0x58] sm:$0xf]
  %v813 = vld [vmem:[%s789 + $0x5c] sm:$0xf]
  %v814 = vld [vmem:[%s789 + $0x60] sm:$0xf]
  %v815 = vld [vmem:[%s789 + $0x64] sm:$0xf]
  %v816 = vld [vmem:[%s789 + $0x68] sm:$0xf]
  %v817 = vld [vmem:[%s789 + $0x6c] sm:$0xf]
  %v818 = vld [vmem:[%s789 + $0x70] sm:$0xf]
  %v819 = vld [vmem:[%s789 + $0x74] sm:$0xf]
  %v820 = vld [vmem:[%s789 + $0x78] sm:$0xf]
  %v821 = vld [vmem:[%s789 + $0x7c] sm:$0xf]
  %v822 = vld [vmem:[%s789 + $0x80] sm:$0xf]
  %v823 = vld [vmem:[%s789 + $0x84] sm:$0xf]
  %v824 = vld [vmem:[%s789 + $0x88] sm:$0xf]
  %v825 = vld [vmem:[%s789 + $0x8c] sm:$0xf]
  %v826 = vld [vmem:[%s789 + $0x90] sm:$0xf]
  %v827 = vld [vmem:[%s789 + $0x94] sm:$0xf]
  %v828 = vld [vmem:[%s789 + $0x98] sm:$0xf]
  %v829 = vld [vmem:[%s789 + $0x9c] sm:$0xf]
  %v830 = vld [vmem:[%s789 + $0xa0] sm:$0xf]
  %v831 = vld [vmem:[%s789 + $0xa4] sm:$0xf]
  %v832 = vld [vmem:[%s789 + $0xa8] sm:$0xf]
  %v833 = vld [vmem:[%s789 + $0xac] sm:$0xf]
  %v834 = vld [vmem:[%s789 + $0xb0] sm:$0xf]
  %v835 = vld [vmem:[%s789 + $0xb4] sm:$0xf]
  %v836 = vld [vmem:[%s789 + $0xb8] sm:$0xf]
  %v837 = vld [vmem:[%s789 + $0xbc] sm:$0xf]
  %v838 = vld [vmem:[%s789 + $0xc0] sm:$0xf]
  %v839 = vld [vmem:[%s789 + $0xc4] sm:$0xf]
  %v890 = vunpack.c.l.b16 %v790
  %v891 = vunpack.c.l.b16 %v791
  %v892 = vunpack.c.l.b16 %v792
  %v893 = vunpack.c.l.b16 %v793
  %v894 = vunpack.c.l.b16 %v794
  %v895 = vunpack.c.l.b16 %v795
  %v896 = vunpack.c.l.b16 %v796
  %v897 = vunpack.c.l.b16 %v797
  %v898 = vunpack.c.l.b16 %v798
  %v899 = vunpack.c.l.b16 %v799
  %v900 = vunpack.c.l.b16 %v800
  %v901 = vunpack.c.l.b16 %v801
  %v902 = vunpack.c.l.b16 %v802
  %v903 = vunpack.c.l.b16 %v803
  %v904 = vunpack.c.l.b16 %v804
  %v905 = vunpack.c.l.b16 %v805
  %v906 = vunpack.c.l.b16 %v806
  %v907 = vunpack.c.l.b16 %v807
  %v908 = vunpack.c.l.b16 %v808
  %v909 = vunpack.c.l.b16 %v809
  %v910 = vunpack.c.l.b16 %v810
  %v911 = vunpack.c.l.b16 %v811
  %v912 = vunpack.c.l.b16 %v812
  %v913 = vunpack.c.l.b16 %v813
  %v914 = vunpack.c.l.b16 %v814
  %v915 = vunpack.c.l.b16 %v815
  %v916 = vunpack.c.l.b16 %v816
  %v917 = vunpack.c.l.b16 %v817
  %v918 = vunpack.c.l.b16 %v818
  %v919 = vunpack.c.l.b16 %v819
  %v920 = vunpack.c.l.b16 %v820
  %v921 = vunpack.c.l.b16 %v821
  %v922 = vunpack.c.l.b16 %v822
  %v923 = vunpack.c.l.b16 %v823
  %v924 = vunpack.c.l.b16 %v824
  %v925 = vunpack.c.l.b16 %v825
  %v926 = vunpack.c.l.b16 %v826
  %v927 = vunpack.c.l.b16 %v827
  %v928 = vunpack.c.l.b16 %v828
  %v929 = vunpack.c.l.b16 %v829
  %v930 = vunpack.c.l.b16 %v830
  %v931 = vunpack.c.l.b16 %v831
  %v932 = vunpack.c.l.b16 %v832
  %v933 = vunpack.c.l.b16 %v833
  %v934 = vunpack.c.l.b16 %v834
  %v935 = vunpack.c.l.b16 %v835
  %v936 = vunpack.c.l.b16 %v836
  %v937 = vunpack.c.l.b16 %v837
  %v938 = vunpack.c.l.b16 %v838
  %v939 = vunpack.c.l.b16 %v839
  %v940 = vpack.c.b16 %v891, %v890
  %v941 = vpack.c.b16 %v893, %v892
  %v942 = vpack.c.b16 %v895, %v894
  %v943 = vpack.c.b16 %v897, %v896
  %v944 = vpack.c.b16 %v899, %v898
  %v945 = vpack.c.b16 %v901, %v900
  %v946 = vpack.c.b16 %v903, %v902
  %v947 = vpack.c.b16 %v905, %v904
  %v948 = vpack.c.b16 %v907, %v906
  %v949 = vpack.c.b16 %v909, %v908
  %v950 = vpack.c.b16 %v911, %v910
  %v951 = vpack.c.b16 %v913, %v912
  %v952 = vpack.c.b16 %v915, %v914
  %v953 = vpack.c.b16 %v917, %v916
  %v954 = vpack.c.b16 %v919, %v918
  %v955 = vpack.c.b16 %v921, %v920
  %v956 = vpack.c.b16 %v923, %v922
  %v957 = vpack.c.b16 %v925, %v924
  %v958 = vpack.c.b16 %v927, %v926
  %v959 = vpack.c.b16 %v929, %v928
  %v960 = vpack.c.b16 %v931, %v930
  %v961 = vpack.c.b16 %v933, %v932
  %v962 = vpack.c.b16 %v935, %v934
  %v963 = vpack.c.b16 %v937, %v936
  %v964 = vpack.c.b16 %v939, %v938
  %990 = vmatprep.subr.bf16.mxu0 0
  %991 = vmatpush1.bf16.msra.mxu0 %v947
  %992 = vmatprep.subr.bf16.mxu0 0
  %993 = vmatpush1.bf16.msra.mxu0 %v946
  %994 = vmatprep.subr.bf16.mxu0 0
  %995 = vmatpush1.bf16.msra.mxu0 %v945
  %996 = vmatprep.subr.bf16.mxu0 0
  %997 = vmatpush1.bf16.msra.mxu0 %v944
  %998 = vmatprep.subr.bf16.mxu0 0
  %999 = vmatpush1.bf16.msra.mxu0 %v943
  %1000 = vmatprep.subr.bf16.mxu0 0
  %1001 = vmatpush1.bf16.msra.mxu0 %v942
  %1002 = vmatprep.subr.bf16.mxu0 0
  %1003 = vmatpush1.bf16.msra.mxu0 %v941
  %1004 = vmatprep.subr.bf16.mxu0 0
  %1005 = vmatpush1.bf16.msra.mxu0 %v940
  %1006 = vmatprep.subr.bf16.mxu0 0
  %1007 = vmatpush2.bf16.msra.mxu0 %v955
  %1008 = vmatprep.subr.bf16.mxu0 0
  %1009 = vmatpush2.bf16.msra.mxu0 %v954
  %1010 = vmatprep.subr.bf16.mxu0 0
  %1011 = vmatpush2.bf16.msra.mxu0 %v953
  %1012 = vmatprep.subr.bf16.mxu0 0
  %1013 = vmatpush2.bf16.msra.mxu0 %v952
  %1014 = vmatprep.subr.bf16.mxu0 0
  %1015 = vmatpush2.bf16.msra.mxu0 %v951
  %1016 = vmatprep.subr.bf16.mxu0 0
  %1017 = vmatpush2.bf16.msra.mxu0 %v950
  %1018 = vmatprep.subr.bf16.mxu0 0
  %1019 = vmatpush2.bf16.msra.mxu0 %v949
  %1020 = vmatprep.subr.bf16.mxu0 0
  %1021 = vmatpush2.bf16.msra.mxu0 %v948
  %1022 = vmatprep.mubr.bf16.mxu0 %v130
  %1023 = vmatmul.mubr.bf16.gmra.mxu0 %v129
  %v1024 = vpop.f32.mrf.mxu0
  %v1025 = vadd.f32 0.0, %v1024
  %v1026 = vpop.f32.mrf.mxu0
  %v1027 = vpop.f32.mrf.mxu0
  %v1028 = vadd.f32 0.0, %v1027
  %v1029 = vpop.f32.mrf.mxu0
  %1030 = vmatprep.mubr.bf16.mxu0 %v134
  %1031 = vmatmul.mubr.bf16.gmra.mxu0 %v133
  %v1032 = vpop.f32.mrf.mxu0
  %v1033 = vadd.f32 0.0, %v1032
  %v1034 = vpop.f32.mrf.mxu0
  %v1035 = vpop.f32.mrf.mxu0
  %v1036 = vadd.f32 0.0, %v1035
  %v1037 = vpop.f32.mrf.mxu0
  %1038 = vmatprep.mubr.bf16.mxu0 %v138
  %1039 = vmatmul.mubr.bf16.gmra.mxu0 %v137
  %v1040 = vpop.f32.mrf.mxu0
  %v1041 = vadd.f32 0.0, %v1040
  %v1042 = vpop.f32.mrf.mxu0
  %v1043 = vpop.f32.mrf.mxu0
  %v1044 = vadd.f32 0.0, %v1043
  %v1045 = vpop.f32.mrf.mxu0
  %1046 = vmatprep.mubr.bf16.mxu0 %v142
  %1047 = vmatmul.mubr.bf16.gmra.mxu0 %v141
  %v1048 = vpop.f32.mrf.mxu0
  %v1049 = vadd.f32 0.0, %v1048
  %v1050 = vpop.f32.mrf.mxu0
  %v1051 = vpop.f32.mrf.mxu0
  %v1052 = vadd.f32 0.0, %v1051
  %v1053 = vpop.f32.mrf.mxu0
  %1054 = vdwg.mxu0
  %1055 = vmatprep.subr.bf16.mxu0 0
  %1056 = vmatpush1.bf16.msra.mxu0 %v963
  %1057 = vmatprep.subr.bf16.mxu0 0
  %1058 = vmatpush1.bf16.msra.mxu0 %v962
  %1059 = vmatprep.subr.bf16.mxu0 0
  %1060 = vmatpush1.bf16.msra.mxu0 %v961
  %1061 = vmatprep.subr.bf16.mxu0 0
  %1062 = vmatpush1.bf16.msra.mxu0 %v960
  %1063 = vmatprep.subr.bf16.mxu0 0
  %1064 = vmatpush1.bf16.msra.mxu0 %v959
  %1065 = vmatprep.subr.bf16.mxu0 0
  %1066 = vmatpush1.bf16.msra.mxu0 %v958
  %1067 = vmatprep.subr.bf16.mxu0 0
  %1068 = vmatpush1.bf16.msra.mxu0 %v957
  %1069 = vmatprep.subr.bf16.mxu0 0
  %1070 = vmatpush1.bf16.msra.mxu0 %v956
  %1071 = vmatprep.subr.bf16.mxu0 0
  %1072 = vmatpush2.bf16.msra.mxu0 0
  %1073 = vmatprep.subr.bf16.mxu0 0
  %1074 = vmatpush2.bf16.msra.mxu0 0
  %1075 = vmatprep.subr.bf16.mxu0 0
  %1076 = vmatpush2.bf16.msra.mxu0 0
  %1077 = vmatprep.subr.bf16.mxu0 0
  %1078 = vmatpush2.bf16.msra.mxu0 0
  %1079 = vmatprep.subr.bf16.mxu0 0
  %1080 = vmatpush2.bf16.msra.mxu0 0
  %1081 = vmatprep.subr.bf16.mxu0 0
  %1082 = vmatpush2.bf16.msra.mxu0 0
  %1083 = vmatprep.subr.bf16.mxu0 0
  %1084 = vmatpush2.bf16.msra.mxu0 0
  %1085 = vmatprep.subr.bf16.mxu0 0
  %1086 = vmatpush2.bf16.msra.mxu0 %v964
  %1087 = vmatprep.mubr.bf16.mxu0 %v309
  %1088 = vmatmul.mubr.bf16.gmra.mxu0 %v131
  %v1089 = vpop.f32.mrf.mxu0
  %v1090 = vadd.f32 %v1025, %v1089
  %v1091 = vpop.f32.mrf.mxu0
  %v1092 = vpop.f32.mrf.mxu0
  %v1093 = vadd.f32 %v1028, %v1092
  %v1094 = vpop.f32.mrf.mxu0
  %1095 = vmatprep.mubr.bf16.mxu0 %v312
  %1096 = vmatmul.mubr.bf16.gmra.mxu0 %v135
  %v1097 = vpop.f32.mrf.mxu0
  %v1098 = vadd.f32 %v1033, %v1097
  %v1099 = vpop.f32.mrf.mxu0
  %v1100 = vpop.f32.mrf.mxu0
  %v1101 = vadd.f32 %v1036, %v1100
  %v1102 = vpop.f32.mrf.mxu0
  %1103 = vmatprep.mubr.bf16.mxu0 %v315
  %1104 = vmatmul.mubr.bf16.gmra.mxu0 %v139
  %v1105 = vpop.f32.mrf.mxu0
  %v1106 = vadd.f32 %v1041, %v1105
  %v1107 = vpop.f32.mrf.mxu0
  %v1108 = vpop.f32.mrf.mxu0
  %v1109 = vadd.f32 %v1044, %v1108
  %v1110 = vpop.f32.mrf.mxu0
  %1111 = vmatprep.mubr.bf16.mxu0 %v318
  %1112 = vmatmul.mubr.bf16.gmra.mxu0 %v143
  %v1113 = vpop.f32.mrf.mxu0
  %v1114 = vadd.f32 %v1049, %v1113
  %v1115 = vpop.f32.mrf.mxu0
  %v1116 = vpop.f32.mrf.mxu0
  %v1117 = vadd.f32 %v1052, %v1116
  %v1118 = vpop.f32.mrf.mxu0
  %1119 = vdwg.mxu0
  %v1120 = vmax.f32 %v781, %v1090
  %v1121 = vmax.f32 %v782, %v1093
  %v1122 = vmax.f32 %v783, %v1098
  %v1123 = vmax.f32 %v784, %v1101
  %v1124 = vmax.f32 %v785, %v1106
  %v1125 = vmax.f32 %v786, %v1109
  %v1126 = vmax.f32 %v787, %v1114
  %v1127 = vmax.f32 %v788, %v1117
  %s1128 = scalar_lea.vmem %s0, 600
  %v1129 = vld [vmem:[%s1128] sm:$0xf]
  %v1130 = vld [vmem:[%s1128 + $0x4] sm:$0xf]
  %v1131 = vld [vmem:[%s1128 + $0x8] sm:$0xf]
  %v1132 = vld [vmem:[%s1128 + $0xc] sm:$0xf]
  %v1133 = vld [vmem:[%s1128 + $0x10] sm:$0xf]
  %v1134 = vld [vmem:[%s1128 + $0x14] sm:$0xf]
  %v1135 = vld [vmem:[%s1128 + $0x18] sm:$0xf]
  %v1136 = vld [vmem:[%s1128 + $0x1c] sm:$0xf]
  %v1137 = vld [vmem:[%s1128 + $0x20] sm:$0xf]
  %v1138 = vld [vmem:[%s1128 + $0x24] sm:$0xf]
  %v1139 = vld [vmem:[%s1128 + $0x28] sm:$0xf]
  %v1140 = vld [vmem:[%s1128 + $0x2c] sm:$0xf]
  %v1141 = vld [vmem:[%s1128 + $0x30] sm:$0xf]
  %v1142 = vld [vmem:[%s1128 + $0x34] sm:$0xf]
  %v1143 = vld [vmem:[%s1128 + $0x38] sm:$0xf]
  %v1144 = vld [vmem:[%s1128 + $0x3c] sm:$0xf]
  %v1145 = vld [vmem:[%s1128 + $0x40] sm:$0xf]
  %v1146 = vld [vmem:[%s1128 + $0x44] sm:$0xf]
  %v1147 = vld [vmem:[%s1128 + $0x48] sm:$0xf]
  %v1148 = vld [vmem:[%s1128 + $0x4c] sm:$0xf]
  %v1149 = vld [vmem:[%s1128 + $0x50] sm:$0xf]
  %v1150 = vld [vmem:[%s1128 + $0x54] sm:$0xf]
  %v1151 = vld [vmem:[%s1128 + $0x58] sm:$0xf]
  %v1152 = vld [vmem:[%s1128 + $0x5c] sm:$0xf]
  %v1153 = vld [vmem:[%s1128 + $0x60] sm:$0xf]
  %v1154 = vld [vmem:[%s1128 + $0x64] sm:$0xf]
  %v1155 = vld [vmem:[%s1128 + $0x68] sm:$0xf]
  %v1156 = vld [vmem:[%s1128 + $0x6c] sm:$0xf]
  %v1157 = vld [vmem:[%s1128 + $0x70] sm:$0xf]
  %v1158 = vld [vmem:[%s1128 + $0x74] sm:$0xf]
  %v1159 = vld [vmem:[%s1128 + $0x78] sm:$0xf]
  %v1160 = vld [vmem:[%s1128 + $0x7c] sm:$0xf]
  %v1161 = vld [vmem:[%s1128 + $0x80] sm:$0xf]
  %v1162 = vld [vmem:[%s1128 + $0x84] sm:$0xf]
  %v1163 = vld [vmem:[%s1128 + $0x88] sm:$0xf]
  %v1164 = vld [vmem:[%s1128 + $0x8c] sm:$0xf]
  %v1165 = vld [vmem:[%s1128 + $0x90] sm:$0xf]
  %v1166 = vld [vmem:[%s1128 + $0x94] sm:$0xf]
  %v1167 = vld [vmem:[%s1128 + $0x98] sm:$0xf]
  %v1168 = vld [vmem:[%s1128 + $0x9c] sm:$0xf]
  %v1169 = vld [vmem:[%s1128 + $0xa0] sm:$0xf]
  %v1170 = vld [vmem:[%s1128 + $0xa4] sm:$0xf]
  %v1171 = vld [vmem:[%s1128 + $0xa8] sm:$0xf]
  %v1172 = vld [vmem:[%s1128 + $0xac] sm:$0xf]
  %v1173 = vld [vmem:[%s1128 + $0xb0] sm:$0xf]
  %v1174 = vld [vmem:[%s1128 + $0xb4] sm:$0xf]
  %v1175 = vld [vmem:[%s1128 + $0xb8] sm:$0xf]
  %v1176 = vld [vmem:[%s1128 + $0xbc] sm:$0xf]
  %v1177 = vld [vmem:[%s1128 + $0xc0] sm:$0xf]
  %v1178 = vld [vmem:[%s1128 + $0xc4] sm:$0xf]
  %v1229 = vunpack.c.l.b16 %v1129
  %v1230 = vunpack.c.l.b16 %v1130
  %v1231 = vunpack.c.l.b16 %v1131
  %v1232 = vunpack.c.l.b16 %v1132
  %v1233 = vunpack.c.l.b16 %v1133
  %v1234 = vunpack.c.l.b16 %v1134
  %v1235 = vunpack.c.l.b16 %v1135
  %v1236 = vunpack.c.l.b16 %v1136
  %v1237 = vunpack.c.l.b16 %v1137
  %v1238 = vunpack.c.l.b16 %v1138
  %v1239 = vunpack.c.l.b16 %v1139
  %v1240 = vunpack.c.l.b16 %v1140
  %v1241 = vunpack.c.l.b16 %v1141
  %v1242 = vunpack.c.l.b16 %v1142
  %v1243 = vunpack.c.l.b16 %v1143
  %v1244 = vunpack.c.l.b16 %v1144
  %v1245 = vunpack.c.l.b16 %v1145
  %v1246 = vunpack.c.l.b16 %v1146
  %v1247 = vunpack.c.l.b16 %v1147
  %v1248 = vunpack.c.l.b16 %v1148
  %v1249 = vunpack.c.l.b16 %v1149
  %v1250 = vunpack.c.l.b16 %v1150
  %v1251 = vunpack.c.l.b16 %v1151
  %v1252 = vunpack.c.l.b16 %v1152
  %v1253 = vunpack.c.l.b16 %v1153
  %v1254 = vunpack.c.l.b16 %v1154
  %v1255 = vunpack.c.l.b16 %v1155
  %v1256 = vunpack.c.l.b16 %v1156
  %v1257 = vunpack.c.l.b16 %v1157
  %v1258 = vunpack.c.l.b16 %v1158
  %v1259 = vunpack.c.l.b16 %v1159
  %v1260 = vunpack.c.l.b16 %v1160
  %v1261 = vunpack.c.l.b16 %v1161
  %v1262 = vunpack.c.l.b16 %v1162
  %v1263 = vunpack.c.l.b16 %v1163
  %v1264 = vunpack.c.l.b16 %v1164
  %v1265 = vunpack.c.l.b16 %v1165
  %v1266 = vunpack.c.l.b16 %v1166
  %v1267 = vunpack.c.l.b16 %v1167
  %v1268 = vunpack.c.l.b16 %v1168
  %v1269 = vunpack.c.l.b16 %v1169
  %v1270 = vunpack.c.l.b16 %v1170
  %v1271 = vunpack.c.l.b16 %v1171
  %v1272 = vunpack.c.l.b16 %v1172
  %v1273 = vunpack.c.l.b16 %v1173
  %v1274 = vunpack.c.l.b16 %v1174
  %v1275 = vunpack.c.l.b16 %v1175
  %v1276 = vunpack.c.l.b16 %v1176
  %v1277 = vunpack.c.l.b16 %v1177
  %v1278 = vunpack.c.l.b16 %v1178
  %v1279 = vpack.c.b16 %v1230, %v1229
  %v1280 = vpack.c.b16 %v1232, %v1231
  %v1281 = vpack.c.b16 %v1234, %v1233
  %v1282 = vpack.c.b16 %v1236, %v1235
  %v1283 = vpack.c.b16 %v1238, %v1237
  %v1284 = vpack.c.b16 %v1240, %v1239
  %v1285 = vpack.c.b16 %v1242, %v1241
  %v1286 = vpack.c.b16 %v1244, %v1243
  %v1287 = vpack.c.b16 %v1246, %v1245
  %v1288 = vpack.c.b16 %v1248, %v1247
  %v1289 = vpack.c.b16 %v1250, %v1249
  %v1290 = vpack.c.b16 %v1252, %v1251
  %v1291 = vpack.c.b16 %v1254, %v1253
  %v1292 = vpack.c.b16 %v1256, %v1255
  %v1293 = vpack.c.b16 %v1258, %v1257
  %v1294 = vpack.c.b16 %v1260, %v1259
  %v1295 = vpack.c.b16 %v1262, %v1261
  %v1296 = vpack.c.b16 %v1264, %v1263
  %v1297 = vpack.c.b16 %v1266, %v1265
  %v1298 = vpack.c.b16 %v1268, %v1267
  %v1299 = vpack.c.b16 %v1270, %v1269
  %v1300 = vpack.c.b16 %v1272, %v1271
  %v1301 = vpack.c.b16 %v1274, %v1273
  %v1302 = vpack.c.b16 %v1276, %v1275
  %v1303 = vpack.c.b16 %v1278, %v1277
  %1329 = vmatprep.subr.bf16.mxu0 0
  %1330 = vmatpush1.bf16.msra.mxu0 %v1286
  %1331 = vmatprep.subr.bf16.mxu0 0
  %1332 = vmatpush1.bf16.msra.mxu0 %v1285
  %1333 = vmatprep.subr.bf16.mxu0 0
  %1334 = vmatpush1.bf16.msra.mxu0 %v1284
  %1335 = vmatprep.subr.bf16.mxu0 0
  %1336 = vmatpush1.bf16.msra.mxu0 %v1283
  %1337 = vmatprep.subr.bf16.mxu0 0
  %1338 = vmatpush1.bf16.msra.mxu0 %v1282
  %1339 = vmatprep.subr.bf16.mxu0 0
  %1340 = vmatpush1.bf16.msra.mxu0 %v1281
  %1341 = vmatprep.subr.bf16.mxu0 0
  %1342 = vmatpush1.bf16.msra.mxu0 %v1280
  %1343 = vmatprep.subr.bf16.mxu0 0
  %1344 = vmatpush1.bf16.msra.mxu0 %v1279
  %1345 = vmatprep.subr.bf16.mxu0 0
  %1346 = vmatpush2.bf16.msra.mxu0 %v1294
  %1347 = vmatprep.subr.bf16.mxu0 0
  %1348 = vmatpush2.bf16.msra.mxu0 %v1293
  %1349 = vmatprep.subr.bf16.mxu0 0
  %1350 = vmatpush2.bf16.msra.mxu0 %v1292
  %1351 = vmatprep.subr.bf16.mxu0 0
  %1352 = vmatpush2.bf16.msra.mxu0 %v1291
  %1353 = vmatprep.subr.bf16.mxu0 0
  %1354 = vmatpush2.bf16.msra.mxu0 %v1290
  %1355 = vmatprep.subr.bf16.mxu0 0
  %1356 = vmatpush2.bf16.msra.mxu0 %v1289
  %1357 = vmatprep.subr.bf16.mxu0 0
  %1358 = vmatpush2.bf16.msra.mxu0 %v1288
  %1359 = vmatprep.subr.bf16.mxu0 0
  %1360 = vmatpush2.bf16.msra.mxu0 %v1287
  %1361 = vmatprep.mubr.bf16.mxu0 %v130
  %1362 = vmatmul.mubr.bf16.gmra.mxu0 %v129
  %v1363 = vpop.f32.mrf.mxu0
  %v1364 = vadd.f32 0.0, %v1363
  %v1365 = vpop.f32.mrf.mxu0
  %v1366 = vpop.f32.mrf.mxu0
  %v1367 = vadd.f32 0.0, %v1366
  %v1368 = vpop.f32.mrf.mxu0
  %1369 = vmatprep.mubr.bf16.mxu0 %v134
  %1370 = vmatmul.mubr.bf16.gmra.mxu0 %v133
  %v1371 = vpop.f32.mrf.mxu0
  %v1372 = vadd.f32 0.0, %v1371
  %v1373 = vpop.f32.mrf.mxu0
  %v1374 = vpop.f32.mrf.mxu0
  %v1375 = vadd.f32 0.0, %v1374
  %v1376 = vpop.f32.mrf.mxu0
  %1377 = vmatprep.mubr.bf16.mxu0 %v138
  %1378 = vmatmul.mubr.bf16.gmra.mxu0 %v137
  %v1379 = vpop.f32.mrf.mxu0
  %v1380 = vadd.f32 0.0, %v1379
  %v1381 = vpop.f32.mrf.mxu0
  %v1382 = vpop.f32.mrf.mxu0
  %v1383 = vadd.f32 0.0, %v1382
  %v1384 = vpop.f32.mrf.mxu0
  %1385 = vmatprep.mubr.bf16.mxu0 %v142
  %1386 = vmatmul.mubr.bf16.gmra.mxu0 %v141
  %v1387 = vpop.f32.mrf.mxu0
  %v1388 = vadd.f32 0.0, %v1387
  %v1389 = vpop.f32.mrf.mxu0
  %v1390 = vpop.f32.mrf.mxu0
  %v1391 = vadd.f32 0.0, %v1390
  %v1392 = vpop.f32.mrf.mxu0
  %1393 = vdwg.mxu0
  %1394 = vmatprep.subr.bf16.mxu0 0
  %1395 = vmatpush1.bf16.msra.mxu0 %v1302
  %1396 = vmatprep.subr.bf16.mxu0 0
  %1397 = vmatpush1.bf16.msra.mxu0 %v1301
  %1398 = vmatprep.subr.bf16.mxu0 0
  %1399 = vmatpush1.bf16.msra.mxu0 %v1300
  %1400 = vmatprep.subr.bf16.mxu0 0
  %1401 = vmatpush1.bf16.msra.mxu0 %v1299
  %1402 = vmatprep.subr.bf16.mxu0 0
  %1403 = vmatpush1.bf16.msra.mxu0 %v1298
  %1404 = vmatprep.subr.bf16.mxu0 0
  %1405 = vmatpush1.bf16.msra.mxu0 %v1297
  %1406 = vmatprep.subr.bf16.mxu0 0
  %1407 = vmatpush1.bf16.msra.mxu0 %v1296
  %1408 = vmatprep.subr.bf16.mxu0 0
  %1409 = vmatpush1.bf16.msra.mxu0 %v1295
  %1410 = vmatprep.subr.bf16.mxu0 0
  %1411 = vmatpush2.bf16.msra.mxu0 0
  %1412 = vmatprep.subr.bf16.mxu0 0
  %1413 = vmatpush2.bf16.msra.mxu0 0
  %1414 = vmatprep.subr.bf16.mxu0 0
  %1415 = vmatpush2.bf16.msra.mxu0 0
  %1416 = vmatprep.subr.bf16.mxu0 0
  %1417 = vmatpush2.bf16.msra.mxu0 0
  %1418 = vmatprep.subr.bf16.mxu0 0
  %1419 = vmatpush2.bf16.msra.mxu0 0
  %1420 = vmatprep.subr.bf16.mxu0 0
  %1421 = vmatpush2.bf16.msra.mxu0 0
  %1422 = vmatprep.subr.bf16.mxu0 0
  %1423 = vmatpush2.bf16.msra.mxu0 0
  %1424 = vmatprep.subr.bf16.mxu0 0
  %1425 = vmatpush2.bf16.msra.mxu0 %v1303
  %1426 = vmatprep.mubr.bf16.mxu0 %v309
  %1427 = vmatmul.mubr.bf16.gmra.mxu0 %v131
  %v1428 = vpop.f32.mrf.mxu0
  %v1429 = vadd.f32 %v1364, %v1428
  %v1430 = vpop.f32.mrf.mxu0
  %v1431 = vpop.f32.mrf.mxu0
  %v1432 = vadd.f32 %v1367, %v1431
  %v1433 = vpop.f32.mrf.mxu0
  %1434 = vmatprep.mubr.bf16.mxu0 %v312
  %1435 = vmatmul.mubr.bf16.gmra.mxu0 %v135
  %v1436 = vpop.f32.mrf.mxu0
  %v1437 = vadd.f32 %v1372, %v1436
  %v1438 = vpop.f32.mrf.mxu0
  %v1439 = vpop.f32.mrf.mxu0
  %v1440 = vadd.f32 %v1375, %v1439
  %v1441 = vpop.f32.mrf.mxu0
  %1442 = vmatprep.mubr.bf16.mxu0 %v315
  %1443 = vmatmul.mubr.bf16.gmra.mxu0 %v139
  %v1444 = vpop.f32.mrf.mxu0
  %v1445 = vadd.f32 %v1380, %v1444
  %v1446 = vpop.f32.mrf.mxu0
  %v1447 = vpop.f32.mrf.mxu0
  %v1448 = vadd.f32 %v1383, %v1447
  %v1449 = vpop.f32.mrf.mxu0
  %1450 = vmatprep.mubr.bf16.mxu0 %v318
  %1451 = vmatmul.mubr.bf16.gmra.mxu0 %v143
  %v1452 = vpop.f32.mrf.mxu0
  %v1453 = vadd.f32 %v1388, %v1452
  %v1454 = vpop.f32.mrf.mxu0
  %v1455 = vpop.f32.mrf.mxu0
  %v1456 = vadd.f32 %v1391, %v1455
  %v1457 = vpop.f32.mrf.mxu0
  %1458 = vdwg.mxu0
  %v1459 = vmax.f32 %v1120, %v1429
  %v1460 = vmax.f32 %v1121, %v1432
  %v1461 = vmax.f32 %v1122, %v1437
  %v1462 = vmax.f32 %v1123, %v1440
  %v1463 = vmax.f32 %v1124, %v1445
  %v1464 = vmax.f32 %v1125, %v1448
  %v1465 = vmax.f32 %v1126, %v1453
  %v1466 = vmax.f32 %v1127, %v1456
  %v1467 = vld [vmem:[%s2] sm:$0xff]
  %v1468 = vld [vmem:[%s2 + $0x8] sm:$0xff]
  %v1469 = vld [vmem:[%s2 + $0x10] sm:$0xff]
  %v1470 = vld [vmem:[%s2 + $0x18] sm:$0xff]
  %v1471 = vld [vmem:[%s2 + $0x20] sm:$0xff]
  %v1472 = vld [vmem:[%s2 + $0x28] sm:$0xff]
  %v1473 = vld [vmem:[%s2 + $0x30] sm:$0xff]
  %v1474 = vld [vmem:[%s2 + $0x38] sm:$0xff]
  %1476 = vset.pattern.permute.xlu0 0
  %1477 = vperm.xlu0 %1476, %v1467
  %v1478 = vpop.permute.xlu0 %1477
  %1481 = vset.pattern.permute.xlu0 0
  %1482 = vperm.xlu0 %1481, %v1468
  %v1483 = vpop.permute.xlu0 %1482
  %1486 = vset.pattern.permute.xlu0 0
  %1487 = vperm.xlu0 %1486, %v1469
  %v1488 = vpop.permute.xlu0 %1487
  %1491 = vset.pattern.permute.xlu0 0
  %1492 = vperm.xlu0 %1491, %v1470
  %v1493 = vpop.permute.xlu0 %1492
  %1496 = vset.pattern.permute.xlu0 0
  %1497 = vperm.xlu0 %1496, %v1471
  %v1498 = vpop.permute.xlu0 %1497
  %1501 = vset.pattern.permute.xlu0 0
  %1502 = vperm.xlu0 %1501, %v1472
  %v1503 = vpop.permute.xlu0 %1502
  %1506 = vset.pattern.permute.xlu0 0
  %1507 = vperm.xlu0 %1506, %v1473
  %v1508 = vpop.permute.xlu0 %1507
  %1511 = vset.pattern.permute.xlu0 0
  %1512 = vperm.xlu0 %1511, %v1474
  %v1513 = vpop.permute.xlu0 %1512
  %v1515 = vadd.f32 %v1459, %v1478
  %v1516 = vadd.f32 %v1460, %v1483
  %v1517 = vadd.f32 %v1461, %v1488
  %v1518 = vadd.f32 %v1462, %v1493
  %v1519 = vadd.f32 %v1463, %v1498
  %v1520 = vadd.f32 %v1464, %v1503
  %v1521 = vadd.f32 %v1465, %v1508
  %v1522 = vadd.f32 %v1466, %v1513
  %v1523 = vmax.f32 %v1515, 0.0
  %v1524 = vmax.f32 %v1516, 0.0
  %v1525 = vmax.f32 %v1517, 0.0
  %v1526 = vmax.f32 %v1518, 0.0
  %v1527 = vmax.f32 %v1519, 0.0
  %v1528 = vmax.f32 %v1520, 0.0
  %v1529 = vmax.f32 %v1521, 0.0
  %v1530 = vmax.f32 %v1522, 0.0
  %v1531 = vpack.c.bf16 %v1524, %v1523
  %v1532 = vpack.c.bf16 %v1526, %v1525
  %v1533 = vpack.c.bf16 %v1528, %v1527
  %v1534 = vpack.c.bf16 %v1530, %v1529
  %v1539 = vunpack.c.l.b16 %v1531
  %v1540 = vunpack.c.h.b16 %v1531
  %v1541 = vunpack.c.l.b16 %v1532
  %v1542 = vunpack.c.h.b16 %v1532
  %v1543 = vunpack.c.l.b16 %v1533
  %v1544 = vunpack.c.h.b16 %v1533
  %v1545 = vunpack.c.l.b16 %v1534
  %v1546 = vunpack.c.h.b16 %v1534
  %v1547 = vpack.c.b16 %v1539, %v1539
  %v1548 = vpack.c.b16 %v1540, %v1540
  %v1549 = vpack.c.b16 %v1541, %v1541
  %v1550 = vpack.c.b16 %v1542, %v1542
  %v1551 = vpack.c.b16 %v1543, %v1543
  %v1552 = vpack.c.b16 %v1544, %v1544
  %v1553 = vpack.c.b16 %v1545, %v1545
  %v1554 = vpack.c.b16 %v1546, %v1546
  %vm1563 = vcmask 257024
  %1564 = vst.msk [vmem:[%s3] sm:$0xf] %vm1563, %v1547
  %1565 = vst.msk [vmem:[%s3 + $0x4] sm:$0xf] %vm1563, %v1548
  %1566 = vst.msk [vmem:[%s3 + $0x8] sm:$0xf] %vm1563, %v1549
  %1567 = vst.msk [vmem:[%s3 + $0xc] sm:$0xf] %vm1563, %v1550
  %1568 = vst.msk [vmem:[%s3 + $0x10] sm:$0xf] %vm1563, %v1551
  %1569 = vst.msk [vmem:[%s3 + $0x14] sm:$0xf] %vm1563, %v1552
  %1570 = vst.msk [vmem:[%s3 + $0x18] sm:$0xf] %vm1563, %v1553
  %1571 = vst.msk [vmem:[%s3 + $0x1c] sm:$0xf] %vm1563, %v1554
  // Predicated region
  $region14: #{target_forward.4} parent=0 // pred_check
    _
  $region15: #{target_forward.4} parent=0 // pred_check_branch
    %1573 = sbr.rel (0) target = $region17
  $region16: #{target_forward.4} parent=0 // pred_region
    _
  $region17: #{target_forward.4} parent=0 // pred_fallthru
    _
  // Predicated region
  $region18: #{target_forward.4} parent=0 // pred_check
    _
  $region19: #{target_forward.4} parent=0 // pred_check_branch
    %1575 = sbr.rel (0) target = $region21
  $region20: #{target_forward.4} parent=0 // pred_region
    _
  $region21: #{target_forward.4} parent=0 // pred_fallthru
    _

// kernel: target_forward.5
$region0: #{target_forward.5}
  #allocation0 [shape = 'u32[]', space=smem, size = 0x4, offset = 0x4, fixed_abs, tag = 'smem constant byte address 0x4 - core index']
  #allocation1 [shape = 'u32[144,128]{1,0:T(1,128)}', space=vmem, size = 0x12000, scoped, tag = 'internal scratch']
  %s0 = inlined_call_operand.vmem [shape: bf16[4,2,1600], index: 0, kind: input, shape index: {}]
  %s1 = inlined_call_operand.vmem [shape: bf16[1600,8], index: 1, kind: input, shape index: {}]
  %s2 = inlined_call_operand.vmem [shape: f32[1,8], index: 2, kind: input, shape index: {}]
  %s3 = inlined_call_operand.vmem [shape: f32[4,8,2], index: 3, kind: input, shape index: {}]
  %s4 = inlined_call_operand.vmem [shape: f32[1,2], index: 4, kind: input, shape index: {}]
  %s5 = inlined_call_operand.hbm [shape: f32[2,2], index: 5, kind: output, shape index: {}]
  %s6 = sld [smem:[#allocation0]]
  $region30: #{target_forward.5} parent=0
    _
  %s8 = ssub.s32 1, %s6
  %s9 = scalar_select 0, %s8, %s6
  $region1: #{target_forward.5} parent=0
    #allocation2 [shape = 'u8[1024]{0}', space=vmem, size = 0x400, scoped, tag = 'output window, operand 0, single buffered']
    #allocation3 [shape = 's32[1]{0}', space=sflag, size = 0x4, scoped, tag = 'scoped memory for target_forward.5']
    %10 = vsyncpa [#allocation3], 0
    // Predicated region
    $region2: #{target_forward.5} parent=1 // pred_check
      _
    $region3: #{target_forward.5} parent=1 // pred_check_branch
      %12 = sbr.rel (0) target = $region5
    $region4: #{target_forward.5} parent=1 // pred_region
      _
    $region5: #{target_forward.5} parent=1 // pred_fallthru
      _
    // Predicated region
    $region6: #{target_forward.5} parent=1 // pred_check
      _
    $region7: #{target_forward.5} parent=1 // pred_check_branch
      %14 = sbr.rel (0) target = $region9
    $region8: #{target_forward.5} parent=1 // pred_region
      _
    $region9: #{target_forward.5} parent=1 // pred_fallthru
      _
    // Predicated region
    $region10: #{target_forward.5} parent=1 // pred_check
      _
    $region11: #{target_forward.5} parent=1 // pred_check_branch
      %16 = sbr.rel (0) target = $region13
    $region12: #{target_forward.5} parent=1 // pred_region
      _
    $region13: #{target_forward.5} parent=1 // pred_fallthru
      _
    // Predicated region
    $region14: #{target_forward.5} parent=1 // pred_check
      _
    $region15: #{target_forward.5} parent=1 // pred_check_branch
      %18 = sbr.rel (0) target = $region17
    $region16: #{target_forward.5} parent=1 // pred_region
      _
    $region17: #{target_forward.5} parent=1 // pred_fallthru
      _
    // Predicated region
    $region18: #{target_forward.5} parent=1 // pred_check
      _
    $region19: #{target_forward.5} parent=1 // pred_check_branch
      %20 = sbr.rel (0) target = $region21
    $region20: #{target_forward.5} parent=1 // pred_region
      _
    $region21: #{target_forward.5} parent=1 // pred_fallthru
      _
    %v22 = vld [vmem:[%s0] sm:$0xff]
    %v23 = vld [vmem:[%s0 + $0x8] sm:$0x1f]
    %v24 = vld [vmem:[%s1] sm:$0xf]
    %v25 = vld [vmem:[%s1 + $0x4] sm:$0xf]
    %v26 = vld [vmem:[%s1 + $0x8] sm:$0xf]
    %v27 = vld [vmem:[%s1 + $0xc] sm:$0xf]
    %v28 = vld [vmem:[%s1 + $0x10] sm:$0xf]
    %v29 = vld [vmem:[%s1 + $0x14] sm:$0xf]
    %v30 = vld [vmem:[%s1 + $0x18] sm:$0xf]
    %v31 = vld [vmem:[%s1 + $0x1c] sm:$0xf]
    %v32 = vld [vmem:[%s1 + $0x20] sm:$0xf]
    %v33 = vld [vmem:[%s1 + $0x24] sm:$0xf]
    %v34 = vld [vmem:[%s1 + $0x28] sm:$0xf]
    %v35 = vld [vmem:[%s1 + $0x2c] sm:$0xf]
    %v36 = vld [vmem:[%s1 + $0x30] sm:$0xf]
    %v37 = vld [vmem:[%s1 + $0x34] sm:$0xf]
    %v38 = vld [vmem:[%s1 + $0x38] sm:$0xf]
    %v39 = vld [vmem:[%s1 + $0x3c] sm:$0xf]
    %v40 = vld [vmem:[%s1 + $0x40] sm:$0xf]
    %v41 = vld [vmem:[%s1 + $0x44] sm:$0xf]
    %v42 = vld [vmem:[%s1 + $0x48] sm:$0xf]
    %v43 = vld [vmem:[%s1 + $0x4c] sm:$0xf]
    %v44 = vld [vmem:[%s1 + $0x50] sm:$0xf]
    %v45 = vld [vmem:[%s1 + $0x54] sm:$0xf]
    %v46 = vld [vmem:[%s1 + $0x58] sm:$0xf]
    %v47 = vld [vmem:[%s1 + $0x5c] sm:$0xf]
    %v48 = vld [vmem:[%s1 + $0x60] sm:$0xf]
    %v49 = vld [vmem:[%s1 + $0x64] sm:$0xf]
    %v50 = vld [vmem:[%s1 + $0x68] sm:$0xf]
    %v51 = vld [vmem:[%s1 + $0x6c] sm:$0xf]
    %v52 = vld [vmem:[%s1 + $0x70] sm:$0xf]
    %v53 = vld [vmem:[%s1 + $0x74] sm:$0xf]
    %v54 = vld [vmem:[%s1 + $0x78] sm:$0xf]
    %v55 = vld [vmem:[%s1 + $0x7c] sm:$0xf]
    %v56 = vld [vmem:[%s1 + $0x80] sm:$0xf]
    %v57 = vld [vmem:[%s1 + $0x84] sm:$0xf]
    %v58 = vld [vmem:[%s1 + $0x88] sm:$0xf]
    %v59 = vld [vmem:[%s1 + $0x8c] sm:$0xf]
    %v60 = vld [vmem:[%s1 + $0x90] sm:$0xf]
    %v61 = vld [vmem:[%s1 + $0x94] sm:$0xf]
    %v62 = vld [vmem:[%s1 + $0x98] sm:$0xf]
    %v63 = vld [vmem:[%s1 + $0x9c] sm:$0xf]
    %v64 = vld [vmem:[%s1 + $0xa0] sm:$0xf]
    %v65 = vld [vmem:[%s1 + $0xa4] sm:$0xf]
    %v66 = vld [vmem:[%s1 + $0xa8] sm:$0xf]
    %v67 = vld [vmem:[%s1 + $0xac] sm:$0xf]
    %v68 = vld [vmem:[%s1 + $0xb0] sm:$0xf]
    %v69 = vld [vmem:[%s1 + $0xb4] sm:$0xf]
    %v70 = vld [vmem:[%s1 + $0xb8] sm:$0xf]
    %v71 = vld [vmem:[%s1 + $0xbc] sm:$0xf]
    %v72 = vld [vmem:[%s1 + $0xc0] sm:$0xf]
    %v73 = vld [vmem:[%s1 + $0xc4] sm:$0xf]
    %v74 = vld [vmem:[%s1 + $0xc8] sm:$0xf]
    %v75 = vld [vmem:[%s1 + $0xcc] sm:$0xf]
    %v76 = vld [vmem:[%s1 + $0xd0] sm:$0xf]
    %v77 = vld [vmem:[%s1 + $0xd4] sm:$0xf]
    %v78 = vld [vmem:[%s1 + $0xd8] sm:$0xf]
    %v79 = vld [vmem:[%s1 + $0xdc] sm:$0xf]
    %v80 = vld [vmem:[%s1 + $0xe0] sm:$0xf]
    %v81 = vld [vmem:[%s1 + $0xe4] sm:$0xf]
    %v82 = vld [vmem:[%s1 + $0xe8] sm:$0xf]
    %v83 = vld [vmem:[%s1 + $0xec] sm:$0xf]
    %v84 = vld [vmem:[%s1 + $0xf0] sm:$0xf]
    %v85 = vld [vmem:[%s1 + $0xf4] sm:$0xf]
    %v86 = vld [vmem:[%s1 + $0xf8] sm:$0xf]
    %v87 = vld [vmem:[%s1 + $0xfc] sm:$0xf]
    %v88 = vld [vmem:[%s1 + $0x100] sm:$0xf]
    %v89 = vld [vmem:[%s1 + $0x104] sm:$0xf]
    %v90 = vld [vmem:[%s1 + $0x108] sm:$0xf]
    %v91 = vld [vmem:[%s1 + $0x10c] sm:$0xf]
    %v92 = vld [vmem:[%s1 + $0x110] sm:$0xf]
    %v93 = vld [vmem:[%s1 + $0x114] sm:$0xf]
    %v94 = vld [vmem:[%s1 + $0x118] sm:$0xf]
    %v95 = vld [vmem:[%s1 + $0x11c] sm:$0xf]
    %v96 = vld [vmem:[%s1 + $0x120] sm:$0xf]
    %v97 = vld [vmem:[%s1 + $0x124] sm:$0xf]
    %v98 = vld [vmem:[%s1 + $0x128] sm:$0xf]
    %v99 = vld [vmem:[%s1 + $0x12c] sm:$0xf]
    %v100 = vld [vmem:[%s1 + $0x130] sm:$0xf]
    %v101 = vld [vmem:[%s1 + $0x134] sm:$0xf]
    %v102 = vld [vmem:[%s1 + $0x138] sm:$0xf]
    %v103 = vld [vmem:[%s1 + $0x13c] sm:$0xf]
    %v104 = vld [vmem:[%s1 + $0x140] sm:$0xf]
    %v105 = vld [vmem:[%s1 + $0x144] sm:$0xf]
    %v106 = vld [vmem:[%s1 + $0x148] sm:$0xf]
    %v107 = vld [vmem:[%s1 + $0x14c] sm:$0xf]
    %v108 = vld [vmem:[%s1 + $0x150] sm:$0xf]
    %v109 = vld [vmem:[%s1 + $0x154] sm:$0xf]
    %v110 = vld [vmem:[%s1 + $0x158] sm:$0xf]
    %v111 = vld [vmem:[%s1 + $0x15c] sm:$0xf]
    %v112 = vld [vmem:[%s1 + $0x160] sm:$0xf]
    %v113 = vld [vmem:[%s1 + $0x164] sm:$0xf]
    %v114 = vld [vmem:[%s1 + $0x168] sm:$0xf]
    %v115 = vld [vmem:[%s1 + $0x16c] sm:$0xf]
    %v116 = vld [vmem:[%s1 + $0x170] sm:$0xf]
    %v117 = vld [vmem:[%s1 + $0x174] sm:$0xf]
    %v118 = vld [vmem:[%s1 + $0x178] sm:$0xf]
    %v119 = vld [vmem:[%s1 + $0x17c] sm:$0xf]
    %v120 = vld [vmem:[%s1 + $0x180] sm:$0xf]
    %v121 = vld [vmem:[%s1 + $0x184] sm:$0xf]
    %v122 = vld [vmem:[%s1 + $0x188] sm:$0xf]
    %v123 = vld [vmem:[%s1 + $0x18c] sm:$0xf]
    %v124 = vld [vmem:[%s1 + $0x190] sm:$0xf]
    %v125 = vld [vmem:[%s1 + $0x194] sm:$0xf]
    %v126 = vld [vmem:[%s1 + $0x198] sm:$0xf]
    %v127 = vld [vmem:[%s1 + $0x19c] sm:$0xf]
    %v128 = vld [vmem:[%s1 + $0x1a0] sm:$0xf]
    %v129 = vld [vmem:[%s1 + $0x1a4] sm:$0xf]
    %v130 = vld [vmem:[%s1 + $0x1a8] sm:$0xf]
    %v131 = vld [vmem:[%s1 + $0x1ac] sm:$0xf]
    %v132 = vld [vmem:[%s1 + $0x1b0] sm:$0xf]
    %v133 = vld [vmem:[%s1 + $0x1b4] sm:$0xf]
    %v134 = vld [vmem:[%s1 + $0x1b8] sm:$0xf]
    %v135 = vld [vmem:[%s1 + $0x1bc] sm:$0xf]
    %v136 = vld [vmem:[%s1 + $0x1c0] sm:$0xf]
    %v137 = vld [vmem:[%s1 + $0x1c4] sm:$0xf]
    %v138 = vld [vmem:[%s1 + $0x1c8] sm:$0xf]
    %v139 = vld [vmem:[%s1 + $0x1cc] sm:$0xf]
    %v140 = vld [vmem:[%s1 + $0x1d0] sm:$0xf]
    %v141 = vld [vmem:[%s1 + $0x1d4] sm:$0xf]
    %v142 = vld [vmem:[%s1 + $0x1d8] sm:$0xf]
    %v143 = vld [vmem:[%s1 + $0x1dc] sm:$0xf]
    %v144 = vld [vmem:[%s1 + $0x1e0] sm:$0xf]
    %v145 = vld [vmem:[%s1 + $0x1e4] sm:$0xf]
    %v146 = vld [vmem:[%s1 + $0x1e8] sm:$0xf]
    %v147 = vld [vmem:[%s1 + $0x1ec] sm:$0xf]
    %v148 = vld [vmem:[%s1 + $0x1f0] sm:$0xf]
    %v149 = vld [vmem:[%s1 + $0x1f4] sm:$0xf]
    %v150 = vld [vmem:[%s1 + $0x1f8] sm:$0xf]
    %v151 = vld [vmem:[%s1 + $0x1fc] sm:$0xf]
    %v152 = vld [vmem:[%s1 + $0x200] sm:$0xf]
    %v153 = vld [vmem:[%s1 + $0x204] sm:$0xf]
    %v154 = vld [vmem:[%s1 + $0x208] sm:$0xf]
    %v155 = vld [vmem:[%s1 + $0x20c] sm:$0xf]
    %v156 = vld [vmem:[%s1 + $0x210] sm:$0xf]
    %v157 = vld [vmem:[%s1 + $0x214] sm:$0xf]
    %v158 = vld [vmem:[%s1 + $0x218] sm:$0xf]
    %v159 = vld [vmem:[%s1 + $0x21c] sm:$0xf]
    %v160 = vld [vmem:[%s1 + $0x220] sm:$0xf]
    %v161 = vld [vmem:[%s1 + $0x224] sm:$0xf]
    %v162 = vld [vmem:[%s1 + $0x228] sm:$0xf]
    %v163 = vld [vmem:[%s1 + $0x22c] sm:$0xf]
    %v164 = vld [vmem:[%s1 + $0x230] sm:$0xf]
    %v165 = vld [vmem:[%s1 + $0x234] sm:$0xf]
    %v166 = vld [vmem:[%s1 + $0x238] sm:$0xf]
    %v167 = vld [vmem:[%s1 + $0x23c] sm:$0xf]
    %v168 = vld [vmem:[%s1 + $0x240] sm:$0xf]
    %v169 = vld [vmem:[%s1 + $0x244] sm:$0xf]
    %v170 = vld [vmem:[%s1 + $0x248] sm:$0xf]
    %v171 = vld [vmem:[%s1 + $0x24c] sm:$0xf]
    %v172 = vld [vmem:[%s1 + $0x250] sm:$0xf]
    %v173 = vld [vmem:[%s1 + $0x254] sm:$0xf]
    %v174 = vld [vmem:[%s1 + $0x258] sm:$0xf]
    %v175 = vld [vmem:[%s1 + $0x25c] sm:$0xf]
    %v176 = vld [vmem:[%s1 + $0x260] sm:$0xf]
    %v177 = vld [vmem:[%s1 + $0x264] sm:$0xf]
    %v178 = vld [vmem:[%s1 + $0x268] sm:$0xf]
    %v179 = vld [vmem:[%s1 + $0x26c] sm:$0xf]
    %v180 = vld [vmem:[%s1 + $0x270] sm:$0xf]
    %v181 = vld [vmem:[%s1 + $0x274] sm:$0xf]
    %v182 = vld [vmem:[%s1 + $0x278] sm:$0xf]
    %v183 = vld [vmem:[%s1 + $0x27c] sm:$0xf]
    %v184 = vld [vmem:[%s1 + $0x280] sm:$0xf]
    %v185 = vld [vmem:[%s1 + $0x284] sm:$0xf]
    %v186 = vld [vmem:[%s1 + $0x288] sm:$0xf]
    %v187 = vld [vmem:[%s1 + $0x28c] sm:$0xf]
    %v188 = vld [vmem:[%s1 + $0x290] sm:$0xf]
    %v189 = vld [vmem:[%s1 + $0x294] sm:$0xf]
    %v190 = vld [vmem:[%s1 + $0x298] sm:$0xf]
    %v191 = vld [vmem:[%s1 + $0x29c] sm:$0xf]
    %v192 = vld [vmem:[%s1 + $0x2a0] sm:$0xf]
    %v193 = vld [vmem:[%s1 + $0x2a4] sm:$0xf]
    %v194 = vld [vmem:[%s1 + $0x2a8] sm:$0xf]
    %v195 = vld [vmem:[%s1 + $0x2ac] sm:$0xf]
    %v196 = vld [vmem:[%s1 + $0x2b0] sm:$0xf]
    %v197 = vld [vmem:[%s1 + $0x2b4] sm:$0xf]
    %v198 = vld [vmem:[%s1 + $0x2b8] sm:$0xf]
    %v199 = vld [vmem:[%s1 + $0x2bc] sm:$0xf]
    %v200 = vld [vmem:[%s1 + $0x2c0] sm:$0xf]
    %v201 = vld [vmem:[%s1 + $0x2c4] sm:$0xf]
    %v202 = vld [vmem:[%s1 + $0x2c8] sm:$0xf]
    %v203 = vld [vmem:[%s1 + $0x2cc] sm:$0xf]
    %v204 = vld [vmem:[%s1 + $0x2d0] sm:$0xf]
    %v205 = vld [vmem:[%s1 + $0x2d4] sm:$0xf]
    %v206 = vld [vmem:[%s1 + $0x2d8] sm:$0xf]
    %v207 = vld [vmem:[%s1 + $0x2dc] sm:$0xf]
    %v208 = vld [vmem:[%s1 + $0x2e0] sm:$0xf]
    %v209 = vld [vmem:[%s1 + $0x2e4] sm:$0xf]
    %v210 = vld [vmem:[%s1 + $0x2e8] sm:$0xf]
    %v211 = vld [vmem:[%s1 + $0x2ec] sm:$0xf]
    %v212 = vld [vmem:[%s1 + $0x2f0] sm:$0xf]
    %v213 = vld [vmem:[%s1 + $0x2f4] sm:$0xf]
    %v214 = vld [vmem:[%s1 + $0x2f8] sm:$0xf]
    %v215 = vld [vmem:[%s1 + $0x2fc] sm:$0xf]
    %v216 = vld [vmem:[%s1 + $0x300] sm:$0xf]
    %v217 = vld [vmem:[%s1 + $0x304] sm:$0xf]
    %v218 = vld [vmem:[%s1 + $0x308] sm:$0xf]
    %v219 = vld [vmem:[%s1 + $0x30c] sm:$0xf]
    %v220 = vld [vmem:[%s1 + $0x310] sm:$0xf]
    %v221 = vld [vmem:[%s1 + $0x314] sm:$0xf]
    %v222 = vld [vmem:[%s1 + $0x318] sm:$0xf]
    %v223 = vld [vmem:[%s1 + $0x31c] sm:$0xf]
    %v224 = vld [vmem:[%s2] sm:$0x1]
    %v226 = vlaneseq
    %v227 = vshrl.u32 %v226, 7
    %v228 = vsub.s32 0, %v227
    %v229 = vrot.slane %v224, %v228
    %v233 = vcombine.high %v22, %v22
    %v235 = vunpack.c.l.s4 1966171168
    %v236 = vunpack.c.0.s8 %v235
    %v237 = vlaneseq
    %v238 = vshrl.u32 %v237, 7
    %v239 = vsub.s32 %v236, %v238
    %v240 = vrot.slane %v22, %v239
    %v242 = vunpack.c.l.s4 1966171168
    %v243 = vunpack.c.0.s8 %v242
    %v244 = vlaneseq
    %v245 = vshrl.u32 %v244, 7
    %v246 = vsub.s32 %v243, %v245
    %v247 = vrot.slane %v233, %v246
    %v248 = vcombine.high %v240, %v240
    %v249 = vcombine.high %v247, %v247
    %v251 = vunpack.c.l.s4 1966171168
    %v252 = vunpack.c.0.s8 %v251
    %v253 = vlaneseq
    %v254 = vshrl.u32 %v253, 7
    %v255 = vsub.s32 %v252, %v254
    %v256 = vrot.slane %v240, %v255
    %v258 = vunpack.c.l.s4 1966171168
    %v259 = vunpack.c.0.s8 %v258
    %v260 = vlaneseq
    %v261 = vshrl.u32 %v260, 7
    %v262 = vsub.s32 %v259, %v261
    %v263 = vrot.slane %v247, %v262
    %v265 = vunpack.c.l.s4 1966171168
    %v266 = vunpack.c.0.s8 %v265
    %v267 = vlaneseq
    %v268 = vshrl.u32 %v267, 7
    %v269 = vsub.s32 %v266, %v268
    %v270 = vrot.slane %v248, %v269
    %v272 = vunpack.c.l.s4 1966171168
    %v273 = vunpack.c.0.s8 %v272
    %v274 = vlaneseq
    %v275 = vshrl.u32 %v274, 7
    %v276 = vsub.s32 %v273, %v275
    %v277 = vrot.slane %v249, %v276
    %v278 = vcombine.high %v256, %v256
    %v279 = vcombine.high %v263, %v263
    %v280 = vcombine.high %v270, %v270
    %v281 = vcombine.high %v277, %v277
    %v282 = vcombine.high %v23, %v23
    %v284 = vunpack.c.l.s4 1966171168
    %v285 = vunpack.c.0.s8 %v284
    %v286 = vlaneseq
    %v287 = vshrl.u32 %v286, 7
    %v288 = vsub.s32 %v285, %v287
    %v289 = vrot.slane %v23, %v288
    %v291 = vunpack.c.l.s4 1966171168
    %v292 = vunpack.c.0.s8 %v291
    %v293 = vlaneseq
    %v294 = vshrl.u32 %v293, 7
    %v295 = vsub.s32 %v292, %v294
    %v296 = vrot.slane %v282, %v295
    %v297 = vcombine.high %v289, %v289
    %v299 = vunpack.c.l.s4 1966171168
    %v300 = vunpack.c.0.s8 %v299
    %v301 = vlaneseq
    %v302 = vshrl.u32 %v301, 7
    %v303 = vsub.s32 %v300, %v302
    %v304 = vrot.slane %v289, %v303
    %v306 = vunpack.c.l.s4 1966171168
    %v307 = vunpack.c.0.s8 %v306
    %v308 = vlaneseq
    %v309 = vshrl.u32 %v308, 7
    %v310 = vsub.s32 %v307, %v309
    %v311 = vrot.slane %v296, %v310
    %v313 = vunpack.c.l.s4 1966171168
    %v314 = vunpack.c.0.s8 %v313
    %v315 = vlaneseq
    %v316 = vshrl.u32 %v315, 7
    %v317 = vsub.s32 %v314, %v316
    %v318 = vrot.slane %v297, %v317
    %v319 = vcombine.high %v304, %v304
    %v320 = vcombine.high %v318, %v318
    %v533 = vunpack.c.l.b16 %v24
    %v534 = vunpack.c.l.b16 %v25
    %v535 = vunpack.c.l.b16 %v26
    %v536 = vunpack.c.l.b16 %v27
    %v537 = vunpack.c.l.b16 %v28
    %v538 = vunpack.c.l.b16 %v29
    %v539 = vunpack.c.l.b16 %v30
    %v540 = vunpack.c.l.b16 %v31
    %v541 = vunpack.c.l.b16 %v32
    %v542 = vunpack.c.l.b16 %v33
    %v543 = vunpack.c.l.b16 %v34
    %v544 = vunpack.c.l.b16 %v35
    %v545 = vunpack.c.l.b16 %v36
    %v546 = vunpack.c.l.b16 %v37
    %v547 = vunpack.c.l.b16 %v38
    %v548 = vunpack.c.l.b16 %v39
    %v549 = vunpack.c.l.b16 %v40
    %v550 = vunpack.c.l.b16 %v41
    %v551 = vunpack.c.l.b16 %v42
    %v552 = vunpack.c.l.b16 %v43
    %v553 = vunpack.c.l.b16 %v44
    %v554 = vunpack.c.l.b16 %v45
    %v555 = vunpack.c.l.b16 %v46
    %v556 = vunpack.c.l.b16 %v47
    %v557 = vunpack.c.l.b16 %v48
    %v558 = vunpack.c.l.b16 %v49
    %v559 = vunpack.c.l.b16 %v50
    %v560 = vunpack.c.l.b16 %v51
    %v561 = vunpack.c.l.b16 %v52
    %v562 = vunpack.c.l.b16 %v53
    %v563 = vunpack.c.l.b16 %v54
    %v564 = vunpack.c.l.b16 %v55
    %v565 = vunpack.c.l.b16 %v56
    %v566 = vunpack.c.l.b16 %v57
    %v567 = vunpack.c.l.b16 %v58
    %v568 = vunpack.c.l.b16 %v59
    %v569 = vunpack.c.l.b16 %v60
    %v570 = vunpack.c.l.b16 %v61
    %v571 = vunpack.c.l.b16 %v62
    %v572 = vunpack.c.l.b16 %v63
    %v573 = vunpack.c.l.b16 %v64
    %v574 = vunpack.c.l.b16 %v65
    %v575 = vunpack.c.l.b16 %v66
    %v576 = vunpack.c.l.b16 %v67
    %v577 = vunpack.c.l.b16 %v68
    %v578 = vunpack.c.l.b16 %v69
    %v579 = vunpack.c.l.b16 %v70
    %v580 = vunpack.c.l.b16 %v71
    %v581 = vunpack.c.l.b16 %v72
    %v582 = vunpack.c.l.b16 %v73
    %v583 = vunpack.c.l.b16 %v74
    %v584 = vunpack.c.l.b16 %v75
    %v585 = vunpack.c.l.b16 %v76
    %v586 = vunpack.c.l.b16 %v77
    %v587 = vunpack.c.l.b16 %v78
    %v588 = vunpack.c.l.b16 %v79
    %v589 = vunpack.c.l.b16 %v80
    %v590 = vunpack.c.l.b16 %v81
    %v591 = vunpack.c.l.b16 %v82
    %v592 = vunpack.c.l.b16 %v83
    %v593 = vunpack.c.l.b16 %v84
    %v594 = vunpack.c.l.b16 %v85
    %v595 = vunpack.c.l.b16 %v86
    %v596 = vunpack.c.l.b16 %v87
    %v597 = vunpack.c.l.b16 %v88
    %v598 = vunpack.c.l.b16 %v89
    %v599 = vunpack.c.l.b16 %v90
    %v600 = vunpack.c.l.b16 %v91
    %v601 = vunpack.c.l.b16 %v92
    %v602 = vunpack.c.l.b16 %v93
    %v603 = vunpack.c.l.b16 %v94
    %v604 = vunpack.c.l.b16 %v95
    %v605 = vunpack.c.l.b16 %v96
    %v606 = vunpack.c.l.b16 %v97
    %v607 = vunpack.c.l.b16 %v98
    %v608 = vunpack.c.l.b16 %v99
    %v609 = vunpack.c.l.b16 %v100
    %v610 = vunpack.c.l.b16 %v101
    %v611 = vunpack.c.l.b16 %v102
    %v612 = vunpack.c.l.b16 %v103
    %v613 = vunpack.c.l.b16 %v104
    %v614 = vunpack.c.l.b16 %v105
    %v615 = vunpack.c.l.b16 %v106
    %v616 = vunpack.c.l.b16 %v107
    %v617 = vunpack.c.l.b16 %v108
    %v618 = vunpack.c.l.b16 %v109
    %v619 = vunpack.c.l.b16 %v110
    %v620 = vunpack.c.l.b16 %v111
    %v621 = vunpack.c.l.b16 %v112
    %v622 = vunpack.c.l.b16 %v113
    %v623 = vunpack.c.l.b16 %v114
    %v624 = vunpack.c.l.b16 %v115
    %v625 = vunpack.c.l.b16 %v116
    %v626 = vunpack.c.l.b16 %v117
    %v627 = vunpack.c.l.b16 %v118
    %v628 = vunpack.c.l.b16 %v119
    %v629 = vunpack.c.l.b16 %v120
    %v630 = vunpack.c.l.b16 %v121
    %v631 = vunpack.c.l.b16 %v122
    %v632 = vunpack.c.l.b16 %v123
    %v633 = vunpack.c.l.b16 %v124
    %v634 = vunpack.c.l.b16 %v125
    %v635 = vunpack.c.l.b16 %v126
    %v636 = vunpack.c.l.b16 %v127
    %v637 = vunpack.c.l.b16 %v128
    %v638 = vunpack.c.l.b16 %v129
    %v639 = vunpack.c.l.b16 %v130
    %v640 = vunpack.c.l.b16 %v131
    %v641 = vunpack.c.l.b16 %v132
    %v642 = vunpack.c.l.b16 %v133
    %v643 = vunpack.c.l.b16 %v134
    %v644 = vunpack.c.l.b16 %v135
    %v645 = vunpack.c.l.b16 %v136
    %v646 = vunpack.c.l.b16 %v137
    %v647 = vunpack.c.l.b16 %v138
    %v648 = vunpack.c.l.b16 %v139
    %v649 = vunpack.c.l.b16 %v140
    %v650 = vunpack.c.l.b16 %v141
    %v651 = vunpack.c.l.b16 %v142
    %v652 = vunpack.c.l.b16 %v143
    %v653 = vunpack.c.l.b16 %v144
    %v654 = vunpack.c.l.b16 %v145
    %v655 = vunpack.c.l.b16 %v146
    %v656 = vunpack.c.l.b16 %v147
    %v657 = vunpack.c.l.b16 %v148
    %v658 = vunpack.c.l.b16 %v149
    %v659 = vunpack.c.l.b16 %v150
    %v660 = vunpack.c.l.b16 %v151
    %v661 = vunpack.c.l.b16 %v152
    %v662 = vunpack.c.l.b16 %v153
    %v663 = vunpack.c.l.b16 %v154
    %v664 = vunpack.c.l.b16 %v155
    %v665 = vunpack.c.l.b16 %v156
    %v666 = vunpack.c.l.b16 %v157
    %v667 = vunpack.c.l.b16 %v158
    %v668 = vunpack.c.l.b16 %v159
    %v669 = vunpack.c.l.b16 %v160
    %v670 = vunpack.c.l.b16 %v161
    %v671 = vunpack.c.l.b16 %v162
    %v672 = vunpack.c.l.b16 %v163
    %v673 = vunpack.c.l.b16 %v164
    %v674 = vunpack.c.l.b16 %v165
    %v675 = vunpack.c.l.b16 %v166
    %v676 = vunpack.c.l.b16 %v167
    %v677 = vunpack.c.l.b16 %v168
    %v678 = vunpack.c.l.b16 %v169
    %v679 = vunpack.c.l.b16 %v170
    %v680 = vunpack.c.l.b16 %v171
    %v681 = vunpack.c.l.b16 %v172
    %v682 = vunpack.c.l.b16 %v173
    %v683 = vunpack.c.l.b16 %v174
    %v684 = vunpack.c.l.b16 %v175
    %v685 = vunpack.c.l.b16 %v176
    %v686 = vunpack.c.l.b16 %v177
    %v687 = vunpack.c.l.b16 %v178
    %v688 = vunpack.c.l.b16 %v179
    %v689 = vunpack.c.l.b16 %v180
    %v690 = vunpack.c.l.b16 %v181
    %v691 = vunpack.c.l.b16 %v182
    %v692 = vunpack.c.l.b16 %v183
    %v693 = vunpack.c.l.b16 %v184
    %v694 = vunpack.c.l.b16 %v185
    %v695 = vunpack.c.l.b16 %v186
    %v696 = vunpack.c.l.b16 %v187
    %v697 = vunpack.c.l.b16 %v188
    %v698 = vunpack.c.l.b16 %v189
    %v699 = vunpack.c.l.b16 %v190
    %v700 = vunpack.c.l.b16 %v191
    %v701 = vunpack.c.l.b16 %v192
    %v702 = vunpack.c.l.b16 %v193
    %v703 = vunpack.c.l.b16 %v194
    %v704 = vunpack.c.l.b16 %v195
    %v705 = vunpack.c.l.b16 %v196
    %v706 = vunpack.c.l.b16 %v197
    %v707 = vunpack.c.l.b16 %v198
    %v708 = vunpack.c.l.b16 %v199
    %v709 = vunpack.c.l.b16 %v200
    %v710 = vunpack.c.l.b16 %v201
    %v711 = vunpack.c.l.b16 %v202
    %v712 = vunpack.c.l.b16 %v203
    %v713 = vunpack.c.l.b16 %v204
    %v714 = vunpack.c.l.b16 %v205
    %v715 = vunpack.c.l.b16 %v206
    %v716 = vunpack.c.l.b16 %v207
    %v717 = vunpack.c.l.b16 %v208
    %v718 = vunpack.c.l.b16 %v209
    %v719 = vunpack.c.l.b16 %v210
    %v720 = vunpack.c.l.b16 %v211
    %v721 = vunpack.c.l.b16 %v212
    %v722 = vunpack.c.l.b16 %v213
    %v723 = vunpack.c.l.b16 %v214
    %v724 = vunpack.c.l.b16 %v215
    %v725 = vunpack.c.l.b16 %v216
    %v726 = vunpack.c.l.b16 %v217
    %v727 = vunpack.c.l.b16 %v218
    %v728 = vunpack.c.l.b16 %v219
    %v729 = vunpack.c.l.b16 %v220
    %v730 = vunpack.c.l.b16 %v221
    %v731 = vunpack.c.l.b16 %v222
    %v732 = vunpack.c.l.b16 %v223
    %v733 = vpack.c.b16 %v534, %v533
    %v734 = vpack.c.b16 %v536, %v535
    %v735 = vpack.c.b16 %v538, %v537
    %v736 = vpack.c.b16 %v540, %v539
    %v737 = vpack.c.b16 %v542, %v541
    %v738 = vpack.c.b16 %v544, %v543
    %v739 = vpack.c.b16 %v546, %v545
    %v740 = vpack.c.b16 %v548, %v547
    %v741 = vpack.c.b16 %v550, %v549
    %v742 = vpack.c.b16 %v552, %v551
    %v743 = vpack.c.b16 %v554, %v553
    %v744 = vpack.c.b16 %v556, %v555
    %v745 = vpack.c.b16 %v558, %v557
    %v746 = vpack.c.b16 %v560, %v559
    %v747 = vpack.c.b16 %v562, %v561
    %v748 = vpack.c.b16 %v564, %v563
    %v749 = vpack.c.b16 %v566, %v565
    %v750 = vpack.c.b16 %v568, %v567
    %v751 = vpack.c.b16 %v570, %v569
    %v752 = vpack.c.b16 %v572, %v571
    %v753 = vpack.c.b16 %v574, %v573
    %v754 = vpack.c.b16 %v576, %v575
    %v755 = vpack.c.b16 %v578, %v577
    %v756 = vpack.c.b16 %v580, %v579
    %v757 = vpack.c.b16 %v582, %v581
    %v758 = vpack.c.b16 %v584, %v583
    %v759 = vpack.c.b16 %v586, %v585
    %v760 = vpack.c.b16 %v588, %v587
    %v761 = vpack.c.b16 %v590, %v589
    %v762 = vpack.c.b16 %v592, %v591
    %v763 = vpack.c.b16 %v594, %v593
    %v764 = vpack.c.b16 %v596, %v595
    %v765 = vpack.c.b16 %v598, %v597
    %v766 = vpack.c.b16 %v600, %v599
    %v767 = vpack.c.b16 %v602, %v601
    %v768 = vpack.c.b16 %v604, %v603
    %v769 = vpack.c.b16 %v606, %v605
    %v770 = vpack.c.b16 %v608, %v607
    %v771 = vpack.c.b16 %v610, %v609
    %v772 = vpack.c.b16 %v612, %v611
    %v773 = vpack.c.b16 %v614, %v613
    %v774 = vpack.c.b16 %v616, %v615
    %v775 = vpack.c.b16 %v618, %v617
    %v776 = vpack.c.b16 %v620, %v619
    %v777 = vpack.c.b16 %v622, %v621
    %v778 = vpack.c.b16 %v624, %v623
    %v779 = vpack.c.b16 %v626, %v625
    %v780 = vpack.c.b16 %v628, %v627
    %v781 = vpack.c.b16 %v630, %v629
    %v782 = vpack.c.b16 %v632, %v631
    %v783 = vpack.c.b16 %v634, %v633
    %v784 = vpack.c.b16 %v636, %v635
    %v785 = vpack.c.b16 %v638, %v637
    %v786 = vpack.c.b16 %v640, %v639
    %v787 = vpack.c.b16 %v642, %v641
    %v788 = vpack.c.b16 %v644, %v643
    %v789 = vpack.c.b16 %v646, %v645
    %v790 = vpack.c.b16 %v648, %v647
    %v791 = vpack.c.b16 %v650, %v649
    %v792 = vpack.c.b16 %v652, %v651
    %v793 = vpack.c.b16 %v654, %v653
    %v794 = vpack.c.b16 %v656, %v655
    %v795 = vpack.c.b16 %v658, %v657
    %v796 = vpack.c.b16 %v660, %v659
    %v797 = vpack.c.b16 %v662, %v661
    %v798 = vpack.c.b16 %v664, %v663
    %v799 = vpack.c.b16 %v666, %v665
    %v800 = vpack.c.b16 %v668, %v667
    %v801 = vpack.c.b16 %v670, %v669
    %v802 = vpack.c.b16 %v672, %v671
    %v803 = vpack.c.b16 %v674, %v673
    %v804 = vpack.c.b16 %v676, %v675
    %v805 = vpack.c.b16 %v678, %v677
    %v806 = vpack.c.b16 %v680, %v679
    %v807 = vpack.c.b16 %v682, %v681
    %v808 = vpack.c.b16 %v684, %v683
    %v809 = vpack.c.b16 %v686, %v685
    %v810 = vpack.c.b16 %v688, %v687
    %v811 = vpack.c.b16 %v690, %v689
    %v812 = vpack.c.b16 %v692, %v691
    %v813 = vpack.c.b16 %v694, %v693
    %v814 = vpack.c.b16 %v696, %v695
    %v815 = vpack.c.b16 %v698, %v697
    %v816 = vpack.c.b16 %v700, %v699
    %v817 = vpack.c.b16 %v702, %v701
    %v818 = vpack.c.b16 %v704, %v703
    %v819 = vpack.c.b16 %v706, %v705
    %v820 = vpack.c.b16 %v708, %v707
    %v821 = vpack.c.b16 %v710, %v709
    %v822 = vpack.c.b16 %v712, %v711
    %v823 = vpack.c.b16 %v714, %v713
    %v824 = vpack.c.b16 %v716, %v715
    %v825 = vpack.c.b16 %v718, %v717
    %v826 = vpack.c.b16 %v720, %v719
    %v827 = vpack.c.b16 %v722, %v721
    %v828 = vpack.c.b16 %v724, %v723
    %v829 = vpack.c.b16 %v726, %v725
    %v830 = vpack.c.b16 %v728, %v727
    %v831 = vpack.c.b16 %v730, %v729
    %v832 = vpack.c.b16 %v732, %v731
    %vm933 = vcmask 523264
    %v935 = vsel %vm933, %v311, 0
    %937 = vmatprep.subr.bf16.mxu0 0
    %938 = vmatpush1.bf16.msra.mxu0 %v740
    %939 = vmatprep.subr.bf16.mxu0 0
    %940 = vmatpush1.bf16.msra.mxu0 %v739
    %941 = vmatprep.subr.bf16.mxu0 0
    %942 = vmatpush1.bf16.msra.mxu0 %v738
    %943 = vmatprep.subr.bf16.mxu0 0
    %944 = vmatpush1.bf16.msra.mxu0 %v737
    %945 = vmatprep.subr.bf16.mxu0 0
    %946 = vmatpush1.bf16.msra.mxu0 %v736
    %947 = vmatprep.subr.bf16.mxu0 0
    %948 = vmatpush1.bf16.msra.mxu0 %v735
    %949 = vmatprep.subr.bf16.mxu0 0
    %950 = vmatpush1.bf16.msra.mxu0 %v734
    %951 = vmatprep.subr.bf16.mxu0 0
    %952 = vmatpush1.bf16.msra.mxu0 %v733
    %953 = vmatprep.subr.bf16.mxu0 0
    %954 = vmatpush2.bf16.msra.mxu0 %v748
    %955 = vmatprep.subr.bf16.mxu0 0
    %956 = vmatpush2.bf16.msra.mxu0 %v747
    %957 = vmatprep.subr.bf16.mxu0 0
    %958 = vmatpush2.bf16.msra.mxu0 %v746
    %959 = vmatprep.subr.bf16.mxu0 0
    %960 = vmatpush2.bf16.msra.mxu0 %v745
    %961 = vmatprep.subr.bf16.mxu0 0
    %962 = vmatpush2.bf16.msra.mxu0 %v744
    %963 = vmatprep.subr.bf16.mxu0 0
    %964 = vmatpush2.bf16.msra.mxu0 %v743
    %965 = vmatprep.subr.bf16.mxu0 0
    %966 = vmatpush2.bf16.msra.mxu0 %v742
    %967 = vmatprep.subr.bf16.mxu0 0
    %968 = vmatpush2.bf16.msra.mxu0 %v741
    %969 = vmatprep.mubr.bf16.mxu0 %v270
    %970 = vmatmul.mubr.bf16.gmra.mxu0 %v256
    %v971 = vpop.f32.mrf.mxu0
    %v972 = vadd.f32 %v229, %v971
    %v973 = vpop.f32.mrf.mxu0
    %v974 = vpop.f32.mrf.mxu0
    %v975 = vpop.f32.mrf.mxu0
    %976 = vdwg.mxu0
    %977 = vmatprep.subr.bf16.mxu0 0
    %978 = vmatpush1.bf16.msra.mxu0 %v756
    %979 = vmatprep.subr.bf16.mxu0 0
    %980 = vmatpush1.bf16.msra.mxu0 %v755
    %981 = vmatprep.subr.bf16.mxu0 0
    %982 = vmatpush1.bf16.msra.mxu0 %v754
    %983 = vmatprep.subr.bf16.mxu0 0
    %984 = vmatpush1.bf16.msra.mxu0 %v753
    %985 = vmatprep.subr.bf16.mxu0 0
    %986 = vmatpush1.bf16.msra.mxu0 %v752
    %987 = vmatprep.subr.bf16.mxu0 0
    %988 = vmatpush1.bf16.msra.mxu0 %v751
    %989 = vmatprep.subr.bf16.mxu0 0
    %990 = vmatpush1.bf16.msra.mxu0 %v750
    %991 = vmatprep.subr.bf16.mxu0 0
    %992 = vmatpush1.bf16.msra.mxu0 %v749
    %993 = vmatprep.subr.bf16.mxu0 0
    %994 = vmatpush2.bf16.msra.mxu0 %v764
    %995 = vmatprep.subr.bf16.mxu0 0
    %996 = vmatpush2.bf16.msra.mxu0 %v763
    %997 = vmatprep.subr.bf16.mxu0 0
    %998 = vmatpush2.bf16.msra.mxu0 %v762
    %999 = vmatprep.subr.bf16.mxu0 0
    %1000 = vmatpush2.bf16.msra.mxu0 %v761
    %1001 = vmatprep.subr.bf16.mxu0 0
    %1002 = vmatpush2.bf16.msra.mxu0 %v760
    %1003 = vmatprep.subr.bf16.mxu0 0
    %1004 = vmatpush2.bf16.msra.mxu0 %v759
    %1005 = vmatprep.subr.bf16.mxu0 0
    %1006 = vmatpush2.bf16.msra.mxu0 %v758
    %1007 = vmatprep.subr.bf16.mxu0 0
    %1008 = vmatpush2.bf16.msra.mxu0 %v757
    %1009 = vmatprep.mubr.bf16.mxu0 %v280
    %1010 = vmatmul.mubr.bf16.gmra.mxu0 %v278
    %v1011 = vpop.f32.mrf.mxu0
    %v1012 = vadd.f32 %v972, %v1011
    %v1013 = vpop.f32.mrf.mxu0
    %v1014 = vpop.f32.mrf.mxu0
    %v1015 = vpop.f32.mrf.mxu0
    %1016 = vdwg.mxu0
    %1017 = vmatprep.subr.bf16.mxu0 0
    %1018 = vmatpush1.bf16.msra.mxu0 %v772
    %1019 = vmatprep.subr.bf16.mxu0 0
    %1020 = vmatpush1.bf16.msra.mxu0 %v771
    %1021 = vmatprep.subr.bf16.mxu0 0
    %1022 = vmatpush1.bf16.msra.mxu0 %v770
    %1023 = vmatprep.subr.bf16.mxu0 0
    %1024 = vmatpush1.bf16.msra.mxu0 %v769
    %1025 = vmatprep.subr.bf16.mxu0 0
    %1026 = vmatpush1.bf16.msra.mxu0 %v768
    %1027 = vmatprep.subr.bf16.mxu0 0
    %1028 = vmatpush1.bf16.msra.mxu0 %v767
    %1029 = vmatprep.subr.bf16.mxu0 0
    %1030 = vmatpush1.bf16.msra.mxu0 %v766
    %1031 = vmatprep.subr.bf16.mxu0 0
    %1032 = vmatpush1.bf16.msra.mxu0 %v765
    %1033 = vmatprep.subr.bf16.mxu0 0
    %1034 = vmatpush2.bf16.msra.mxu0 %v780
    %1035 = vmatprep.subr.bf16.mxu0 0
    %1036 = vmatpush2.bf16.msra.mxu0 %v779
    %1037 = vmatprep.subr.bf16.mxu0 0
    %1038 = vmatpush2.bf16.msra.mxu0 %v778
    %1039 = vmatprep.subr.bf16.mxu0 0
    %1040 = vmatpush2.bf16.msra.mxu0 %v777
    %1041 = vmatprep.subr.bf16.mxu0 0
    %1042 = vmatpush2.bf16.msra.mxu0 %v776
    %1043 = vmatprep.subr.bf16.mxu0 0
    %1044 = vmatpush2.bf16.msra.mxu0 %v775
    %1045 = vmatprep.subr.bf16.mxu0 0
    %1046 = vmatpush2.bf16.msra.mxu0 %v774
    %1047 = vmatprep.subr.bf16.mxu0 0
    %1048 = vmatpush2.bf16.msra.mxu0 %v773
    %1049 = vmatprep.mubr.bf16.mxu0 %v277
    %1050 = vmatmul.mubr.bf16.gmra.mxu0 %v263
    %v1051 = vpop.f32.mrf.mxu0
    %v1052 = vadd.f32 %v1012, %v1051
    %v1053 = vpop.f32.mrf.mxu0
    %v1054 = vpop.f32.mrf.mxu0
    %v1055 = vpop.f32.mrf.mxu0
    %1056 = vdwg.mxu0
    %1057 = vmatprep.subr.bf16.mxu0 0
    %1058 = vmatpush1.bf16.msra.mxu0 %v788
    %1059 = vmatprep.subr.bf16.mxu0 0
    %1060 = vmatpush1.bf16.msra.mxu0 %v787
    %1061 = vmatprep.subr.bf16.mxu0 0
    %1062 = vmatpush1.bf16.msra.mxu0 %v786
    %1063 = vmatprep.subr.bf16.mxu0 0
    %1064 = vmatpush1.bf16.msra.mxu0 %v785
    %1065 = vmatprep.subr.bf16.mxu0 0
    %1066 = vmatpush1.bf16.msra.mxu0 %v784
    %1067 = vmatprep.subr.bf16.mxu0 0
    %1068 = vmatpush1.bf16.msra.mxu0 %v783
    %1069 = vmatprep.subr.bf16.mxu0 0
    %1070 = vmatpush1.bf16.msra.mxu0 %v782
    %1071 = vmatprep.subr.bf16.mxu0 0
    %1072 = vmatpush1.bf16.msra.mxu0 %v781
    %1073 = vmatprep.subr.bf16.mxu0 0
    %1074 = vmatpush2.bf16.msra.mxu0 %v796
    %1075 = vmatprep.subr.bf16.mxu0 0
    %1076 = vmatpush2.bf16.msra.mxu0 %v795
    %1077 = vmatprep.subr.bf16.mxu0 0
    %1078 = vmatpush2.bf16.msra.mxu0 %v794
    %1079 = vmatprep.subr.bf16.mxu0 0
    %1080 = vmatpush2.bf16.msra.mxu0 %v793
    %1081 = vmatprep.subr.bf16.mxu0 0
    %1082 = vmatpush2.bf16.msra.mxu0 %v792
    %1083 = vmatprep.subr.bf16.mxu0 0
    %1084 = vmatpush2.bf16.msra.mxu0 %v791
    %1085 = vmatprep.subr.bf16.mxu0 0
    %1086 = vmatpush2.bf16.msra.mxu0 %v790
    %1087 = vmatprep.subr.bf16.mxu0 0
    %1088 = vmatpush2.bf16.msra.mxu0 %v789
    %1089 = vmatprep.mubr.bf16.mxu0 %v281
    %1090 = vmatmul.mubr.bf16.gmra.mxu0 %v279
    %v1091 = vpop.f32.mrf.mxu0
    %v1092 = vadd.f32 %v1052, %v1091
    %v1093 = vpop.f32.mrf.mxu0
    %v1094 = vpop.f32.mrf.mxu0
    %v1095 = vpop.f32.mrf.mxu0
    %1096 = vdwg.mxu0
    %1097 = vmatprep.subr.bf16.mxu0 0
    %1098 = vmatpush1.bf16.msra.mxu0 %v804
    %1099 = vmatprep.subr.bf16.mxu0 0
    %1100 = vmatpush1.bf16.msra.mxu0 %v803
    %1101 = vmatprep.subr.bf16.mxu0 0
    %1102 = vmatpush1.bf16.msra.mxu0 %v802
    %1103 = vmatprep.subr.bf16.mxu0 0
    %1104 = vmatpush1.bf16.msra.mxu0 %v801
    %1105 = vmatprep.subr.bf16.mxu0 0
    %1106 = vmatpush1.bf16.msra.mxu0 %v800
    %1107 = vmatprep.subr.bf16.mxu0 0
    %1108 = vmatpush1.bf16.msra.mxu0 %v799
    %1109 = vmatprep.subr.bf16.mxu0 0
    %1110 = vmatpush1.bf16.msra.mxu0 %v798
    %1111 = vmatprep.subr.bf16.mxu0 0
    %1112 = vmatpush1.bf16.msra.mxu0 %v797
    %1113 = vmatprep.subr.bf16.mxu0 0
    %1114 = vmatpush2.bf16.msra.mxu0 %v812
    %1115 = vmatprep.subr.bf16.mxu0 0
    %1116 = vmatpush2.bf16.msra.mxu0 %v811
    %1117 = vmatprep.subr.bf16.mxu0 0
    %1118 = vmatpush2.bf16.msra.mxu0 %v810
    %1119 = vmatprep.subr.bf16.mxu0 0
    %1120 = vmatpush2.bf16.msra.mxu0 %v809
    %1121 = vmatprep.subr.bf16.mxu0 0
    %1122 = vmatpush2.bf16.msra.mxu0 %v808
    %1123 = vmatprep.subr.bf16.mxu0 0
    %1124 = vmatpush2.bf16.msra.mxu0 %v807
    %1125 = vmatprep.subr.bf16.mxu0 0
    %1126 = vmatpush2.bf16.msra.mxu0 %v806
    %1127 = vmatprep.subr.bf16.mxu0 0
    %1128 = vmatpush2.bf16.msra.mxu0 %v805
    %1129 = vmatprep.mubr.bf16.mxu0 %v318
    %1130 = vmatmul.mubr.bf16.gmra.mxu0 %v304
    %v1131 = vpop.f32.mrf.mxu0
    %v1132 = vadd.f32 %v1092, %v1131
    %v1133 = vpop.f32.mrf.mxu0
    %v1134 = vpop.f32.mrf.mxu0
    %v1135 = vpop.f32.mrf.mxu0
    %1136 = vdwg.mxu0
    %1137 = vmatprep.subr.bf16.mxu0 0
    %1138 = vmatpush1.bf16.msra.mxu0 %v820
    %1139 = vmatprep.subr.bf16.mxu0 0
    %1140 = vmatpush1.bf16.msra.mxu0 %v819
    %1141 = vmatprep.subr.bf16.mxu0 0
    %1142 = vmatpush1.bf16.msra.mxu0 %v818
    %1143 = vmatprep.subr.bf16.mxu0 0
    %1144 = vmatpush1.bf16.msra.mxu0 %v817
    %1145 = vmatprep.subr.bf16.mxu0 0
    %1146 = vmatpush1.bf16.msra.mxu0 %v816
    %1147 = vmatprep.subr.bf16.mxu0 0
    %1148 = vmatpush1.bf16.msra.mxu0 %v815
    %1149 = vmatprep.subr.bf16.mxu0 0
    %1150 = vmatpush1.bf16.msra.mxu0 %v814
    %1151 = vmatprep.subr.bf16.mxu0 0
    %1152 = vmatpush1.bf16.msra.mxu0 %v813
    %1153 = vmatprep.subr.bf16.mxu0 0
    %1154 = vmatpush2.bf16.msra.mxu0 %v828
    %1155 = vmatprep.subr.bf16.mxu0 0
    %1156 = vmatpush2.bf16.msra.mxu0 %v827
    %1157 = vmatprep.subr.bf16.mxu0 0
    %1158 = vmatpush2.bf16.msra.mxu0 %v826
    %1159 = vmatprep.subr.bf16.mxu0 0
    %1160 = vmatpush2.bf16.msra.mxu0 %v825
    %1161 = vmatprep.subr.bf16.mxu0 0
    %1162 = vmatpush2.bf16.msra.mxu0 %v824
    %1163 = vmatprep.subr.bf16.mxu0 0
    %1164 = vmatpush2.bf16.msra.mxu0 %v823
    %1165 = vmatprep.subr.bf16.mxu0 0
    %1166 = vmatpush2.bf16.msra.mxu0 %v822
    %1167 = vmatprep.subr.bf16.mxu0 0
    %1168 = vmatpush2.bf16.msra.mxu0 %v821
    %1169 = vmatprep.mubr.bf16.mxu0 %v320
    %1170 = vmatmul.mubr.bf16.gmra.mxu0 %v319
    %v1171 = vpop.f32.mrf.mxu0
    %v1172 = vadd.f32 %v1132, %v1171
    %v1173 = vpop.f32.mrf.mxu0
    %v1174 = vpop.f32.mrf.mxu0
    %v1175 = vpop.f32.mrf.mxu0
    %1176 = vdwg.mxu0
    %1177 = vmatprep.subr.bf16.mxu0 0
    %1178 = vmatpush1.bf16.msra.mxu0 0
    %1179 = vmatprep.subr.bf16.mxu0 0
    %1180 = vmatpush1.bf16.msra.mxu0 0
    %1181 = vmatprep.subr.bf16.mxu0 0
    %1182 = vmatpush1.bf16.msra.mxu0 0
    %1183 = vmatprep.subr.bf16.mxu0 0
    %1184 = vmatpush1.bf16.msra.mxu0 0
    %1185 = vmatprep.subr.bf16.mxu0 0
    %1186 = vmatpush1.bf16.msra.mxu0 %v832
    %1187 = vmatprep.subr.bf16.mxu0 0
    %1188 = vmatpush1.bf16.msra.mxu0 %v831
    %1189 = vmatprep.subr.bf16.mxu0 0
    %1190 = vmatpush1.bf16.msra.mxu0 %v830
    %1191 = vmatprep.subr.bf16.mxu0 0
    %1192 = vmatpush1.bf16.msra.mxu0 %v829
    %1193 = vmatprep.subr.bf16.mxu0 0
    %1194 = vmatpush2.bf16.msra.mxu0 0
    %1195 = vmatprep.subr.bf16.mxu0 0
    %1196 = vmatpush2.bf16.msra.mxu0 0
    %1197 = vmatprep.subr.bf16.mxu0 0
    %1198 = vmatpush2.bf16.msra.mxu0 0
    %1199 = vmatprep.subr.bf16.mxu0 0
    %1200 = vmatpush2.bf16.msra.mxu0 0
    %1201 = vmatprep.subr.bf16.mxu0 0
    %1202 = vmatpush2.bf16.msra.mxu0 0
    %1203 = vmatprep.subr.bf16.mxu0 0
    %1204 = vmatpush2.bf16.msra.mxu0 0
    %1205 = vmatprep.subr.bf16.mxu0 0
    %1206 = vmatpush2.bf16.msra.mxu0 0
    %1207 = vmatprep.subr.bf16.mxu0 0
    %1208 = vmatpush2.bf16.msra.mxu0 0
    %1209 = vmatprep.mubr.bf16.mxu0 0
    %1210 = vmatmul.mubr.bf16.gmra.mxu0 %v935
    %v1211 = vpop.f32.mrf.mxu0
    %v1212 = vadd.f32 %v1172, %v1211
    %v1213 = vpop.f32.mrf.mxu0
    %v1214 = vpop.f32.mrf.mxu0
    %v1215 = vpop.f32.mrf.mxu0
    %1216 = vdwg.mxu0
    %v1217 = vmax.f32 %v1212, 0.0
    %v1218 = vld [vmem:[%s3] sm:$0xff]
    %s1219 = scalar_lea.vmem %s0, 13
    %v1220 = vld [vmem:[%s1219] sm:$0xff]
    %v1221 = vld [vmem:[%s1219 + $0x8] sm:$0x1f]
    %v1224 = vcombine.high %v1220, %v1220
    %v1226 = vunpack.c.l.s4 1966171168
    %v1227 = vunpack.c.0.s8 %v1226
    %v1228 = vlaneseq
    %v1229 = vshrl.u32 %v1228, 7
    %v1230 = vsub.s32 %v1227, %v1229
    %v1231 = vrot.slane %v1220, %v1230
    %v1233 = vunpack.c.l.s4 1966171168
    %v1234 = vunpack.c.0.s8 %v1233
    %v1235 = vlaneseq
    %v1236 = vshrl.u32 %v1235, 7
    %v1237 = vsub.s32 %v1234, %v1236
    %v1238 = vrot.slane %v1224, %v1237
    %v1239 = vcombine.high %v1231, %v1231
    %v1240 = vcombine.high %v1238, %v1238
    %v1242 = vunpack.c.l.s4 1966171168
    %v1243 = vunpack.c.0.s8 %v1242
    %v1244 = vlaneseq
    %v1245 = vshrl.u32 %v1244, 7
    %v1246 = vsub.s32 %v1243, %v1245
    %v1247 = vrot.slane %v1231, %v1246
    %v1249 = vunpack.c.l.s4 1966171168
    %v1250 = vunpack.c.0.s8 %v1249
    %v1251 = vlaneseq
    %v1252 = vshrl.u32 %v1251, 7
    %v1253 = vsub.s32 %v1250, %v1252
    %v1254 = vrot.slane %v1238, %v1253
    %v1256 = vunpack.c.l.s4 1966171168
    %v1257 = vunpack.c.0.s8 %v1256
    %v1258 = vlaneseq
    %v1259 = vshrl.u32 %v1258, 7
    %v1260 = vsub.s32 %v1257, %v1259
    %v1261 = vrot.slane %v1239, %v1260
    %v1263 = vunpack.c.l.s4 1966171168
    %v1264 = vunpack.c.0.s8 %v1263
    %v1265 = vlaneseq
    %v1266 = vshrl.u32 %v1265, 7
    %v1267 = vsub.s32 %v1264, %v1266
    %v1268 = vrot.slane %v1240, %v1267
    %v1269 = vcombine.high %v1247, %v1247
    %v1270 = vcombine.high %v1254, %v1254
    %v1271 = vcombine.high %v1261, %v1261
    %v1272 = vcombine.high %v1268, %v1268
    %v1273 = vcombine.high %v1221, %v1221
    %v1275 = vunpack.c.l.s4 1966171168
    %v1276 = vunpack.c.0.s8 %v1275
    %v1277 = vlaneseq
    %v1278 = vshrl.u32 %v1277, 7
    %v1279 = vsub.s32 %v1276, %v1278
    %v1280 = vrot.slane %v1221, %v1279
    %v1282 = vunpack.c.l.s4 1966171168
    %v1283 = vunpack.c.0.s8 %v1282
    %v1284 = vlaneseq
    %v1285 = vshrl.u32 %v1284, 7
    %v1286 = vsub.s32 %v1283, %v1285
    %v1287 = vrot.slane %v1273, %v1286
    %v1288 = vcombine.high %v1280, %v1280
    %v1290 = vunpack.c.l.s4 1966171168
    %v1291 = vunpack.c.0.s8 %v1290
    %v1292 = vlaneseq
    %v1293 = vshrl.u32 %v1292, 7
    %v1294 = vsub.s32 %v1291, %v1293
    %v1295 = vrot.slane %v1280, %v1294
    %v1297 = vunpack.c.l.s4 1966171168
    %v1298 = vunpack.c.0.s8 %v1297
    %v1299 = vlaneseq
    %v1300 = vshrl.u32 %v1299, 7
    %v1301 = vsub.s32 %v1298, %v1300
    %v1302 = vrot.slane %v1287, %v1301
    %v1304 = vunpack.c.l.s4 1966171168
    %v1305 = vunpack.c.0.s8 %v1304
    %v1306 = vlaneseq
    %v1307 = vshrl.u32 %v1306, 7
    %v1308 = vsub.s32 %v1305, %v1307
    %v1309 = vrot.slane %v1288, %v1308
    %v1310 = vcombine.high %v1295, %v1295
    %v1311 = vcombine.high %v1309, %v1309
    %v1325 = vsel %vm933, %v1302, 0
    %1327 = vmatprep.subr.bf16.mxu0 0
    %1328 = vmatpush1.bf16.msra.mxu0 %v740
    %1329 = vmatprep.subr.bf16.mxu0 0
    %1330 = vmatpush1.bf16.msra.mxu0 %v739
    %1331 = vmatprep.subr.bf16.mxu0 0
    %1332 = vmatpush1.bf16.msra.mxu0 %v738
    %1333 = vmatprep.subr.bf16.mxu0 0
    %1334 = vmatpush1.bf16.msra.mxu0 %v737
    %1335 = vmatprep.subr.bf16.mxu0 0
    %1336 = vmatpush1.bf16.msra.mxu0 %v736
    %1337 = vmatprep.subr.bf16.mxu0 0
    %1338 = vmatpush1.bf16.msra.mxu0 %v735
    %1339 = vmatprep.subr.bf16.mxu0 0
    %1340 = vmatpush1.bf16.msra.mxu0 %v734
    %1341 = vmatprep.subr.bf16.mxu0 0
    %1342 = vmatpush1.bf16.msra.mxu0 %v733
    %1343 = vmatprep.subr.bf16.mxu0 0
    %1344 = vmatpush2.bf16.msra.mxu0 %v748
    %1345 = vmatprep.subr.bf16.mxu0 0
    %1346 = vmatpush2.bf16.msra.mxu0 %v747
    %1347 = vmatprep.subr.bf16.mxu0 0
    %1348 = vmatpush2.bf16.msra.mxu0 %v746
    %1349 = vmatprep.subr.bf16.mxu0 0
    %1350 = vmatpush2.bf16.msra.mxu0 %v745
    %1351 = vmatprep.subr.bf16.mxu0 0
    %1352 = vmatpush2.bf16.msra.mxu0 %v744
    %1353 = vmatprep.subr.bf16.mxu0 0
    %1354 = vmatpush2.bf16.msra.mxu0 %v743
    %1355 = vmatprep.subr.bf16.mxu0 0
    %1356 = vmatpush2.bf16.msra.mxu0 %v742
    %1357 = vmatprep.subr.bf16.mxu0 0
    %1358 = vmatpush2.bf16.msra.mxu0 %v741
    %1359 = vmatprep.mubr.bf16.mxu0 %v1261
    %1360 = vmatmul.mubr.bf16.gmra.mxu0 %v1247
    %v1361 = vpop.f32.mrf.mxu0
    %v1362 = vadd.f32 %v229, %v1361
    %v1363 = vpop.f32.mrf.mxu0
    %v1364 = vpop.f32.mrf.mxu0
    %v1365 = vpop.f32.mrf.mxu0
    %1366 = vdwg.mxu0
    %1367 = vmatprep.subr.bf16.mxu0 0
    %1368 = vmatpush1.bf16.msra.mxu0 %v756
    %1369 = vmatprep.subr.bf16.mxu0 0
    %1370 = vmatpush1.bf16.msra.mxu0 %v755
    %1371 = vmatprep.subr.bf16.mxu0 0
    %1372 = vmatpush1.bf16.msra.mxu0 %v754
    %1373 = vmatprep.subr.bf16.mxu0 0
    %1374 = vmatpush1.bf16.msra.mxu0 %v753
    %1375 = vmatprep.subr.bf16.mxu0 0
    %1376 = vmatpush1.bf16.msra.mxu0 %v752
    %1377 = vmatprep.subr.bf16.mxu0 0
    %1378 = vmatpush1.bf16.msra.mxu0 %v751
    %1379 = vmatprep.subr.bf16.mxu0 0
    %1380 = vmatpush1.bf16.msra.mxu0 %v750
    %1381 = vmatprep.subr.bf16.mxu0 0
    %1382 = vmatpush1.bf16.msra.mxu0 %v749
    %1383 = vmatprep.subr.bf16.mxu0 0
    %1384 = vmatpush2.bf16.msra.mxu0 %v764
    %1385 = vmatprep.subr.bf16.mxu0 0
    %1386 = vmatpush2.bf16.msra.mxu0 %v763
    %1387 = vmatprep.subr.bf16.mxu0 0
    %1388 = vmatpush2.bf16.msra.mxu0 %v762
    %1389 = vmatprep.subr.bf16.mxu0 0
    %1390 = vmatpush2.bf16.msra.mxu0 %v761
    %1391 = vmatprep.subr.bf16.mxu0 0
    %1392 = vmatpush2.bf16.msra.mxu0 %v760
    %1393 = vmatprep.subr.bf16.mxu0 0
    %1394 = vmatpush2.bf16.msra.mxu0 %v759
    %1395 = vmatprep.subr.bf16.mxu0 0
    %1396 = vmatpush2.bf16.msra.mxu0 %v758
    %1397 = vmatprep.subr.bf16.mxu0 0
    %1398 = vmatpush2.bf16.msra.mxu0 %v757
    %1399 = vmatprep.mubr.bf16.mxu0 %v1271
    %1400 = vmatmul.mubr.bf16.gmra.mxu0 %v1269
    %v1401 = vpop.f32.mrf.mxu0
    %v1402 = vadd.f32 %v1362, %v1401
    %v1403 = vpop.f32.mrf.mxu0
    %v1404 = vpop.f32.mrf.mxu0
    %v1405 = vpop.f32.mrf.mxu0
    %1406 = vdwg.mxu0
    %1407 = vmatprep.subr.bf16.mxu0 0
    %1408 = vmatpush1.bf16.msra.mxu0 %v772
    %1409 = vmatprep.subr.bf16.mxu0 0
    %1410 = vmatpush1.bf16.msra.mxu0 %v771
    %1411 = vmatprep.subr.bf16.mxu0 0
    %1412 = vmatpush1.bf16.msra.mxu0 %v770
    %1413 = vmatprep.subr.bf16.mxu0 0
    %1414 = vmatpush1.bf16.msra.mxu0 %v769
    %1415 = vmatprep.subr.bf16.mxu0 0
    %1416 = vmatpush1.bf16.msra.mxu0 %v768
    %1417 = vmatprep.subr.bf16.mxu0 0
    %1418 = vmatpush1.bf16.msra.mxu0 %v767
    %1419 = vmatprep.subr.bf16.mxu0 0
    %1420 = vmatpush1.bf16.msra.mxu0 %v766
    %1421 = vmatprep.subr.bf16.mxu0 0
    %1422 = vmatpush1.bf16.msra.mxu0 %v765
    %1423 = vmatprep.subr.bf16.mxu0 0
    %1424 = vmatpush2.bf16.msra.mxu0 %v780
    %1425 = vmatprep.subr.bf16.mxu0 0
    %1426 = vmatpush2.bf16.msra.mxu0 %v779
    %1427 = vmatprep.subr.bf16.mxu0 0
    %1428 = vmatpush2.bf16.msra.mxu0 %v778
    %1429 = vmatprep.subr.bf16.mxu0 0
    %1430 = vmatpush2.bf16.msra.mxu0 %v777
    %1431 = vmatprep.subr.bf16.mxu0 0
    %1432 = vmatpush2.bf16.msra.mxu0 %v776
    %1433 = vmatprep.subr.bf16.mxu0 0
    %1434 = vmatpush2.bf16.msra.mxu0 %v775
    %1435 = vmatprep.subr.bf16.mxu0 0
    %1436 = vmatpush2.bf16.msra.mxu0 %v774
    %1437 = vmatprep.subr.bf16.mxu0 0
    %1438 = vmatpush2.bf16.msra.mxu0 %v773
    %1439 = vmatprep.mubr.bf16.mxu0 %v1268
    %1440 = vmatmul.mubr.bf16.gmra.mxu0 %v1254
    %v1441 = vpop.f32.mrf.mxu0
    %v1442 = vadd.f32 %v1402, %v1441
    %v1443 = vpop.f32.mrf.mxu0
    %v1444 = vpop.f32.mrf.mxu0
    %v1445 = vpop.f32.mrf.mxu0
    %1446 = vdwg.mxu0
    %1447 = vmatprep.subr.bf16.mxu0 0
    %1448 = vmatpush1.bf16.msra.mxu0 %v788
    %1449 = vmatprep.subr.bf16.mxu0 0
    %1450 = vmatpush1.bf16.msra.mxu0 %v787
    %1451 = vmatprep.subr.bf16.mxu0 0
    %1452 = vmatpush1.bf16.msra.mxu0 %v786
    %1453 = vmatprep.subr.bf16.mxu0 0
    %1454 = vmatpush1.bf16.msra.mxu0 %v785
    %1455 = vmatprep.subr.bf16.mxu0 0
    %1456 = vmatpush1.bf16.msra.mxu0 %v784
    %1457 = vmatprep.subr.bf16.mxu0 0
    %1458 = vmatpush1.bf16.msra.mxu0 %v783
    %1459 = vmatprep.subr.bf16.mxu0 0
    %1460 = vmatpush1.bf16.msra.mxu0 %v782
    %1461 = vmatprep.subr.bf16.mxu0 0
    %1462 = vmatpush1.bf16.msra.mxu0 %v781
    %1463 = vmatprep.subr.bf16.mxu0 0
    %1464 = vmatpush2.bf16.msra.mxu0 %v796
    %1465 = vmatprep.subr.bf16.mxu0 0
    %1466 = vmatpush2.bf16.msra.mxu0 %v795
    %1467 = vmatprep.subr.bf16.mxu0 0
    %1468 = vmatpush2.bf16.msra.mxu0 %v794
    %1469 = vmatprep.subr.bf16.mxu0 0
    %1470 = vmatpush2.bf16.msra.mxu0 %v793
    %1471 = vmatprep.subr.bf16.mxu0 0
    %1472 = vmatpush2.bf16.msra.mxu0 %v792
    %1473 = vmatprep.subr.bf16.mxu0 0
    %1474 = vmatpush2.bf16.msra.mxu0 %v791
    %1475 = vmatprep.subr.bf16.mxu0 0
    %1476 = vmatpush2.bf16.msra.mxu0 %v790
    %1477 = vmatprep.subr.bf16.mxu0 0
    %1478 = vmatpush2.bf16.msra.mxu0 %v789
    %1479 = vmatprep.mubr.bf16.mxu0 %v1272
    %1480 = vmatmul.mubr.bf16.gmra.mxu0 %v1270
    %v1481 = vpop.f32.mrf.mxu0
    %v1482 = vadd.f32 %v1442, %v1481
    %v1483 = vpop.f32.mrf.mxu0
    %v1484 = vpop.f32.mrf.mxu0
    %v1485 = vpop.f32.mrf.mxu0
    %1486 = vdwg.mxu0
    %1487 = vmatprep.subr.bf16.mxu0 0
    %1488 = vmatpush1.bf16.msra.mxu0 %v804
    %1489 = vmatprep.subr.bf16.mxu0 0
    %1490 = vmatpush1.bf16.msra.mxu0 %v803
    %1491 = vmatprep.subr.bf16.mxu0 0
    %1492 = vmatpush1.bf16.msra.mxu0 %v802
    %1493 = vmatprep.subr.bf16.mxu0 0
    %1494 = vmatpush1.bf16.msra.mxu0 %v801
    %1495 = vmatprep.subr.bf16.mxu0 0
    %1496 = vmatpush1.bf16.msra.mxu0 %v800
    %1497 = vmatprep.subr.bf16.mxu0 0
    %1498 = vmatpush1.bf16.msra.mxu0 %v799
    %1499 = vmatprep.subr.bf16.mxu0 0
    %1500 = vmatpush1.bf16.msra.mxu0 %v798
    %1501 = vmatprep.subr.bf16.mxu0 0
    %1502 = vmatpush1.bf16.msra.mxu0 %v797
    %1503 = vmatprep.subr.bf16.mxu0 0
    %1504 = vmatpush2.bf16.msra.mxu0 %v812
    %1505 = vmatprep.subr.bf16.mxu0 0
    %1506 = vmatpush2.bf16.msra.mxu0 %v811
    %1507 = vmatprep.subr.bf16.mxu0 0
    %1508 = vmatpush2.bf16.msra.mxu0 %v810
    %1509 = vmatprep.subr.bf16.mxu0 0
    %1510 = vmatpush2.bf16.msra.mxu0 %v809
    %1511 = vmatprep.subr.bf16.mxu0 0
    %1512 = vmatpush2.bf16.msra.mxu0 %v808
    %1513 = vmatprep.subr.bf16.mxu0 0
    %1514 = vmatpush2.bf16.msra.mxu0 %v807
    %1515 = vmatprep.subr.bf16.mxu0 0
    %1516 = vmatpush2.bf16.msra.mxu0 %v806
    %1517 = vmatprep.subr.bf16.mxu0 0
    %1518 = vmatpush2.bf16.msra.mxu0 %v805
    %1519 = vmatprep.mubr.bf16.mxu0 %v1309
    %1520 = vmatmul.mubr.bf16.gmra.mxu0 %v1295
    %v1521 = vpop.f32.mrf.mxu0
    %v1522 = vadd.f32 %v1482, %v1521
    %v1523 = vpop.f32.mrf.mxu0
    %v1524 = vpop.f32.mrf.mxu0
    %v1525 = vpop.f32.mrf.mxu0
    %1526 = vdwg.mxu0
    %1527 = vmatprep.subr.bf16.mxu0 0
    %1528 = vmatpush1.bf16.msra.mxu0 %v820
    %1529 = vmatprep.subr.bf16.mxu0 0
    %1530 = vmatpush1.bf16.msra.mxu0 %v819
    %1531 = vmatprep.subr.bf16.mxu0 0
    %1532 = vmatpush1.bf16.msra.mxu0 %v818
    %1533 = vmatprep.subr.bf16.mxu0 0
    %1534 = vmatpush1.bf16.msra.mxu0 %v817
    %1535 = vmatprep.subr.bf16.mxu0 0
    %1536 = vmatpush1.bf16.msra.mxu0 %v816
    %1537 = vmatprep.subr.bf16.mxu0 0
    %1538 = vmatpush1.bf16.msra.mxu0 %v815
    %1539 = vmatprep.subr.bf16.mxu0 0
    %1540 = vmatpush1.bf16.msra.mxu0 %v814
    %1541 = vmatprep.subr.bf16.mxu0 0
    %1542 = vmatpush1.bf16.msra.mxu0 %v813
    %1543 = vmatprep.subr.bf16.mxu0 0
    %1544 = vmatpush2.bf16.msra.mxu0 %v828
    %1545 = vmatprep.subr.bf16.mxu0 0
    %1546 = vmatpush2.bf16.msra.mxu0 %v827
    %1547 = vmatprep.subr.bf16.mxu0 0
    %1548 = vmatpush2.bf16.msra.mxu0 %v826
    %1549 = vmatprep.subr.bf16.mxu0 0
    %1550 = vmatpush2.bf16.msra.mxu0 %v825
    %1551 = vmatprep.subr.bf16.mxu0 0
    %1552 = vmatpush2.bf16.msra.mxu0 %v824
    %1553 = vmatprep.subr.bf16.mxu0 0
    %1554 = vmatpush2.bf16.msra.mxu0 %v823
    %1555 = vmatprep.subr.bf16.mxu0 0
    %1556 = vmatpush2.bf16.msra.mxu0 %v822
    %1557 = vmatprep.subr.bf16.mxu0 0
    %1558 = vmatpush2.bf16.msra.mxu0 %v821
    %1559 = vmatprep.mubr.bf16.mxu0 %v1311
    %1560 = vmatmul.mubr.bf16.gmra.mxu0 %v1310
    %v1561 = vpop.f32.mrf.mxu0
    %v1562 = vadd.f32 %v1522, %v1561
    %v1563 = vpop.f32.mrf.mxu0
    %v1564 = vpop.f32.mrf.mxu0
    %v1565 = vpop.f32.mrf.mxu0
    %1566 = vdwg.mxu0
    %1567 = vmatprep.subr.bf16.mxu0 0
    %1568 = vmatpush1.bf16.msra.mxu0 0
    %1569 = vmatprep.subr.bf16.mxu0 0
    %1570 = vmatpush1.bf16.msra.mxu0 0
    %1571 = vmatprep.subr.bf16.mxu0 0
    %1572 = vmatpush1.bf16.msra.mxu0 0
    %1573 = vmatprep.subr.bf16.mxu0 0
    %1574 = vmatpush1.bf16.msra.mxu0 0
    %1575 = vmatprep.subr.bf16.mxu0 0
    %1576 = vmatpush1.bf16.msra.mxu0 %v832
    %1577 = vmatprep.subr.bf16.mxu0 0
    %1578 = vmatpush1.bf16.msra.mxu0 %v831
    %1579 = vmatprep.subr.bf16.mxu0 0
    %1580 = vmatpush1.bf16.msra.mxu0 %v830
    %1581 = vmatprep.subr.bf16.mxu0 0
    %1582 = vmatpush1.bf16.msra.mxu0 %v829
    %1583 = vmatprep.subr.bf16.mxu0 0
    %1584 = vmatpush2.bf16.msra.mxu0 0
    %1585 = vmatprep.subr.bf16.mxu0 0
    %1586 = vmatpush2.bf16.msra.mxu0 0
    %1587 = vmatprep.subr.bf16.mxu0 0
    %1588 = vmatpush2.bf16.msra.mxu0 0
    %1589 = vmatprep.subr.bf16.mxu0 0
    %1590 = vmatpush2.bf16.msra.mxu0 0
    %1591 = vmatprep.subr.bf16.mxu0 0
    %1592 = vmatpush2.bf16.msra.mxu0 0
    %1593 = vmatprep.subr.bf16.mxu0 0
    %1594 = vmatpush2.bf16.msra.mxu0 0
    %1595 = vmatprep.subr.bf16.mxu0 0
    %1596 = vmatpush2.bf16.msra.mxu0 0
    %1597 = vmatprep.subr.bf16.mxu0 0
    %1598 = vmatpush2.bf16.msra.mxu0 0
    %1599 = vmatprep.mubr.bf16.mxu0 0
    %1600 = vmatmul.mubr.bf16.gmra.mxu0 %v1325
    %v1601 = vpop.f32.mrf.mxu0
    %v1602 = vadd.f32 %v1562, %v1601
    %v1603 = vpop.f32.mrf.mxu0
    %v1604 = vpop.f32.mrf.mxu0
    %v1605 = vpop.f32.mrf.mxu0
    %1606 = vdwg.mxu0
    %v1607 = vmax.f32 %v1602, 0.0
    %s1608 = scalar_lea.vmem %s3, 8
    %v1609 = vld [vmem:[%s1608] sm:$0xff]
    %vm1610 = vcmask 64512
    %v1612 = vsel %vm1610, %v1607, 0
    %1614 = vmatprep.subr.mxu0 0.0
    %1615 = vmatpush1.msra.mxu0 0.0
    %1616 = vmatprep.subr.mxu0 0.0
    %1617 = vmatpush1.msra.mxu0 0.0
    %1618 = vmatprep.subr.mxu0 0.0
    %1619 = vmatpush1.msra.mxu0 0.0
    %1620 = vmatprep.subr.mxu0 0.0
    %1621 = vmatpush1.msra.mxu0 0.0
    %1622 = vmatprep.subr.mxu0 0.0
    %1623 = vmatpush1.msra.mxu0 0.0
    %1624 = vmatprep.subr.mxu0 0.0
    %1625 = vmatpush1.msra.mxu0 0.0
    %1626 = vmatprep.subr.mxu0 0.0
    %1627 = vmatpush1.msra.mxu0 0.0
    %1628 = vmatprep.subr.mxu0 0.0
    %1629 = vmatpush1.msra.mxu0 0.0
    %1630 = vmatprep.subr.mxu0 0.0
    %1631 = vmatpush1.msra.mxu0 0.0
    %1632 = vmatprep.subr.mxu0 0.0
    %1633 = vmatpush1.msra.mxu0 0.0
    %1634 = vmatprep.subr.mxu0 0.0
    %1635 = vmatpush1.msra.mxu0 0.0
    %1636 = vmatprep.subr.mxu0 0.0
    %1637 = vmatpush1.msra.mxu0 0.0
    %1638 = vmatprep.subr.mxu0 0.0
    %1639 = vmatpush1.msra.mxu0 0.0
    %1640 = vmatprep.subr.mxu0 0.0
    %1641 = vmatpush1.msra.mxu0 0.0
    %1642 = vmatprep.subr.mxu0 0.0
    %1643 = vmatpush1.msra.mxu0 0.0
    %1644 = vmatprep.subr.mxu0 0.0
    %1645 = vmatpush1.msra.mxu0 %v1609
    %1646 = vmatprep.subr.mxu0 0.0
    %1647 = vmatpush2.msra.mxu0 0.0
    %1648 = vmatprep.subr.mxu0 0.0
    %1649 = vmatpush2.msra.mxu0 0.0
    %1650 = vmatprep.subr.mxu0 0.0
    %1651 = vmatpush2.msra.mxu0 0.0
    %1652 = vmatprep.subr.mxu0 0.0
    %1653 = vmatpush2.msra.mxu0 0.0
    %1654 = vmatprep.subr.mxu0 0.0
    %1655 = vmatpush2.msra.mxu0 0.0
    %1656 = vmatprep.subr.mxu0 0.0
    %1657 = vmatpush2.msra.mxu0 0.0
    %1658 = vmatprep.subr.mxu0 0.0
    %1659 = vmatpush2.msra.mxu0 0.0
    %1660 = vmatprep.subr.mxu0 0.0
    %1661 = vmatpush2.msra.mxu0 0.0
    %1662 = vmatprep.subr.mxu0 0.0
    %1663 = vmatpush2.msra.mxu0 0.0
    %1664 = vmatprep.subr.mxu0 0.0
    %1665 = vmatpush2.msra.mxu0 0.0
    %1666 = vmatprep.subr.mxu0 0.0
    %1667 = vmatpush2.msra.mxu0 0.0
    %1668 = vmatprep.subr.mxu0 0.0
    %1669 = vmatpush2.msra.mxu0 0.0
    %1670 = vmatprep.subr.mxu0 0.0
    %1671 = vmatpush2.msra.mxu0 0.0
    %1672 = vmatprep.subr.mxu0 0.0
    %1673 = vmatpush2.msra.mxu0 0.0
    %1674 = vmatprep.subr.mxu0 0.0
    %1675 = vmatpush2.msra.mxu0 0.0
    %1676 = vmatprep.subr.mxu0 0.0
    %1677 = vmatpush2.msra.mxu0 0.0
    %1678 = vmatprep.mubr.f32.mxu0 0.0
    %1679 = vmatmul.mubr.f32.gmra.mxu0 %v1612
    %v1680 = vpop.f32.mrf.mxu0
    %v1681 = vadd.f32 0.0, %v1680
    %v1682 = vpop.f32.mrf.mxu0
    %1683 = vdwg.mxu0
    %v1685 = vsel %vm1610, %v1217, 0
    %1687 = vmatprep.subr.mxu0 0.0
    %1688 = vmatpush1.msra.mxu0 0.0
    %1689 = vmatprep.subr.mxu0 0.0
    %1690 = vmatpush1.msra.mxu0 0.0
    %1691 = vmatprep.subr.mxu0 0.0
    %1692 = vmatpush1.msra.mxu0 0.0
    %1693 = vmatprep.subr.mxu0 0.0
    %1694 = vmatpush1.msra.mxu0 0.0
    %1695 = vmatprep.subr.mxu0 0.0
    %1696 = vmatpush1.msra.mxu0 0.0
    %1697 = vmatprep.subr.mxu0 0.0
    %1698 = vmatpush1.msra.mxu0 0.0
    %1699 = vmatprep.subr.mxu0 0.0
    %1700 = vmatpush1.msra.mxu0 0.0
    %1701 = vmatprep.subr.mxu0 0.0
    %1702 = vmatpush1.msra.mxu0 0.0
    %1703 = vmatprep.subr.mxu0 0.0
    %1704 = vmatpush1.msra.mxu0 0.0
    %1705 = vmatprep.subr.mxu0 0.0
    %1706 = vmatpush1.msra.mxu0 0.0
    %1707 = vmatprep.subr.mxu0 0.0
    %1708 = vmatpush1.msra.mxu0 0.0
    %1709 = vmatprep.subr.mxu0 0.0
    %1710 = vmatpush1.msra.mxu0 0.0
    %1711 = vmatprep.subr.mxu0 0.0
    %1712 = vmatpush1.msra.mxu0 0.0
    %1713 = vmatprep.subr.mxu0 0.0
    %1714 = vmatpush1.msra.mxu0 0.0
    %1715 = vmatprep.subr.mxu0 0.0
    %1716 = vmatpush1.msra.mxu0 0.0
    %1717 = vmatprep.subr.mxu0 0.0
    %1718 = vmatpush1.msra.mxu0 %v1218
    %1719 = vmatprep.subr.mxu0 0.0
    %1720 = vmatpush2.msra.mxu0 0.0
    %1721 = vmatprep.subr.mxu0 0.0
    %1722 = vmatpush2.msra.mxu0 0.0
    %1723 = vmatprep.subr.mxu0 0.0
    %1724 = vmatpush2.msra.mxu0 0.0
    %1725 = vmatprep.subr.mxu0 0.0
    %1726 = vmatpush2.msra.mxu0 0.0
    %1727 = vmatprep.subr.mxu0 0.0
    %1728 = vmatpush2.msra.mxu0 0.0
    %1729 = vmatprep.subr.mxu0 0.0
    %1730 = vmatpush2.msra.mxu0 0.0
    %1731 = vmatprep.subr.mxu0 0.0
    %1732 = vmatpush2.msra.mxu0 0.0
    %1733 = vmatprep.subr.mxu0 0.0
    %1734 = vmatpush2.msra.mxu0 0.0
    %1735 = vmatprep.subr.mxu0 0.0
    %1736 = vmatpush2.msra.mxu0 0.0
    %1737 = vmatprep.subr.mxu0 0.0
    %1738 = vmatpush2.msra.mxu0 0.0
    %1739 = vmatprep.subr.mxu0 0.0
    %1740 = vmatpush2.msra.mxu0 0.0
    %1741 = vmatprep.subr.mxu0 0.0
    %1742 = vmatpush2.msra.mxu0 0.0
    %1743 = vmatprep.subr.mxu0 0.0
    %1744 = vmatpush2.msra.mxu0 0.0
    %1745 = vmatprep.subr.mxu0 0.0
    %1746 = vmatpush2.msra.mxu0 0.0
    %1747 = vmatprep.subr.mxu0 0.0
    %1748 = vmatpush2.msra.mxu0 0.0
    %1749 = vmatprep.subr.mxu0 0.0
    %1750 = vmatpush2.msra.mxu0 0.0
    %1751 = vmatprep.mubr.f32.mxu0 0.0
    %1752 = vmatmul.mubr.f32.gmra.mxu0 %v1685
    %v1753 = vpop.f32.mrf.mxu0
    %v1754 = vadd.f32 %v1681, %v1753
    %v1755 = vpop.f32.mrf.mxu0
    %1756 = vdwg.mxu0
    %s1757 = scalar_lea.vmem %s0, 26
    %v1758 = vld [vmem:[%s1757] sm:$0xff]
    %v1759 = vld [vmem:[%s1757 + $0x8] sm:$0x1f]
    %v1762 = vcombine.high %v1758, %v1758
    %v1764 = vunpack.c.l.s4 1966171168
    %v1765 = vunpack.c.0.s8 %v1764
    %v1766 = vlaneseq
    %v1767 = vshrl.u32 %v1766, 7
    %v1768 = vsub.s32 %v1765, %v1767
    %v1769 = vrot.slane %v1758, %v1768
    %v1771 = vunpack.c.l.s4 1966171168
    %v1772 = vunpack.c.0.s8 %v1771
    %v1773 = vlaneseq
    %v1774 = vshrl.u32 %v1773, 7
    %v1775 = vsub.s32 %v1772, %v1774
    %v1776 = vrot.slane %v1762, %v1775
    %v1777 = vcombine.high %v1769, %v1769
    %v1778 = vcombine.high %v1776, %v1776
    %v1780 = vunpack.c.l.s4 1966171168
    %v1781 = vunpack.c.0.s8 %v1780
    %v1782 = vlaneseq
    %v1783 = vshrl.u32 %v1782, 7
    %v1784 = vsub.s32 %v1781, %v1783
    %v1785 = vrot.slane %v1769, %v1784
    %v1787 = vunpack.c.l.s4 1966171168
    %v1788 = vunpack.c.0.s8 %v1787
    %v1789 = vlaneseq
    %v1790 = vshrl.u32 %v1789, 7
    %v1791 = vsub.s32 %v1788, %v1790
    %v1792 = vrot.slane %v1776, %v1791
    %v1794 = vunpack.c.l.s4 1966171168
    %v1795 = vunpack.c.0.s8 %v1794
    %v1796 = vlaneseq
    %v1797 = vshrl.u32 %v1796, 7
    %v1798 = vsub.s32 %v1795, %v1797
    %v1799 = vrot.slane %v1777, %v1798
    %v1801 = vunpack.c.l.s4 1966171168
    %v1802 = vunpack.c.0.s8 %v1801
    %v1803 = vlaneseq
    %v1804 = vshrl.u32 %v1803, 7
    %v1805 = vsub.s32 %v1802, %v1804
    %v1806 = vrot.slane %v1778, %v1805
    %v1807 = vcombine.high %v1785, %v1785
    %v1808 = vcombine.high %v1792, %v1792
    %v1809 = vcombine.high %v1799, %v1799
    %v1810 = vcombine.high %v1806, %v1806
    %v1811 = vcombine.high %v1759, %v1759
    %v1813 = vunpack.c.l.s4 1966171168
    %v1814 = vunpack.c.0.s8 %v1813
    %v1815 = vlaneseq
    %v1816 = vshrl.u32 %v1815, 7
    %v1817 = vsub.s32 %v1814, %v1816
    %v1818 = vrot.slane %v1759, %v1817
    %v1820 = vunpack.c.l.s4 1966171168
    %v1821 = vunpack.c.0.s8 %v1820
    %v1822 = vlaneseq
    %v1823 = vshrl.u32 %v1822, 7
    %v1824 = vsub.s32 %v1821, %v1823
    %v1825 = vrot.slane %v1811, %v1824
    %v1826 = vcombine.high %v1818, %v1818
    %v1828 = vunpack.c.l.s4 1966171168
    %v1829 = vunpack.c.0.s8 %v1828
    %v1830 = vlaneseq
    %v1831 = vshrl.u32 %v1830, 7
    %v1832 = vsub.s32 %v1829, %v1831
    %v1833 = vrot.slane %v1818, %v1832
    %v1835 = vunpack.c.l.s4 1966171168
    %v1836 = vunpack.c.0.s8 %v1835
    %v1837 = vlaneseq
    %v1838 = vshrl.u32 %v1837, 7
    %v1839 = vsub.s32 %v1836, %v1838
    %v1840 = vrot.slane %v1825, %v1839
    %v1842 = vunpack.c.l.s4 1966171168
    %v1843 = vunpack.c.0.s8 %v1842
    %v1844 = vlaneseq
    %v1845 = vshrl.u32 %v1844, 7
    %v1846 = vsub.s32 %v1843, %v1845
    %v1847 = vrot.slane %v1826, %v1846
    %v1848 = vcombine.high %v1833, %v1833
    %v1849 = vcombine.high %v1847, %v1847
    %v1863 = vsel %vm933, %v1840, 0
    %1865 = vmatprep.subr.bf16.mxu0 0
    %1866 = vmatpush1.bf16.msra.mxu0 %v740
    %1867 = vmatprep.subr.bf16.mxu0 0
    %1868 = vmatpush1.bf16.msra.mxu0 %v739
    %1869 = vmatprep.subr.bf16.mxu0 0
    %1870 = vmatpush1.bf16.msra.mxu0 %v738
    %1871 = vmatprep.subr.bf16.mxu0 0
    %1872 = vmatpush1.bf16.msra.mxu0 %v737
    %1873 = vmatprep.subr.bf16.mxu0 0
    %1874 = vmatpush1.bf16.msra.mxu0 %v736
    %1875 = vmatprep.subr.bf16.mxu0 0
    %1876 = vmatpush1.bf16.msra.mxu0 %v735
    %1877 = vmatprep.subr.bf16.mxu0 0
    %1878 = vmatpush1.bf16.msra.mxu0 %v734
    %1879 = vmatprep.subr.bf16.mxu0 0
    %1880 = vmatpush1.bf16.msra.mxu0 %v733
    %1881 = vmatprep.subr.bf16.mxu0 0
    %1882 = vmatpush2.bf16.msra.mxu0 %v748
    %1883 = vmatprep.subr.bf16.mxu0 0
    %1884 = vmatpush2.bf16.msra.mxu0 %v747
    %1885 = vmatprep.subr.bf16.mxu0 0
    %1886 = vmatpush2.bf16.msra.mxu0 %v746
    %1887 = vmatprep.subr.bf16.mxu0 0
    %1888 = vmatpush2.bf16.msra.mxu0 %v745
    %1889 = vmatprep.subr.bf16.mxu0 0
    %1890 = vmatpush2.bf16.msra.mxu0 %v744
    %1891 = vmatprep.subr.bf16.mxu0 0
    %1892 = vmatpush2.bf16.msra.mxu0 %v743
    %1893 = vmatprep.subr.bf16.mxu0 0
    %1894 = vmatpush2.bf16.msra.mxu0 %v742
    %1895 = vmatprep.subr.bf16.mxu0 0
    %1896 = vmatpush2.bf16.msra.mxu0 %v741
    %1897 = vmatprep.mubr.bf16.mxu0 %v1799
    %1898 = vmatmul.mubr.bf16.gmra.mxu0 %v1785
    %v1899 = vpop.f32.mrf.mxu0
    %v1900 = vadd.f32 %v229, %v1899
    %v1901 = vpop.f32.mrf.mxu0
    %v1902 = vpop.f32.mrf.mxu0
    %v1903 = vpop.f32.mrf.mxu0
    %1904 = vdwg.mxu0
    %1905 = vmatprep.subr.bf16.mxu0 0
    %1906 = vmatpush1.bf16.msra.mxu0 %v756
    %1907 = vmatprep.subr.bf16.mxu0 0
    %1908 = vmatpush1.bf16.msra.mxu0 %v755
    %1909 = vmatprep.subr.bf16.mxu0 0
    %1910 = vmatpush1.bf16.msra.mxu0 %v754
    %1911 = vmatprep.subr.bf16.mxu0 0
    %1912 = vmatpush1.bf16.msra.mxu0 %v753
    %1913 = vmatprep.subr.bf16.mxu0 0
    %1914 = vmatpush1.bf16.msra.mxu0 %v752
    %1915 = vmatprep.subr.bf16.mxu0 0
    %1916 = vmatpush1.bf16.msra.mxu0 %v751
    %1917 = vmatprep.subr.bf16.mxu0 0
    %1918 = vmatpush1.bf16.msra.mxu0 %v750
    %1919 = vmatprep.subr.bf16.mxu0 0
    %1920 = vmatpush1.bf16.msra.mxu0 %v749
    %1921 = vmatprep.subr.bf16.mxu0 0
    %1922 = vmatpush2.bf16.msra.mxu0 %v764
    %1923 = vmatprep.subr.bf16.mxu0 0
    %1924 = vmatpush2.bf16.msra.mxu0 %v763
    %1925 = vmatprep.subr.bf16.mxu0 0
    %1926 = vmatpush2.bf16.msra.mxu0 %v762
    %1927 = vmatprep.subr.bf16.mxu0 0
    %1928 = vmatpush2.bf16.msra.mxu0 %v761
    %1929 = vmatprep.subr.bf16.mxu0 0
    %1930 = vmatpush2.bf16.msra.mxu0 %v760
    %1931 = vmatprep.subr.bf16.mxu0 0
    %1932 = vmatpush2.bf16.msra.mxu0 %v759
    %1933 = vmatprep.subr.bf16.mxu0 0
    %1934 = vmatpush2.bf16.msra.mxu0 %v758
    %1935 = vmatprep.subr.bf16.mxu0 0
    %1936 = vmatpush2.bf16.msra.mxu0 %v757
    %1937 = vmatprep.mubr.bf16.mxu0 %v1809
    %1938 = vmatmul.mubr.bf16.gmra.mxu0 %v1807
    %v1939 = vpop.f32.mrf.mxu0
    %v1940 = vadd.f32 %v1900, %v1939
    %v1941 = vpop.f32.mrf.mxu0
    %v1942 = vpop.f32.mrf.mxu0
    %v1943 = vpop.f32.mrf.mxu0
    %1944 = vdwg.mxu0
    %1945 = vmatprep.subr.bf16.mxu0 0
    %1946 = vmatpush1.bf16.msra.mxu0 %v772
    %1947 = vmatprep.subr.bf16.mxu0 0
    %1948 = vmatpush1.bf16.msra.mxu0 %v771
    %1949 = vmatprep.subr.bf16.mxu0 0
    %1950 = vmatpush1.bf16.msra.mxu0 %v770
    %1951 = vmatprep.subr.bf16.mxu0 0
    %1952 = vmatpush1.bf16.msra.mxu0 %v769
    %1953 = vmatprep.subr.bf16.mxu0 0
    %1954 = vmatpush1.bf16.msra.mxu0 %v768
    %1955 = vmatprep.subr.bf16.mxu0 0
    %1956 = vmatpush1.bf16.msra.mxu0 %v767
    %1957 = vmatprep.subr.bf16.mxu0 0
    %1958 = vmatpush1.bf16.msra.mxu0 %v766
    %1959 = vmatprep.subr.bf16.mxu0 0
    %1960 = vmatpush1.bf16.msra.mxu0 %v765
    %1961 = vmatprep.subr.bf16.mxu0 0
    %1962 = vmatpush2.bf16.msra.mxu0 %v780
    %1963 = vmatprep.subr.bf16.mxu0 0
    %1964 = vmatpush2.bf16.msra.mxu0 %v779
    %1965 = vmatprep.subr.bf16.mxu0 0
    %1966 = vmatpush2.bf16.msra.mxu0 %v778
    %1967 = vmatprep.subr.bf16.mxu0 0
    %1968 = vmatpush2.bf16.msra.mxu0 %v777
    %1969 = vmatprep.subr.bf16.mxu0 0
    %1970 = vmatpush2.bf16.msra.mxu0 %v776
    %1971 = vmatprep.subr.bf16.mxu0 0
    %1972 = vmatpush2.bf16.msra.mxu0 %v775
    %1973 = vmatprep.subr.bf16.mxu0 0
    %1974 = vmatpush2.bf16.msra.mxu0 %v774
    %1975 = vmatprep.subr.bf16.mxu0 0
    %1976 = vmatpush2.bf16.msra.mxu0 %v773
    %1977 = vmatprep.mubr.bf16.mxu0 %v1806
    %1978 = vmatmul.mubr.bf16.gmra.mxu0 %v1792
    %v1979 = vpop.f32.mrf.mxu0
    %v1980 = vadd.f32 %v1940, %v1979
    %v1981 = vpop.f32.mrf.mxu0
    %v1982 = vpop.f32.mrf.mxu0
    %v1983 = vpop.f32.mrf.mxu0
    %1984 = vdwg.mxu0
    %1985 = vmatprep.subr.bf16.mxu0 0
    %1986 = vmatpush1.bf16.msra.mxu0 %v788
    %1987 = vmatprep.subr.bf16.mxu0 0
    %1988 = vmatpush1.bf16.msra.mxu0 %v787
    %1989 = vmatprep.subr.bf16.mxu0 0
    %1990 = vmatpush1.bf16.msra.mxu0 %v786
    %1991 = vmatprep.subr.bf16.mxu0 0
    %1992 = vmatpush1.bf16.msra.mxu0 %v785
    %1993 = vmatprep.subr.bf16.mxu0 0
    %1994 = vmatpush1.bf16.msra.mxu0 %v784
    %1995 = vmatprep.subr.bf16.mxu0 0
    %1996 = vmatpush1.bf16.msra.mxu0 %v783
    %1997 = vmatprep.subr.bf16.mxu0 0
    %1998 = vmatpush1.bf16.msra.mxu0 %v782
    %1999 = vmatprep.subr.bf16.mxu0 0
    %2000 = vmatpush1.bf16.msra.mxu0 %v781
    %2001 = vmatprep.subr.bf16.mxu0 0
    %2002 = vmatpush2.bf16.msra.mxu0 %v796
    %2003 = vmatprep.subr.bf16.mxu0 0
    %2004 = vmatpush2.bf16.msra.mxu0 %v795
    %2005 = vmatprep.subr.bf16.mxu0 0
    %2006 = vmatpush2.bf16.msra.mxu0 %v794
    %2007 = vmatprep.subr.bf16.mxu0 0
    %2008 = vmatpush2.bf16.msra.mxu0 %v793
    %2009 = vmatprep.subr.bf16.mxu0 0
    %2010 = vmatpush2.bf16.msra.mxu0 %v792
    %2011 = vmatprep.subr.bf16.mxu0 0
    %2012 = vmatpush2.bf16.msra.mxu0 %v791
    %2013 = vmatprep.subr.bf16.mxu0 0
    %2014 = vmatpush2.bf16.msra.mxu0 %v790
    %2015 = vmatprep.subr.bf16.mxu0 0
    %2016 = vmatpush2.bf16.msra.mxu0 %v789
    %2017 = vmatprep.mubr.bf16.mxu0 %v1810
    %2018 = vmatmul.mubr.bf16.gmra.mxu0 %v1808
    %v2019 = vpop.f32.mrf.mxu0
    %v2020 = vadd.f32 %v1980, %v2019
    %v2021 = vpop.f32.mrf.mxu0
    %v2022 = vpop.f32.mrf.mxu0
    %v2023 = vpop.f32.mrf.mxu0
    %2024 = vdwg.mxu0
    %2025 = vmatprep.subr.bf16.mxu0 0
    %2026 = vmatpush1.bf16.msra.mxu0 %v804
    %2027 = vmatprep.subr.bf16.mxu0 0
    %2028 = vmatpush1.bf16.msra.mxu0 %v803
    %2029 = vmatprep.subr.bf16.mxu0 0
    %2030 = vmatpush1.bf16.msra.mxu0 %v802
    %2031 = vmatprep.subr.bf16.mxu0 0
    %2032 = vmatpush1.bf16.msra.mxu0 %v801
    %2033 = vmatprep.subr.bf16.mxu0 0
    %2034 = vmatpush1.bf16.msra.mxu0 %v800
    %2035 = vmatprep.subr.bf16.mxu0 0
    %2036 = vmatpush1.bf16.msra.mxu0 %v799
    %2037 = vmatprep.subr.bf16.mxu0 0
    %2038 = vmatpush1.bf16.msra.mxu0 %v798
    %2039 = vmatprep.subr.bf16.mxu0 0
    %2040 = vmatpush1.bf16.msra.mxu0 %v797
    %2041 = vmatprep.subr.bf16.mxu0 0
    %2042 = vmatpush2.bf16.msra.mxu0 %v812
    %2043 = vmatprep.subr.bf16.mxu0 0
    %2044 = vmatpush2.bf16.msra.mxu0 %v811
    %2045 = vmatprep.subr.bf16.mxu0 0
    %2046 = vmatpush2.bf16.msra.mxu0 %v810
    %2047 = vmatprep.subr.bf16.mxu0 0
    %2048 = vmatpush2.bf16.msra.mxu0 %v809
    %2049 = vmatprep.subr.bf16.mxu0 0
    %2050 = vmatpush2.bf16.msra.mxu0 %v808
    %2051 = vmatprep.subr.bf16.mxu0 0
    %2052 = vmatpush2.bf16.msra.mxu0 %v807
    %2053 = vmatprep.subr.bf16.mxu0 0
    %2054 = vmatpush2.bf16.msra.mxu0 %v806
    %2055 = vmatprep.subr.bf16.mxu0 0
    %2056 = vmatpush2.bf16.msra.mxu0 %v805
    %2057 = vmatprep.mubr.bf16.mxu0 %v1847
    %2058 = vmatmul.mubr.bf16.gmra.mxu0 %v1833
    %v2059 = vpop.f32.mrf.mxu0
    %v2060 = vadd.f32 %v2020, %v2059
    %v2061 = vpop.f32.mrf.mxu0
    %v2062 = vpop.f32.mrf.mxu0
    %v2063 = vpop.f32.mrf.mxu0
    %2064 = vdwg.mxu0
    %2065 = vmatprep.subr.bf16.mxu0 0
    %2066 = vmatpush1.bf16.msra.mxu0 %v820
    %2067 = vmatprep.subr.bf16.mxu0 0
    %2068 = vmatpush1.bf16.msra.mxu0 %v819
    %2069 = vmatprep.subr.bf16.mxu0 0
    %2070 = vmatpush1.bf16.msra.mxu0 %v818
    %2071 = vmatprep.subr.bf16.mxu0 0
    %2072 = vmatpush1.bf16.msra.mxu0 %v817
    %2073 = vmatprep.subr.bf16.mxu0 0
    %2074 = vmatpush1.bf16.msra.mxu0 %v816
    %2075 = vmatprep.subr.bf16.mxu0 0
    %2076 = vmatpush1.bf16.msra.mxu0 %v815
    %2077 = vmatprep.subr.bf16.mxu0 0
    %2078 = vmatpush1.bf16.msra.mxu0 %v814
    %2079 = vmatprep.subr.bf16.mxu0 0
    %2080 = vmatpush1.bf16.msra.mxu0 %v813
    %2081 = vmatprep.subr.bf16.mxu0 0
    %2082 = vmatpush2.bf16.msra.mxu0 %v828
    %2083 = vmatprep.subr.bf16.mxu0 0
    %2084 = vmatpush2.bf16.msra.mxu0 %v827
    %2085 = vmatprep.subr.bf16.mxu0 0
    %2086 = vmatpush2.bf16.msra.mxu0 %v826
    %2087 = vmatprep.subr.bf16.mxu0 0
    %2088 = vmatpush2.bf16.msra.mxu0 %v825
    %2089 = vmatprep.subr.bf16.mxu0 0
    %2090 = vmatpush2.bf16.msra.mxu0 %v824
    %2091 = vmatprep.subr.bf16.mxu0 0
    %2092 = vmatpush2.bf16.msra.mxu0 %v823
    %2093 = vmatprep.subr.bf16.mxu0 0
    %2094 = vmatpush2.bf16.msra.mxu0 %v822
    %2095 = vmatprep.subr.bf16.mxu0 0
    %2096 = vmatpush2.bf16.msra.mxu0 %v821
    %2097 = vmatprep.mubr.bf16.mxu0 %v1849
    %2098 = vmatmul.mubr.bf16.gmra.mxu0 %v1848
    %v2099 = vpop.f32.mrf.mxu0
    %v2100 = vadd.f32 %v2060, %v2099
    %v2101 = vpop.f32.mrf.mxu0
    %v2102 = vpop.f32.mrf.mxu0
    %v2103 = vpop.f32.mrf.mxu0
    %2104 = vdwg.mxu0
    %2105 = vmatprep.subr.bf16.mxu0 0
    %2106 = vmatpush1.bf16.msra.mxu0 0
    %2107 = vmatprep.subr.bf16.mxu0 0
    %2108 = vmatpush1.bf16.msra.mxu0 0
    %2109 = vmatprep.subr.bf16.mxu0 0
    %2110 = vmatpush1.bf16.msra.mxu0 0
    %2111 = vmatprep.subr.bf16.mxu0 0
    %2112 = vmatpush1.bf16.msra.mxu0 0
    %2113 = vmatprep.subr.bf16.mxu0 0
    %2114 = vmatpush1.bf16.msra.mxu0 %v832
    %2115 = vmatprep.subr.bf16.mxu0 0
    %2116 = vmatpush1.bf16.msra.mxu0 %v831
    %2117 = vmatprep.subr.bf16.mxu0 0
    %2118 = vmatpush1.bf16.msra.mxu0 %v830
    %2119 = vmatprep.subr.bf16.mxu0 0
    %2120 = vmatpush1.bf16.msra.mxu0 %v829
    %2121 = vmatprep.subr.bf16.mxu0 0
    %2122 = vmatpush2.bf16.msra.mxu0 0
    %2123 = vmatprep.subr.bf16.mxu0 0
    %2124 = vmatpush2.bf16.msra.mxu0 0
    %2125 = vmatprep.subr.bf16.mxu0 0
    %2126 = vmatpush2.bf16.msra.mxu0 0
    %2127 = vmatprep.subr.bf16.mxu0 0
    %2128 = vmatpush2.bf16.msra.mxu0 0
    %2129 = vmatprep.subr.bf16.mxu0 0
    %2130 = vmatpush2.bf16.msra.mxu0 0
    %2131 = vmatprep.subr.bf16.mxu0 0
    %2132 = vmatpush2.bf16.msra.mxu0 0
    %2133 = vmatprep.subr.bf16.mxu0 0
    %2134 = vmatpush2.bf16.msra.mxu0 0
    %2135 = vmatprep.subr.bf16.mxu0 0
    %2136 = vmatpush2.bf16.msra.mxu0 0
    %2137 = vmatprep.mubr.bf16.mxu0 0
    %2138 = vmatmul.mubr.bf16.gmra.mxu0 %v1863
    %v2139 = vpop.f32.mrf.mxu0
    %v2140 = vadd.f32 %v2100, %v2139
    %v2141 = vpop.f32.mrf.mxu0
    %v2142 = vpop.f32.mrf.mxu0
    %v2143 = vpop.f32.mrf.mxu0
    %2144 = vdwg.mxu0
    %v2145 = vmax.f32 %v2140, 0.0
    %s2146 = scalar_lea.vmem %s3, 16
    %v2147 = vld [vmem:[%s2146] sm:$0xff]
    %v2149 = vsel %vm1610, %v2145, 0
    %2151 = vmatprep.subr.mxu0 0.0
    %2152 = vmatpush1.msra.mxu0 0.0
    %2153 = vmatprep.subr.mxu0 0.0
    %2154 = vmatpush1.msra.mxu0 0.0
    %2155 = vmatprep.subr.mxu0 0.0
    %2156 = vmatpush1.msra.mxu0 0.0
    %2157 = vmatprep.subr.mxu0 0.0
    %2158 = vmatpush1.msra.mxu0 0.0
    %2159 = vmatprep.subr.mxu0 0.0
    %2160 = vmatpush1.msra.mxu0 0.0
    %2161 = vmatprep.subr.mxu0 0.0
    %2162 = vmatpush1.msra.mxu0 0.0
    %2163 = vmatprep.subr.mxu0 0.0
    %2164 = vmatpush1.msra.mxu0 0.0
    %2165 = vmatprep.subr.mxu0 0.0
    %2166 = vmatpush1.msra.mxu0 0.0
    %2167 = vmatprep.subr.mxu0 0.0
    %2168 = vmatpush1.msra.mxu0 0.0
    %2169 = vmatprep.subr.mxu0 0.0
    %2170 = vmatpush1.msra.mxu0 0.0
    %2171 = vmatprep.subr.mxu0 0.0
    %2172 = vmatpush1.msra.mxu0 0.0
    %2173 = vmatprep.subr.mxu0 0.0
    %2174 = vmatpush1.msra.mxu0 0.0
    %2175 = vmatprep.subr.mxu0 0.0
    %2176 = vmatpush1.msra.mxu0 0.0
    %2177 = vmatprep.subr.mxu0 0.0
    %2178 = vmatpush1.msra.mxu0 0.0
    %2179 = vmatprep.subr.mxu0 0.0
    %2180 = vmatpush1.msra.mxu0 0.0
    %2181 = vmatprep.subr.mxu0 0.0
    %2182 = vmatpush1.msra.mxu0 %v2147
    %2183 = vmatprep.subr.mxu0 0.0
    %2184 = vmatpush2.msra.mxu0 0.0
    %2185 = vmatprep.subr.mxu0 0.0
    %2186 = vmatpush2.msra.mxu0 0.0
    %2187 = vmatprep.subr.mxu0 0.0
    %2188 = vmatpush2.msra.mxu0 0.0
    %2189 = vmatprep.subr.mxu0 0.0
    %2190 = vmatpush2.msra.mxu0 0.0
    %2191 = vmatprep.subr.mxu0 0.0
    %2192 = vmatpush2.msra.mxu0 0.0
    %2193 = vmatprep.subr.mxu0 0.0
    %2194 = vmatpush2.msra.mxu0 0.0
    %2195 = vmatprep.subr.mxu0 0.0
    %2196 = vmatpush2.msra.mxu0 0.0
    %2197 = vmatprep.subr.mxu0 0.0
    %2198 = vmatpush2.msra.mxu0 0.0
    %2199 = vmatprep.subr.mxu0 0.0
    %2200 = vmatpush2.msra.mxu0 0.0
    %2201 = vmatprep.subr.mxu0 0.0
    %2202 = vmatpush2.msra.mxu0 0.0
    %2203 = vmatprep.subr.mxu0 0.0
    %2204 = vmatpush2.msra.mxu0 0.0
    %2205 = vmatprep.subr.mxu0 0.0
    %2206 = vmatpush2.msra.mxu0 0.0
    %2207 = vmatprep.subr.mxu0 0.0
    %2208 = vmatpush2.msra.mxu0 0.0
    %2209 = vmatprep.subr.mxu0 0.0
    %2210 = vmatpush2.msra.mxu0 0.0
    %2211 = vmatprep.subr.mxu0 0.0
    %2212 = vmatpush2.msra.mxu0 0.0
    %2213 = vmatprep.subr.mxu0 0.0
    %2214 = vmatpush2.msra.mxu0 0.0
    %2215 = vmatprep.mubr.f32.mxu0 0.0
    %2216 = vmatmul.mubr.f32.gmra.mxu0 %v2149
    %v2217 = vpop.f32.mrf.mxu0
    %v2218 = vadd.f32 0.0, %v2217
    %v2219 = vpop.f32.mrf.mxu0
    %2220 = vdwg.mxu0
    %v2221 = vadd.f32 %v1754, %v2218
    %s2222 = scalar_lea.vmem %s0, 39
    %v2223 = vld [vmem:[%s2222] sm:$0xff]
    %v2224 = vld [vmem:[%s2222 + $0x8] sm:$0x1f]
    %v2227 = vcombine.high %v2223, %v2223
    %v2229 = vunpack.c.l.s4 1966171168
    %v2230 = vunpack.c.0.s8 %v2229
    %v2231 = vlaneseq
    %v2232 = vshrl.u32 %v2231, 7
    %v2233 = vsub.s32 %v2230, %v2232
    %v2234 = vrot.slane %v2223, %v2233
    %v2236 = vunpack.c.l.s4 1966171168
    %v2237 = vunpack.c.0.s8 %v2236
    %v2238 = vlaneseq
    %v2239 = vshrl.u32 %v2238, 7
    %v2240 = vsub.s32 %v2237, %v2239
    %v2241 = vrot.slane %v2227, %v2240
    %v2242 = vcombine.high %v2234, %v2234
    %v2243 = vcombine.high %v2241, %v2241
    %v2245 = vunpack.c.l.s4 1966171168
    %v2246 = vunpack.c.0.s8 %v2245
    %v2247 = vlaneseq
    %v2248 = vshrl.u32 %v2247, 7
    %v2249 = vsub.s32 %v2246, %v2248
    %v2250 = vrot.slane %v2234, %v2249
    %v2252 = vunpack.c.l.s4 1966171168
    %v2253 = vunpack.c.0.s8 %v2252
    %v2254 = vlaneseq
    %v2255 = vshrl.u32 %v2254, 7
    %v2256 = vsub.s32 %v2253, %v2255
    %v2257 = vrot.slane %v2241, %v2256
    %v2259 = vunpack.c.l.s4 1966171168
    %v2260 = vunpack.c.0.s8 %v2259
    %v2261 = vlaneseq
    %v2262 = vshrl.u32 %v2261, 7
    %v2263 = vsub.s32 %v2260, %v2262
    %v2264 = vrot.slane %v2242, %v2263
    %v2266 = vunpack.c.l.s4 1966171168
    %v2267 = vunpack.c.0.s8 %v2266
    %v2268 = vlaneseq
    %v2269 = vshrl.u32 %v2268, 7
    %v2270 = vsub.s32 %v2267, %v2269
    %v2271 = vrot.slane %v2243, %v2270
    %v2272 = vcombine.high %v2250, %v2250
    %v2273 = vcombine.high %v2257, %v2257
    %v2274 = vcombine.high %v2264, %v2264
    %v2275 = vcombine.high %v2271, %v2271
    %v2276 = vcombine.high %v2224, %v2224
    %v2278 = vunpack.c.l.s4 1966171168
    %v2279 = vunpack.c.0.s8 %v2278
    %v2280 = vlaneseq
    %v2281 = vshrl.u32 %v2280, 7
    %v2282 = vsub.s32 %v2279, %v2281
    %v2283 = vrot.slane %v2224, %v2282
    %v2285 = vunpack.c.l.s4 1966171168
    %v2286 = vunpack.c.0.s8 %v2285
    %v2287 = vlaneseq
    %v2288 = vshrl.u32 %v2287, 7
    %v2289 = vsub.s32 %v2286, %v2288
    %v2290 = vrot.slane %v2276, %v2289
    %v2291 = vcombine.high %v2283, %v2283
    %v2293 = vunpack.c.l.s4 1966171168
    %v2294 = vunpack.c.0.s8 %v2293
    %v2295 = vlaneseq
    %v2296 = vshrl.u32 %v2295, 7
    %v2297 = vsub.s32 %v2294, %v2296
    %v2298 = vrot.slane %v2283, %v2297
    %v2300 = vunpack.c.l.s4 1966171168
    %v2301 = vunpack.c.0.s8 %v2300
    %v2302 = vlaneseq
    %v2303 = vshrl.u32 %v2302, 7
    %v2304 = vsub.s32 %v2301, %v2303
    %v2305 = vrot.slane %v2290, %v2304
    %v2307 = vunpack.c.l.s4 1966171168
    %v2308 = vunpack.c.0.s8 %v2307
    %v2309 = vlaneseq
    %v2310 = vshrl.u32 %v2309, 7
    %v2311 = vsub.s32 %v2308, %v2310
    %v2312 = vrot.slane %v2291, %v2311
    %v2313 = vcombine.high %v2298, %v2298
    %v2314 = vcombine.high %v2312, %v2312
    %v2328 = vsel %vm933, %v2305, 0
    %2330 = vmatprep.subr.bf16.mxu0 0
    %2331 = vmatpush1.bf16.msra.mxu0 %v740
    %2332 = vmatprep.subr.bf16.mxu0 0
    %2333 = vmatpush1.bf16.msra.mxu0 %v739
    %2334 = vmatprep.subr.bf16.mxu0 0
    %2335 = vmatpush1.bf16.msra.mxu0 %v738
    %2336 = vmatprep.subr.bf16.mxu0 0
    %2337 = vmatpush1.bf16.msra.mxu0 %v737
    %2338 = vmatprep.subr.bf16.mxu0 0
    %2339 = vmatpush1.bf16.msra.mxu0 %v736
    %2340 = vmatprep.subr.bf16.mxu0 0
    %2341 = vmatpush1.bf16.msra.mxu0 %v735
    %2342 = vmatprep.subr.bf16.mxu0 0
    %2343 = vmatpush1.bf16.msra.mxu0 %v734
    %2344 = vmatprep.subr.bf16.mxu0 0
    %2345 = vmatpush1.bf16.msra.mxu0 %v733
    %2346 = vmatprep.subr.bf16.mxu0 0
    %2347 = vmatpush2.bf16.msra.mxu0 %v748
    %2348 = vmatprep.subr.bf16.mxu0 0
    %2349 = vmatpush2.bf16.msra.mxu0 %v747
    %2350 = vmatprep.subr.bf16.mxu0 0
    %2351 = vmatpush2.bf16.msra.mxu0 %v746
    %2352 = vmatprep.subr.bf16.mxu0 0
    %2353 = vmatpush2.bf16.msra.mxu0 %v745
    %2354 = vmatprep.subr.bf16.mxu0 0
    %2355 = vmatpush2.bf16.msra.mxu0 %v744
    %2356 = vmatprep.subr.bf16.mxu0 0
    %2357 = vmatpush2.bf16.msra.mxu0 %v743
    %2358 = vmatprep.subr.bf16.mxu0 0
    %2359 = vmatpush2.bf16.msra.mxu0 %v742
    %2360 = vmatprep.subr.bf16.mxu0 0
    %2361 = vmatpush2.bf16.msra.mxu0 %v741
    %2362 = vmatprep.mubr.bf16.mxu0 %v2264
    %2363 = vmatmul.mubr.bf16.gmra.mxu0 %v2250
    %v2364 = vpop.f32.mrf.mxu0
    %v2365 = vadd.f32 %v229, %v2364
    %v2366 = vpop.f32.mrf.mxu0
    %v2367 = vpop.f32.mrf.mxu0
    %v2368 = vpop.f32.mrf.mxu0
    %2369 = vdwg.mxu0
    %2370 = vmatprep.subr.bf16.mxu0 0
    %2371 = vmatpush1.bf16.msra.mxu0 %v756
    %2372 = vmatprep.subr.bf16.mxu0 0
    %2373 = vmatpush1.bf16.msra.mxu0 %v755
    %2374 = vmatprep.subr.bf16.mxu0 0
    %2375 = vmatpush1.bf16.msra.mxu0 %v754
    %2376 = vmatprep.subr.bf16.mxu0 0
    %2377 = vmatpush1.bf16.msra.mxu0 %v753
    %2378 = vmatprep.subr.bf16.mxu0 0
    %2379 = vmatpush1.bf16.msra.mxu0 %v752
    %2380 = vmatprep.subr.bf16.mxu0 0
    %2381 = vmatpush1.bf16.msra.mxu0 %v751
    %2382 = vmatprep.subr.bf16.mxu0 0
    %2383 = vmatpush1.bf16.msra.mxu0 %v750
    %2384 = vmatprep.subr.bf16.mxu0 0
    %2385 = vmatpush1.bf16.msra.mxu0 %v749
    %2386 = vmatprep.subr.bf16.mxu0 0
    %2387 = vmatpush2.bf16.msra.mxu0 %v764
    %2388 = vmatprep.subr.bf16.mxu0 0
    %2389 = vmatpush2.bf16.msra.mxu0 %v763
    %2390 = vmatprep.subr.bf16.mxu0 0
    %2391 = vmatpush2.bf16.msra.mxu0 %v762
    %2392 = vmatprep.subr.bf16.mxu0 0
    %2393 = vmatpush2.bf16.msra.mxu0 %v761
    %2394 = vmatprep.subr.bf16.mxu0 0
    %2395 = vmatpush2.bf16.msra.mxu0 %v760
    %2396 = vmatprep.subr.bf16.mxu0 0
    %2397 = vmatpush2.bf16.msra.mxu0 %v759
    %2398 = vmatprep.subr.bf16.mxu0 0
    %2399 = vmatpush2.bf16.msra.mxu0 %v758
    %2400 = vmatprep.subr.bf16.mxu0 0
    %2401 = vmatpush2.bf16.msra.mxu0 %v757
    %2402 = vmatprep.mubr.bf16.mxu0 %v2274
    %2403 = vmatmul.mubr.bf16.gmra.mxu0 %v2272
    %v2404 = vpop.f32.mrf.mxu0
    %v2405 = vadd.f32 %v2365, %v2404
    %v2406 = vpop.f32.mrf.mxu0
    %v2407 = vpop.f32.mrf.mxu0
    %v2408 = vpop.f32.mrf.mxu0
    %2409 = vdwg.mxu0
    %2410 = vmatprep.subr.bf16.mxu0 0
    %2411 = vmatpush1.bf16.msra.mxu0 %v772
    %2412 = vmatprep.subr.bf16.mxu0 0
    %2413 = vmatpush1.bf16.msra.mxu0 %v771
    %2414 = vmatprep.subr.bf16.mxu0 0
    %2415 = vmatpush1.bf16.msra.mxu0 %v770
    %2416 = vmatprep.subr.bf16.mxu0 0
    %2417 = vmatpush1.bf16.msra.mxu0 %v769
    %2418 = vmatprep.subr.bf16.mxu0 0
    %2419 = vmatpush1.bf16.msra.mxu0 %v768
    %2420 = vmatprep.subr.bf16.mxu0 0
    %2421 = vmatpush1.bf16.msra.mxu0 %v767
    %2422 = vmatprep.subr.bf16.mxu0 0
    %2423 = vmatpush1.bf16.msra.mxu0 %v766
    %2424 = vmatprep.subr.bf16.mxu0 0
    %2425 = vmatpush1.bf16.msra.mxu0 %v765
    %2426 = vmatprep.subr.bf16.mxu0 0
    %2427 = vmatpush2.bf16.msra.mxu0 %v780
    %2428 = vmatprep.subr.bf16.mxu0 0
    %2429 = vmatpush2.bf16.msra.mxu0 %v779
    %2430 = vmatprep.subr.bf16.mxu0 0
    %2431 = vmatpush2.bf16.msra.mxu0 %v778
    %2432 = vmatprep.subr.bf16.mxu0 0
    %2433 = vmatpush2.bf16.msra.mxu0 %v777
    %2434 = vmatprep.subr.bf16.mxu0 0
    %2435 = vmatpush2.bf16.msra.mxu0 %v776
    %2436 = vmatprep.subr.bf16.mxu0 0
    %2437 = vmatpush2.bf16.msra.mxu0 %v775
    %2438 = vmatprep.subr.bf16.mxu0 0
    %2439 = vmatpush2.bf16.msra.mxu0 %v774
    %2440 = vmatprep.subr.bf16.mxu0 0
    %2441 = vmatpush2.bf16.msra.mxu0 %v773
    %2442 = vmatprep.mubr.bf16.mxu0 %v2271
    %2443 = vmatmul.mubr.bf16.gmra.mxu0 %v2257
    %v2444 = vpop.f32.mrf.mxu0
    %v2445 = vadd.f32 %v2405, %v2444
    %v2446 = vpop.f32.mrf.mxu0
    %v2447 = vpop.f32.mrf.mxu0
    %v2448 = vpop.f32.mrf.mxu0
    %2449 = vdwg.mxu0
    %2450 = vmatprep.subr.bf16.mxu0 0
    %2451 = vmatpush1.bf16.msra.mxu0 %v788
    %2452 = vmatprep.subr.bf16.mxu0 0
    %2453 = vmatpush1.bf16.msra.mxu0 %v787
    %2454 = vmatprep.subr.bf16.mxu0 0
    %2455 = vmatpush1.bf16.msra.mxu0 %v786
    %2456 = vmatprep.subr.bf16.mxu0 0
    %2457 = vmatpush1.bf16.msra.mxu0 %v785
    %2458 = vmatprep.subr.bf16.mxu0 0
    %2459 = vmatpush1.bf16.msra.mxu0 %v784
    %2460 = vmatprep.subr.bf16.mxu0 0
    %2461 = vmatpush1.bf16.msra.mxu0 %v783
    %2462 = vmatprep.subr.bf16.mxu0 0
    %2463 = vmatpush1.bf16.msra.mxu0 %v782
    %2464 = vmatprep.subr.bf16.mxu0 0
    %2465 = vmatpush1.bf16.msra.mxu0 %v781
    %2466 = vmatprep.subr.bf16.mxu0 0
    %2467 = vmatpush2.bf16.msra.mxu0 %v796
    %2468 = vmatprep.subr.bf16.mxu0 0
    %2469 = vmatpush2.bf16.msra.mxu0 %v795
    %2470 = vmatprep.subr.bf16.mxu0 0
    %2471 = vmatpush2.bf16.msra.mxu0 %v794
    %2472 = vmatprep.subr.bf16.mxu0 0
    %2473 = vmatpush2.bf16.msra.mxu0 %v793
    %2474 = vmatprep.subr.bf16.mxu0 0
    %2475 = vmatpush2.bf16.msra.mxu0 %v792
    %2476 = vmatprep.subr.bf16.mxu0 0
    %2477 = vmatpush2.bf16.msra.mxu0 %v791
    %2478 = vmatprep.subr.bf16.mxu0 0
    %2479 = vmatpush2.bf16.msra.mxu0 %v790
    %2480 = vmatprep.subr.bf16.mxu0 0
    %2481 = vmatpush2.bf16.msra.mxu0 %v789
    %2482 = vmatprep.mubr.bf16.mxu0 %v2275
    %2483 = vmatmul.mubr.bf16.gmra.mxu0 %v2273
    %v2484 = vpop.f32.mrf.mxu0
    %v2485 = vadd.f32 %v2445, %v2484
    %v2486 = vpop.f32.mrf.mxu0
    %v2487 = vpop.f32.mrf.mxu0
    %v2488 = vpop.f32.mrf.mxu0
    %2489 = vdwg.mxu0
    %2490 = vmatprep.subr.bf16.mxu0 0
    %2491 = vmatpush1.bf16.msra.mxu0 %v804
    %2492 = vmatprep.subr.bf16.mxu0 0
    %2493 = vmatpush1.bf16.msra.mxu0 %v803
    %2494 = vmatprep.subr.bf16.mxu0 0
    %2495 = vmatpush1.bf16.msra.mxu0 %v802
    %2496 = vmatprep.subr.bf16.mxu0 0
    %2497 = vmatpush1.bf16.msra.mxu0 %v801
    %2498 = vmatprep.subr.bf16.mxu0 0
    %2499 = vmatpush1.bf16.msra.mxu0 %v800
    %2500 = vmatprep.subr.bf16.mxu0 0
    %2501 = vmatpush1.bf16.msra.mxu0 %v799
    %2502 = vmatprep.subr.bf16.mxu0 0
    %2503 = vmatpush1.bf16.msra.mxu0 %v798
    %2504 = vmatprep.subr.bf16.mxu0 0
    %2505 = vmatpush1.bf16.msra.mxu0 %v797
    %2506 = vmatprep.subr.bf16.mxu0 0
    %2507 = vmatpush2.bf16.msra.mxu0 %v812
    %2508 = vmatprep.subr.bf16.mxu0 0
    %2509 = vmatpush2.bf16.msra.mxu0 %v811
    %2510 = vmatprep.subr.bf16.mxu0 0
    %2511 = vmatpush2.bf16.msra.mxu0 %v810
    %2512 = vmatprep.subr.bf16.mxu0 0
    %2513 = vmatpush2.bf16.msra.mxu0 %v809
    %2514 = vmatprep.subr.bf16.mxu0 0
    %2515 = vmatpush2.bf16.msra.mxu0 %v808
    %2516 = vmatprep.subr.bf16.mxu0 0
    %2517 = vmatpush2.bf16.msra.mxu0 %v807
    %2518 = vmatprep.subr.bf16.mxu0 0
    %2519 = vmatpush2.bf16.msra.mxu0 %v806
    %2520 = vmatprep.subr.bf16.mxu0 0
    %2521 = vmatpush2.bf16.msra.mxu0 %v805
    %2522 = vmatprep.mubr.bf16.mxu0 %v2312
    %2523 = vmatmul.mubr.bf16.gmra.mxu0 %v2298
    %v2524 = vpop.f32.mrf.mxu0
    %v2525 = vadd.f32 %v2485, %v2524
    %v2526 = vpop.f32.mrf.mxu0
    %v2527 = vpop.f32.mrf.mxu0
    %v2528 = vpop.f32.mrf.mxu0
    %2529 = vdwg.mxu0
    %2530 = vmatprep.subr.bf16.mxu0 0
    %2531 = vmatpush1.bf16.msra.mxu0 %v820
    %2532 = vmatprep.subr.bf16.mxu0 0
    %2533 = vmatpush1.bf16.msra.mxu0 %v819
    %2534 = vmatprep.subr.bf16.mxu0 0
    %2535 = vmatpush1.bf16.msra.mxu0 %v818
    %2536 = vmatprep.subr.bf16.mxu0 0
    %2537 = vmatpush1.bf16.msra.mxu0 %v817
    %2538 = vmatprep.subr.bf16.mxu0 0
    %2539 = vmatpush1.bf16.msra.mxu0 %v816
    %2540 = vmatprep.subr.bf16.mxu0 0
    %2541 = vmatpush1.bf16.msra.mxu0 %v815
    %2542 = vmatprep.subr.bf16.mxu0 0
    %2543 = vmatpush1.bf16.msra.mxu0 %v814
    %2544 = vmatprep.subr.bf16.mxu0 0
    %2545 = vmatpush1.bf16.msra.mxu0 %v813
    %2546 = vmatprep.subr.bf16.mxu0 0
    %2547 = vmatpush2.bf16.msra.mxu0 %v828
    %2548 = vmatprep.subr.bf16.mxu0 0
    %2549 = vmatpush2.bf16.msra.mxu0 %v827
    %2550 = vmatprep.subr.bf16.mxu0 0
    %2551 = vmatpush2.bf16.msra.mxu0 %v826
    %2552 = vmatprep.subr.bf16.mxu0 0
    %2553 = vmatpush2.bf16.msra.mxu0 %v825
    %2554 = vmatprep.subr.bf16.mxu0 0
    %2555 = vmatpush2.bf16.msra.mxu0 %v824
    %2556 = vmatprep.subr.bf16.mxu0 0
    %2557 = vmatpush2.bf16.msra.mxu0 %v823
    %2558 = vmatprep.subr.bf16.mxu0 0
    %2559 = vmatpush2.bf16.msra.mxu0 %v822
    %2560 = vmatprep.subr.bf16.mxu0 0
    %2561 = vmatpush2.bf16.msra.mxu0 %v821
    %2562 = vmatprep.mubr.bf16.mxu0 %v2314
    %2563 = vmatmul.mubr.bf16.gmra.mxu0 %v2313
    %v2564 = vpop.f32.mrf.mxu0
    %v2565 = vadd.f32 %v2525, %v2564
    %v2566 = vpop.f32.mrf.mxu0
    %v2567 = vpop.f32.mrf.mxu0
    %v2568 = vpop.f32.mrf.mxu0
    %2569 = vdwg.mxu0
    %2570 = vmatprep.subr.bf16.mxu0 0
    %2571 = vmatpush1.bf16.msra.mxu0 0
    %2572 = vmatprep.subr.bf16.mxu0 0
    %2573 = vmatpush1.bf16.msra.mxu0 0
    %2574 = vmatprep.subr.bf16.mxu0 0
    %2575 = vmatpush1.bf16.msra.mxu0 0
    %2576 = vmatprep.subr.bf16.mxu0 0
    %2577 = vmatpush1.bf16.msra.mxu0 0
    %2578 = vmatprep.subr.bf16.mxu0 0
    %2579 = vmatpush1.bf16.msra.mxu0 %v832
    %2580 = vmatprep.subr.bf16.mxu0 0
    %2581 = vmatpush1.bf16.msra.mxu0 %v831
    %2582 = vmatprep.subr.bf16.mxu0 0
    %2583 = vmatpush1.bf16.msra.mxu0 %v830
    %2584 = vmatprep.subr.bf16.mxu0 0
    %2585 = vmatpush1.bf16.msra.mxu0 %v829
    %2586 = vmatprep.subr.bf16.mxu0 0
    %2587 = vmatpush2.bf16.msra.mxu0 0
    %2588 = vmatprep.subr.bf16.mxu0 0
    %2589 = vmatpush2.bf16.msra.mxu0 0
    %2590 = vmatprep.subr.bf16.mxu0 0
    %2591 = vmatpush2.bf16.msra.mxu0 0
    %2592 = vmatprep.subr.bf16.mxu0 0
    %2593 = vmatpush2.bf16.msra.mxu0 0
    %2594 = vmatprep.subr.bf16.mxu0 0
    %2595 = vmatpush2.bf16.msra.mxu0 0
    %2596 = vmatprep.subr.bf16.mxu0 0
    %2597 = vmatpush2.bf16.msra.mxu0 0
    %2598 = vmatprep.subr.bf16.mxu0 0
    %2599 = vmatpush2.bf16.msra.mxu0 0
    %2600 = vmatprep.subr.bf16.mxu0 0
    %2601 = vmatpush2.bf16.msra.mxu0 0
    %2602 = vmatprep.mubr.bf16.mxu0 0
    %2603 = vmatmul.mubr.bf16.gmra.mxu0 %v2328
    %v2604 = vpop.f32.mrf.mxu0
    %v2605 = vadd.f32 %v2565, %v2604
    %v2606 = vpop.f32.mrf.mxu0
    %v2607 = vpop.f32.mrf.mxu0
    %v2608 = vpop.f32.mrf.mxu0
    %2609 = vdwg.mxu0
    %v2610 = vmax.f32 %v2605, 0.0
    %s2611 = scalar_lea.vmem %s3, 24
    %v2612 = vld [vmem:[%s2611] sm:$0xff]
    %v2614 = vsel %vm1610, %v2610, 0
    %2616 = vmatprep.subr.mxu0 0.0
    %2617 = vmatpush1.msra.mxu0 0.0
    %2618 = vmatprep.subr.mxu0 0.0
    %2619 = vmatpush1.msra.mxu0 0.0
    %2620 = vmatprep.subr.mxu0 0.0
    %2621 = vmatpush1.msra.mxu0 0.0
    %2622 = vmatprep.subr.mxu0 0.0
    %2623 = vmatpush1.msra.mxu0 0.0
    %2624 = vmatprep.subr.mxu0 0.0
    %2625 = vmatpush1.msra.mxu0 0.0
    %2626 = vmatprep.subr.mxu0 0.0
    %2627 = vmatpush1.msra.mxu0 0.0
    %2628 = vmatprep.subr.mxu0 0.0
    %2629 = vmatpush1.msra.mxu0 0.0
    %2630 = vmatprep.subr.mxu0 0.0
    %2631 = vmatpush1.msra.mxu0 0.0
    %2632 = vmatprep.subr.mxu0 0.0
    %2633 = vmatpush1.msra.mxu0 0.0
    %2634 = vmatprep.subr.mxu0 0.0
    %2635 = vmatpush1.msra.mxu0 0.0
    %2636 = vmatprep.subr.mxu0 0.0
    %2637 = vmatpush1.msra.mxu0 0.0
    %2638 = vmatprep.subr.mxu0 0.0
    %2639 = vmatpush1.msra.mxu0 0.0
    %2640 = vmatprep.subr.mxu0 0.0
    %2641 = vmatpush1.msra.mxu0 0.0
    %2642 = vmatprep.subr.mxu0 0.0
    %2643 = vmatpush1.msra.mxu0 0.0
    %2644 = vmatprep.subr.mxu0 0.0
    %2645 = vmatpush1.msra.mxu0 0.0
    %2646 = vmatprep.subr.mxu0 0.0
    %2647 = vmatpush1.msra.mxu0 %v2612
    %2648 = vmatprep.subr.mxu0 0.0
    %2649 = vmatpush2.msra.mxu0 0.0
    %2650 = vmatprep.subr.mxu0 0.0
    %2651 = vmatpush2.msra.mxu0 0.0
    %2652 = vmatprep.subr.mxu0 0.0
    %2653 = vmatpush2.msra.mxu0 0.0
    %2654 = vmatprep.subr.mxu0 0.0
    %2655 = vmatpush2.msra.mxu0 0.0
    %2656 = vmatprep.subr.mxu0 0.0
    %2657 = vmatpush2.msra.mxu0 0.0
    %2658 = vmatprep.subr.mxu0 0.0
    %2659 = vmatpush2.msra.mxu0 0.0
    %2660 = vmatprep.subr.mxu0 0.0
    %2661 = vmatpush2.msra.mxu0 0.0
    %2662 = vmatprep.subr.mxu0 0.0
    %2663 = vmatpush2.msra.mxu0 0.0
    %2664 = vmatprep.subr.mxu0 0.0
    %2665 = vmatpush2.msra.mxu0 0.0
    %2666 = vmatprep.subr.mxu0 0.0
    %2667 = vmatpush2.msra.mxu0 0.0
    %2668 = vmatprep.subr.mxu0 0.0
    %2669 = vmatpush2.msra.mxu0 0.0
    %2670 = vmatprep.subr.mxu0 0.0
    %2671 = vmatpush2.msra.mxu0 0.0
    %2672 = vmatprep.subr.mxu0 0.0
    %2673 = vmatpush2.msra.mxu0 0.0
    %2674 = vmatprep.subr.mxu0 0.0
    %2675 = vmatpush2.msra.mxu0 0.0
    %2676 = vmatprep.subr.mxu0 0.0
    %2677 = vmatpush2.msra.mxu0 0.0
    %2678 = vmatprep.subr.mxu0 0.0
    %2679 = vmatpush2.msra.mxu0 0.0
    %2680 = vmatprep.mubr.f32.mxu0 0.0
    %2681 = vmatmul.mubr.f32.gmra.mxu0 %v2614
    %v2682 = vpop.f32.mrf.mxu0
    %v2683 = vadd.f32 0.0, %v2682
    %v2684 = vpop.f32.mrf.mxu0
    %2685 = vdwg.mxu0
    %v2686 = vadd.f32 %v2221, %v2683
    %v2687 = vld [vmem:[%s4] sm:$0x1]
    %v2689 = vlaneseq
    %v2690 = vshrl.u32 %v2689, 7
    %v2691 = vsub.s32 0, %v2690
    %v2692 = vrot.slane %v2687, %v2691
    %v2694 = vadd.f32 %v2686, %v2692
    %vm2695 = vcmask 9216
    %2696 = vst.msk [vmem:[#allocation2] sm:$0x3] %vm2695, %v2694
    // Predicated region
    $region22: #{target_forward.5} parent=1 // pred_check
      _
    $region23: #{target_forward.5} parent=1 // pred_check_branch
      %2698 = sbr.rel (0) target = $region25
    $region24: #{target_forward.5} parent=1 // pred_region
      %s2700 = ssub.s32 32, 32
      %2701 = vsyncadd [#allocation3], %s2700
      %s2703 = sshll.u32 [#allocation2], 4
      %s2704 = int_to_ptr.vmem [resolvable:$true] %s2703
      %2706 = dma.vmem_to_hbm [thread:$0]  %s2704, 32, %s5, [#allocation3]
    $region25: #{target_forward.5} parent=1 // pred_fallthru
      _
    // Predicated region
    $region26: #{target_forward.5} parent=1 // pred_check
      _
    $region27: #{target_forward.5} parent=1 // pred_check_branch
      %2708 = sbr.rel (0) target = $region29
    $region28: #{target_forward.5} parent=1 // pred_region
      %2709 = dma.done [#allocation3], 32
    $region29: #{target_forward.5} parent=1 // pred_fallthru
      _
    %2710 = vsyncpa [#allocation3], 1

</llo_original>
